<compile_context>
chip_gen: v6e
topology: v6e:2x2x1
jax: 0.10.0
libtpu: 0.0.40
codegen_flags: <defaults>
</compile_context>

<pallas_src>
import numpy as np
import jax
import jax.numpy as jnp
from jax.experimental import pallas as pl
from jax.experimental.pallas import tpu as pltpu

# ---------------- config (small, consistent with the module) ----------------
TOKEN_EMBED = 32
NUM_HEADS = 2
HEAD_DIM = TOKEN_EMBED // NUM_HEADS
MLP_DIM = 64
NUM_LAYERS = 2
MAX_HORIZON_DIM = 10
NUM_TOKENS = {"primary": 6, "wrist": 4, "language": 4, "action": 1}
LANG_DIM = 16   # task tokenizer output_dim
OBS_DIM = 24    # observation tokenizer output_dim
ACTION_DIM = 7
LN_EPS = 1e-5   # torch.nn.LayerNorm default
NEG_INF = -1e30

# ---- packed weight-table row offsets (all matrices with 32 output lanes) ----
OFF_WLANG = 0
OFF_WPRIM = OFF_WLANG + LANG_DIM              # 16
OFF_WWRIST = OFF_WPRIM + OBS_DIM              # 40
OFF_WO = OFF_WWRIST + OBS_DIM                 # 64
OFF_W2 = OFF_WO + NUM_LAYERS * TOKEN_EMBED    # 128
OFF_HEADW = OFF_W2 + NUM_LAYERS * MLP_DIM     # 256
W32_ROWS = OFF_HEADW + TOKEN_EMBED            # 288

# ---- packed (1, 32)-vector table rows ----
VROWS_PER_LAYER = 6
V_LN1_G, V_LN1_B, V_LN2_G, V_LN2_B, V_BO, V_B2 = range(6)
V_FINAL_G = NUM_LAYERS * VROWS_PER_LAYER
V_FINAL_B = V_FINAL_G + 1
V_HEAD_B = V_FINAL_B + 1
NVEC_ROWS = V_HEAD_B + 1


# ------------------------------ fused kernel ---------------------------------
def _ln(x, g, b):
    """LayerNorm over the last (lane) dim; g, b are (1, D)."""
    mean = jnp.mean(x, axis=-1, keepdims=True)
    c = x - mean
    var = jnp.mean(c * c, axis=-1, keepdims=True)
    return c * jax.lax.rsqrt(var + LN_EPS) * g + b


def _make_kernel(BB, H):
    """Build the fused kernel for BB batch elements folded per grid block."""
    NL, NP, NW, NA = (NUM_TOKENS["language"], NUM_TOKENS["primary"],
                      NUM_TOKENS["wrist"], NUM_TOKENS["action"])
    n_lang, n_prim = BB * NL, BB * H * NP
    n_wrist, n_ro = BB * H * NW, BB * H * NA
    ro_start = n_lang + n_prim + n_wrist
    D, Dh, NH = TOKEN_EMBED, HEAD_DIM, NUM_HEADS
    NHD = NH * Dh
    f32 = jnp.float32

    def kernel(lang_ref, prim_ref, wrist_ref, pad_ref,        # per-block data
               allow_ref, pos_ref, w32_ref, wqkv_ref, bqkv_ref,
               w1_ref, b1_ref, vec_ref,                        # packed weights
               seq_out_ref, act_out_ref):                      # outputs
        w32 = w32_ref[...]
        vecs = vec_ref[...]

        # ---- fused input projections (batch folded on sublanes) + pos emb ---
        lang_e = jnp.dot(lang_ref[...], w32[OFF_WLANG:OFF_WLANG + LANG_DIM],
                         preferred_element_type=f32)
        prim_e = jnp.dot(prim_ref[...], w32[OFF_WPRIM:OFF_WPRIM + OBS_DIM],
                         preferred_element_type=f32)
        wrist_e = jnp.dot(wrist_ref[...], w32[OFF_WWRIST:OFF_WWRIST + OBS_DIM],
                          preferred_element_type=f32)
        ro_e = jnp.zeros((n_ro, D), f32)
        # pos table already carries the projection biases per group.
        x = jnp.concatenate([lang_e, prim_e, wrist_e, ro_e], axis=0) + pos_ref[...]

        # ---- attention bias: (same-batch AND blockwise-causal) AND key pad --
        # Every query row always keeps >= 1 allowed key (task tokens are never
        # padded), so no softmax row is entirely NEG_INF.
        allow = (allow_ref[...] > 0.5) & (pad_ref[...] > 0.5)   # (BS, BS)&(1, BS)
        bias = jnp.where(allow, f32(0.0), f32(NEG_INF))

        for l in range(NUM_LAYERS):
            v0 = l * VROWS_PER_LAYER
            h = _ln(x, vecs[v0 + V_LN1_G:v0 + V_LN1_G + 1],
                    vecs[v0 + V_LN1_B:v0 + V_LN1_B + 1])
            # fused QKV matmul; 1/sqrt(Dh) already folded into the Q columns.
            qkv = jnp.dot(h, wqkv_ref[l], preferred_element_type=f32) + bqkv_ref[l]
            ctxs = []
            for hh in range(NH):
                q = qkv[:, hh * Dh:(hh + 1) * Dh]
                k = qkv[:, NHD + hh * Dh:NHD + (hh + 1) * Dh]
                v = qkv[:, 2 * NHD + hh * Dh:2 * NHD + (hh + 1) * Dh]
                s = jax.lax.dot_general(q, k, (((1,), (1,)), ((), ())),
                                        preferred_element_type=f32) + bias
                s = s - jnp.max(s, axis=-1, keepdims=True)
                p = jnp.exp(s)
                r = jnp.sum(p, axis=-1, keepdims=True)
                # normalize after the PV matmul on the narrow (BS, Dh) tensor;
                # the divide rides the EUP slot via the approximate reciprocal.
                ctxs.append(jnp.dot(p, v, preferred_element_type=f32)
                            * pl.reciprocal(r, approx=True))
            ctx = jnp.concatenate(ctxs, axis=-1)                 # (BS, D)
            wo_l = w32[OFF_WO + l * D:OFF_WO + (l + 1) * D]
            x = (x + jnp.dot(ctx, wo_l, preferred_element_type=f32)
                 + vecs[v0 + V_BO:v0 + V_BO + 1])

            h2 = _ln(x, vecs[v0 + V_LN2_G:v0 + V_LN2_G + 1],
                     vecs[v0 + V_LN2_B:v0 + V_LN2_B + 1])
            m = jnp.dot(h2, w1_ref[l], preferred_element_type=f32) + b1_ref[l]
            # TODO(synk): PyTorch nn.GELU default is exact erf; tanh approx here.
            m = jax.nn.gelu(m, approximate=True)
            w2_l = w32[OFF_W2 + l * MLP_DIM:OFF_W2 + (l + 1) * MLP_DIM]
            x = (x + jnp.dot(m, w2_l, preferred_element_type=f32)
                 + vecs[v0 + V_B2:v0 + V_B2 + 1])

        x = _ln(x, vecs[V_FINAL_G:V_FINAL_G + 1], vecs[V_FINAL_B:V_FINAL_B + 1])
        seq_out_ref[...] = x

        # ---- linear action head on the readout tokens (NA == 1 per step) ----
        ro = x[ro_start:ro_start + n_ro]                         # (BB*H, D)
        act = (jnp.dot(ro, w32[OFF_HEADW:OFF_HEADW + D], preferred_element_type=f32)
               + vecs[V_HEAD_B:V_HEAD_B + 1])
        act_out_ref[...] = act[:, :ACTION_DIM]

    return kernel


# -------------------------- parameter initialization -------------------------
def _normal(key, shape, scale=0.02):
    return scale * jax.random.normal(key, shape, jnp.float32)


def init_params(key):
    keys = iter(jax.random.split(key, 64))
    D, L, NH, Dh = TOKEN_EMBED, NUM_LAYERS, NUM_HEADS, HEAD_DIM
    p = {
        "task_language_projection": {"w": _normal(next(keys), (LANG_DIM, D), 0.05),
                                     "b": jnp.zeros((1, D), jnp.float32)},
        "obs_primary_projection": {"w": _normal(next(keys), (OBS_DIM, D), 0.05),
                                   "b": jnp.zeros((1, D), jnp.float32)},
        "obs_wrist_projection": {"w": _normal(next(keys), (OBS_DIM, D), 0.05),
                                 "b": jnp.zeros((1, D), jnp.float32)},
        "task_language_pos_embedding": _normal(next(keys), (NUM_TOKENS["language"], D)),
        "obs_primary_pos_embedding": _normal(
            next(keys), (MAX_HORIZON_DIM, NUM_TOKENS["primary"], D)),
        "obs_wrist_pos_embedding": _normal(
            next(keys), (MAX_HORIZON_DIM, NUM_TOKENS["wrist"], D)),
        "readout_action_pos_embedding": _normal(
            next(keys), (MAX_HORIZON_DIM, NUM_TOKENS["action"], D)),
    }
    p["layers"] = {
        "ln1_g": jnp.ones((L, 1, D), jnp.float32),
        "ln1_b": jnp.zeros((L, 1, D), jnp.float32),
        "wq": _normal(next(keys), (L, NH, D, Dh), 0.05),
        "wk": _normal(next(keys), (L, NH, D, Dh), 0.05),
        "wv": _normal(next(keys), (L, NH, D, Dh), 0.05),
        "bq": jnp.zeros((L, NH, 1, Dh), jnp.float32),
        "bk": jnp.zeros((L, NH, 1, Dh), jnp.float32),
        "bv": jnp.zeros((L, NH, 1, Dh), jnp.float32),
        "wo": _normal(next(keys), (L, NH, Dh, D), 0.05),
        "bo": jnp.zeros((L, 1, D), jnp.float32),
        "ln2_g": jnp.ones((L, 1, D), jnp.float32),
        "ln2_b": jnp.zeros((L, 1, D), jnp.float32),
        "w1": _normal(next(keys), (L, D, MLP_DIM), 0.05),
        "b1": jnp.zeros((L, 1, MLP_DIM), jnp.float32),
        "w2": _normal(next(keys), (L, MLP_DIM, D), 0.05),
        "b2": jnp.zeros((L, 1, D), jnp.float32),
    }
    p["final_ln_g"] = jnp.ones((1, D), jnp.float32)
    p["final_ln_b"] = jnp.zeros((1, D), jnp.float32)
    p["head_action"] = {"w": _normal(next(keys), (D, ACTION_DIM), 0.05),
                        "b": jnp.zeros((1, ACTION_DIM), jnp.float32)}
    return p


# --------------------------- packed weight tables -----------------------------
def _pack_weight_tables(params):
    lp = params["layers"]
    D, L, Dh, NH = TOKEN_EMBED, NUM_LAYERS, HEAD_DIM, NUM_HEADS
    scale = 1.0 / float(Dh) ** 0.5

    def heads_to_cols(w):   # (L, NH, D, Dh) -> (L, D, NH*Dh)
        return jnp.transpose(w, (0, 2, 1, 3)).reshape(L, D, NH * Dh)

    def bias_to_cols(b):    # (L, NH, 1, Dh) -> (L, 1, NH*Dh)
        return jnp.transpose(b, (0, 2, 1, 3)).reshape(L, 1, NH * Dh)

    # fused QKV, 1/sqrt(Dh) preconditioned into the Q columns.
    wqkv = jnp.concatenate([heads_to_cols(lp["wq"]) * scale,
                            heads_to_cols(lp["wk"]),
                            heads_to_cols(lp["wv"])], axis=-1)       # (L, D, 96)
    bqkv = jnp.concatenate([bias_to_cols(lp["bq"]) * scale,
                            bias_to_cols(lp["bk"]),
                            bias_to_cols(lp["bv"])], axis=-1)        # (L, 1, 96)

    head_w_pad = jnp.concatenate(
        [params["head_action"]["w"],
         jnp.zeros((D, D - ACTION_DIM), jnp.float32)], axis=1)       # (D, D)
    # all matrices with 32 output lanes share one flat row table.
    w32 = jnp.concatenate(
        [params["task_language_projection"]["w"],
         params["obs_primary_projection"]["w"],
         params["obs_wrist_projection"]["w"],
         lp["wo"].reshape(L * NH * Dh, D),        # per-layer fused out-proj
         lp["w2"].reshape(L * MLP_DIM, D),
         head_w_pad], axis=0)
    assert w32.shape == (W32_ROWS, D)

    head_b_pad = jnp.concatenate(
        [params["head_action"]["b"],
         jnp.zeros((1, D - ACTION_DIM), jnp.float32)], axis=1)
    per_layer = jnp.stack([lp["ln1_g"][:, 0], lp["ln1_b"][:, 0],
                           lp["ln2_g"][:, 0], lp["ln2_b"][:, 0],
                           lp["bo"][:, 0], lp["b2"][:, 0]], axis=1)  # (L, 6, D)
    vec = jnp.concatenate([per_layer.reshape(L * VROWS_PER_LAYER, D),
                           params["final_ln_g"], params["final_ln_b"],
                           head_b_pad], axis=0)
    assert vec.shape == (NVEC_ROWS, D)

    return {"w32": w32, "wqkv": wqkv, "bqkv": bqkv,
            "w1": lp["w1"], "b1": lp["b1"], "vec": vec}


# ----------------------------- mask construction -----------------------------
def _build_allow_mask(BB, H):
    """Static (BB*S, BB*S) rule mask in grouped+batch-folded token order.

    kinds: 0=task, 1=obs, 2=readout.  Task attends only task; obs attends
    task+obs at <= timestep; readout attends task, obs and its own readout
    group at <= timestep.  Cross-batch attention is masked out (batch folded
    on the sublane axis).
    """
    NL, NP, NW, NA = (NUM_TOKENS["language"], NUM_TOKENS["primary"],
                      NUM_TOKENS["wrist"], NUM_TOKENS["action"])
    kinds, ts, bat = [], [], []
    for b in range(BB):
        kinds += [0] * NL; ts += [-1] * NL; bat += [b] * NL
    for b in range(BB):
        for t in range(H):
            kinds += [1] * NP; ts += [t] * NP; bat += [b] * NP
    for b in range(BB):
        for t in range(H):
            kinds += [1] * NW; ts += [t] * NW; bat += [b] * NW
    for b in range(BB):
        for t in range(H):
            kinds += [2] * NA; ts += [t] * NA; bat += [b] * NA
    kinds, ts, bat = np.array(kinds), np.array(ts), np.array(bat)
    allowed = np.array([[1, 0, 0],
                        [1, 1, 0],
                        [1, 1, 1]], dtype=bool)
    ok = ((bat[:, None] == bat[None, :])
          & (ts[None, :] <= ts[:, None])
          & allowed[kinds[:, None], kinds[None, :]])
    return jnp.asarray(ok.astype(np.float32))


def _build_pos_table(params, BB, H):
    """(BB*S, D) additive table: pos embeddings + projection biases, grouped order."""
    NL, NP, NW, NA = (NUM_TOKENS["language"], NUM_TOKENS["primary"],
                      NUM_TOKENS["wrist"], NUM_TOKENS["action"])
    D = TOKEN_EMBED
    pos_lang = (params["task_language_pos_embedding"]
                + params["task_language_projection"]["b"])                    # (NL, D)
    pos_prim = (params["obs_primary_pos_embedding"][:H]
                + params["obs_primary_projection"]["b"]).reshape(H * NP, D)
    pos_wrist = (params["obs_wrist_pos_embedding"][:H]
                 + params["obs_wrist_projection"]["b"]).reshape(H * NW, D)
    pos_ro = params["readout_action_pos_embedding"][:H].reshape(H * NA, D)
    return jnp.concatenate([jnp.tile(pos_lang, (BB, 1)),
                            jnp.tile(pos_prim, (BB, 1)),
                            jnp.tile(pos_wrist, (BB, 1)),
                            jnp.tile(pos_ro, (BB, 1))], axis=0)


def _num_grid_blocks(batch):
    """Grid blocks = #TensorCores per device that evenly divide the batch.

    1 on single-TC chips (v5e/v6e) -> a single pipeline step; 2 on v7x
    megacore so each core takes half the folded batch.
    """
    try:
        n = int(getattr(jax.devices()[0], "num_cores", 1) or 1)
    except Exception:
        n = 1
    n = max(1, min(n, batch))
    while batch % n != 0:
        n -= 1
    return n


# ----------------------------- model forward ---------------------------------
def octo_transformer_forward(params, observations, tasks, timestep_pad_mask):
    B, H = timestep_pad_mask.shape
    D = TOKEN_EMBED
    NL, NP, NW, NA = (NUM_TOKENS["language"], NUM_TOKENS["primary"],
                      NUM_TOKENS["wrist"], NUM_TOKENS["action"])
    assert NA == 1  # linear head reads the single readout token per timestep

    G = _num_grid_blocks(B)
    BB = B // G
    n_lang, n_prim = BB * NL, BB * H * NP
    n_wrist, n_ro = BB * H * NW, BB * H * NA
    BS = n_lang + n_prim + n_wrist + n_ro          # == BB * S

    # ---- runtime inputs: contiguous reshapes only (no zero-padded seq) -------
    lang_in = tasks["language"].astype(jnp.float32).reshape(G, n_lang, LANG_DIM)
    prim_in = observations["image_primary"].astype(jnp.float32).reshape(G, n_prim, OBS_DIM)
    wrist_in = observations["image_wrist"].astype(jnp.float32).reshape(G, n_wrist, OBS_DIM)

    # key-side padding: obs tokens masked at padded timesteps (task/readout kept)
    tp = timestep_pad_mask.astype(jnp.float32)                      # (B, H)
    prim_pad = jnp.repeat(tp[:, :, None], NP, axis=2).reshape(B, H * NP)
    wrist_pad = jnp.repeat(tp[:, :, None], NW, axis=2).reshape(B, H * NW)
    pad_f = jnp.concatenate(
        [jnp.ones((B, NL), jnp.float32).reshape(G, n_lang),
         prim_pad.reshape(G, n_prim),
         wrist_pad.reshape(G, n_wrist),
         jnp.ones((B, H * NA), jnp.float32).reshape(G, n_ro)],
        axis=1).reshape(G, 1, BS)

    allow = _build_allow_mask(BB, H)                                # (BS, BS) const
    pos_add = _build_pos_table(params, BB, H)                       # (BS, D)
    packed = _pack_weight_tables(params)

    kernel = _make_kernel(BB, H)

    per_block = [lang_in, prim_in, wrist_in, pad_f]
    const = [allow, pos_add, packed["w32"], packed["wqkv"], packed["bqkv"],
             packed["w1"], packed["b1"], packed["vec"]]

    def bspec(a):                       # per-block data, leading block dim squeezed
        n = a.ndim - 1
        return pl.BlockSpec((None,) + tuple(int(d) for d in a.shape[1:]),
                            lambda g, _n=n: (g,) + (0,) * _n)

    def cspec(a):                       # full-array, grid-invariant weights
        n = a.ndim
        return pl.BlockSpec(tuple(int(d) for d in a.shape),
                            lambda g, _n=n: (0,) * _n)

    seq, act = pl.pallas_call(
        kernel,
        grid=(G,),
        out_shape=(jax.ShapeDtypeStruct((G, BS, D), jnp.float32),
                   jax.ShapeDtypeStruct((G, BB * H, ACTION_DIM), jnp.float32)),
        in_specs=[bspec(a) for a in per_block] + [cspec(a) for a in const],
        out_specs=(pl.BlockSpec((None, BS, D), lambda g: (g, 0, 0)),
                   pl.BlockSpec((None, BB * H, ACTION_DIM), lambda g: (g, 0, 0))),
        compiler_params=pltpu.CompilerParams(
            dimension_semantics=("parallel",)),
    )(*(per_block + const))

    # ---- split grouped outputs back per token group (pure reshapes) ---------
    task_out = seq[:, :n_lang].reshape(B, NL, D)
    prim_out = seq[:, n_lang:n_lang + n_prim].reshape(B, H, NP, D)
    wrist_out = seq[:, n_lang + n_prim:n_lang + n_prim + n_wrist].reshape(B, H, NW, D)
    readout_out = seq[:, n_lang + n_prim + n_wrist:].reshape(B, H, NA, D)
    action = act.reshape(B, H, ACTION_DIM)

    task_mask = jnp.ones((B, NL), bool)
    obs_p_mask = timestep_pad_mask[:, :, None] & jnp.ones((B, H, NP), bool)
    obs_w_mask = timestep_pad_mask[:, :, None] & jnp.ones((B, H, NW), bool)
    ro_mask = jnp.ones((B, H, NA), bool)

    # Note: padded-timestep query rows still produce finite (meaningless)
    # outputs, matching the PT module; downstream consumers re-apply the mask.
    outputs = {
        "task_language": {"tokens": task_out, "mask": task_mask},
        "obs_primary": {"tokens": prim_out, "mask": obs_p_mask},
        "obs_wrist": {"tokens": wrist_out, "mask": obs_w_mask},
        "readout_action": {"tokens": readout_out, "mask": ro_mask},
        "task": {"tokens": task_out, "mask": task_mask},
        "obs": {"tokens": jnp.concatenate([prim_out, wrist_out], axis=-2),
                "mask": jnp.concatenate([obs_p_mask, obs_w_mask], axis=-1)},
    }
    return outputs, action


def octo_module_forward(params, observations, tasks, timestep_pad_mask,
                        train=False, transformer_only=False):
    transformer_outputs, action = octo_transformer_forward(
        params, observations, tasks, timestep_pad_mask)
    head_outputs = {}
    if not transformer_only:
        # linear action head fused into the same kernel (readout token per
        # timestep -> Linear(D -> ACTION_DIM)).
        head_outputs["action"] = action
    return transformer_outputs, head_outputs


# --------------------------------- main ---------------------------------------
if __name__ == "__main__":
    key = jax.random.PRNGKey(0)
    k_param, k_lang, k_prim, k_wrist = jax.random.split(key, 4)
    params = init_params(k_param)

    B, H = 2, 2
    observations = {
        "image_primary": jax.random.normal(
            k_prim, (B, H, NUM_TOKENS["primary"], OBS_DIM), jnp.float32),
        "image_wrist": jax.random.normal(
            k_wrist, (B, H, NUM_TOKENS["wrist"], OBS_DIM), jnp.float32),
    }
    tasks = {"language": jax.random.normal(
        k_lang, (B, NUM_TOKENS["language"], LANG_DIM), jnp.float32)}
    timestep_pad_mask = jnp.array([[True, True], [True, False]])

    fwd = jax.jit(lambda p, o, t, m: octo_module_forward(p, o, t, m, train=False))
    transformer_outputs, head_outputs = fwd(
        params, observations, tasks, timestep_pad_mask)
    jax.block_until_ready((transformer_outputs, head_outputs))

    assert transformer_outputs["readout_action"]["tokens"].shape == (B, H, 1, TOKEN_EMBED)
    assert transformer_outputs["obs"]["tokens"].shape == (B, H, 10, TOKEN_EMBED)
    assert head_outputs["action"].shape == (B, H, ACTION_DIM)
    assert not bool(jnp.isnan(head_outputs["action"]).any())
    assert not bool(jnp.isnan(transformer_outputs["obs"]["tokens"]).any())
    print("KERNEL_OK")
</pallas_src>

<mosaic_0001>
module attributes {stable_mosaic.version = 11 : i64} {
  func.func @kernel(%arg0: i32, %arg1: memref<1x8x16xf32, #tpu.memory_space<vmem>>, %arg2: memref<1x24x24xf32, #tpu.memory_space<vmem>>, %arg3: memref<1x16x24xf32, #tpu.memory_space<vmem>>, %arg4: memref<1x1x52xf32, #tpu.memory_space<vmem>>, %arg5: memref<52x52xf32, #tpu.memory_space<vmem>>, %arg6: memref<52x32xf32, #tpu.memory_space<vmem>>, %arg7: memref<288x32xf32, #tpu.memory_space<vmem>>, %arg8: memref<2x32x96xf32, #tpu.memory_space<vmem>>, %arg9: memref<2x1x96xf32, #tpu.memory_space<vmem>>, %arg10: memref<2x32x64xf32, #tpu.memory_space<vmem>>, %arg11: memref<2x1x64xf32, #tpu.memory_space<vmem>>, %arg12: memref<15x32xf32, #tpu.memory_space<vmem>>, %arg13: memref<1x52x32xf32, #tpu.memory_space<vmem>>, %arg14: memref<1x4x7xf32, #tpu.memory_space<vmem>>) attributes {dimension_semantics = [#tpu.dimension_semantics<parallel>], iteration_bounds = array<i64: 1>, scalar_prefetch = 0 : i64, scratch_operands = 0 : i64, tpu.core_type = #tpu.core_type<tc>, window_params = [{transform_indices = @transform_0, window_bounds = array<i64: 1, 8, 16>}, {transform_indices = @transform_1, window_bounds = array<i64: 1, 24, 24>}, {transform_indices = @transform_2, window_bounds = array<i64: 1, 16, 24>}, {transform_indices = @transform_3, window_bounds = array<i64: 1, 1, 52>}, {pipeline_mode = #tpu.pipeline_mode<synchronous>, transform_indices = @transform_4, window_bounds = array<i64: 52, 52>}, {pipeline_mode = #tpu.pipeline_mode<synchronous>, transform_indices = @transform_5, window_bounds = array<i64: 52, 32>}, {pipeline_mode = #tpu.pipeline_mode<synchronous>, transform_indices = @transform_6, window_bounds = array<i64: 288, 32>}, {pipeline_mode = #tpu.pipeline_mode<synchronous>, transform_indices = @transform_7, window_bounds = array<i64: 2, 32, 96>}, {pipeline_mode = #tpu.pipeline_mode<synchronous>, transform_indices = @transform_8, window_bounds = array<i64: 2, 1, 96>}, {pipeline_mode = #tpu.pipeline_mode<synchronous>, transform_indices = @transform_9, window_bounds = array<i64: 2, 32, 64>}, {pipeline_mode = #tpu.pipeline_mode<synchronous>, transform_indices = @transform_10, window_bounds = array<i64: 2, 1, 64>}, {pipeline_mode = #tpu.pipeline_mode<synchronous>, transform_indices = @transform_11, window_bounds = array<i64: 15, 32>}, {transform_indices = @transform_12, window_bounds = array<i64: 1, 52, 32>}, {transform_indices = @transform_13, window_bounds = array<i64: 1, 4, 7>}]} {
    %c0 = arith.constant 0 : index
    %c0_0 = arith.constant 0 : index
    %0 = vector.load %arg7[%c0, %c0_0] : memref<288x32xf32, #tpu.memory_space<vmem>>, vector<288x32xf32>
    %c0_1 = arith.constant 0 : index
    %c0_2 = arith.constant 0 : index
    %1 = vector.load %arg12[%c0_1, %c0_2] : memref<15x32xf32, #tpu.memory_space<vmem>>, vector<15x32xf32>
    %c0_3 = arith.constant 0 : index
    %c0_4 = arith.constant 0 : index
    %c0_5 = arith.constant 0 : index
    %2 = vector.load %arg1[%c0_3, %c0_4, %c0_5] : memref<1x8x16xf32, #tpu.memory_space<vmem>>, vector<1x8x16xf32>
    %3 = vector.shape_cast %2 : vector<1x8x16xf32> to vector<8x16xf32>
    %4 = vector.extract_strided_slice %0 {offsets = [0, 0], sizes = [16, 32], strides = [1, 1]} : vector<288x32xf32> to vector<16x32xf32>
    %cst = arith.constant dense<0.000000e+00> : vector<8x32xf32>
    %5 = tpu.matmul %3, %4, %cst {dimension_numbers = #tpu.dot_dimension_numbers<[1], [0], [0], [1], [0, 0, 1, 1], [], []>} : vector<8x16xf32>, vector<16x32xf32>, vector<8x32xf32> -> vector<8x32xf32>
    %c0_6 = arith.constant 0 : index
    %c0_7 = arith.constant 0 : index
    %c0_8 = arith.constant 0 : index
    %6 = vector.load %arg2[%c0_6, %c0_7, %c0_8] : memref<1x24x24xf32, #tpu.memory_space<vmem>>, vector<1x24x24xf32>
    %7 = vector.shape_cast %6 : vector<1x24x24xf32> to vector<24x24xf32>
    %8 = vector.extract_strided_slice %0 {offsets = [16, 0], sizes = [24, 32], strides = [1, 1]} : vector<288x32xf32> to vector<24x32xf32>
    %cst_9 = arith.constant dense<0.000000e+00> : vector<24x32xf32>
    %9 = tpu.matmul %7, %8, %cst_9 {dimension_numbers = #tpu.dot_dimension_numbers<[1], [0], [0], [1], [0, 0, 1, 1], [], []>} : vector<24x24xf32>, vector<24x32xf32>, vector<24x32xf32> -> vector<24x32xf32>
    %c0_10 = arith.constant 0 : index
    %c0_11 = arith.constant 0 : index
    %c0_12 = arith.constant 0 : index
    %10 = vector.load %arg3[%c0_10, %c0_11, %c0_12] : memref<1x16x24xf32, #tpu.memory_space<vmem>>, vector<1x16x24xf32>
    %11 = vector.shape_cast %10 : vector<1x16x24xf32> to vector<16x24xf32>
    %12 = vector.extract_strided_slice %0 {offsets = [40, 0], sizes = [24, 32], strides = [1, 1]} : vector<288x32xf32> to vector<24x32xf32>
    %cst_13 = arith.constant dense<0.000000e+00> : vector<16x32xf32>
    %13 = tpu.matmul %11, %12, %cst_13 {dimension_numbers = #tpu.dot_dimension_numbers<[1], [0], [0], [1], [0, 0, 1, 1], [], []>} : vector<16x24xf32>, vector<24x32xf32>, vector<16x32xf32> -> vector<16x32xf32>
    %cst_14 = arith.constant 0.000000e+00 : f32
    %14 = vector.broadcast %cst_14 : f32 to vector<4x32xf32>
    %15 = tpu.concatenate %5, %9, %13, %14 in 0 : vector<8x32xf32>, vector<24x32xf32>, vector<16x32xf32>, vector<4x32xf32> -> vector<52x32xf32>
    %c0_15 = arith.constant 0 : index
    %c0_16 = arith.constant 0 : index
    %16 = vector.load %arg6[%c0_15, %c0_16] : memref<52x32xf32, #tpu.memory_space<vmem>>, vector<52x32xf32>
    %17 = arith.addf %15, %16 : vector<52x32xf32>
    %c0_17 = arith.constant 0 : index
    %c0_18 = arith.constant 0 : index
    %18 = vector.load %arg5[%c0_17, %c0_18] : memref<52x52xf32, #tpu.memory_space<vmem>>, vector<52x52xf32>
    %cst_19 = arith.constant 5.000000e-01 : f32
    %19 = vector.broadcast %cst_19 : f32 to vector<52x52xf32>
    %20 = arith.cmpf ogt, %18, %19 : vector<52x52xf32>
    %c0_20 = arith.constant 0 : index
    %c0_21 = arith.constant 0 : index
    %c0_22 = arith.constant 0 : index
    %21 = vector.load %arg4[%c0_20, %c0_21, %c0_22] : memref<1x1x52xf32, #tpu.memory_space<vmem>>, vector<1x1x52xf32>
    %22 = vector.shape_cast %21 : vector<1x1x52xf32> to vector<1x52xf32>
    %cst_23 = arith.constant 5.000000e-01 : f32
    %23 = vector.broadcast %cst_23 : f32 to vector<1x52xf32>
    %24 = arith.cmpf ogt, %22, %23 : vector<1x52xf32>
    %25 = vector.broadcast %24 : vector<1x52xi1> to vector<52x52xi1>
    %26 = arith.andi %20, %25 : vector<52x52xi1>
    %cst_24 = arith.constant 0.000000e+00 : f32
    %cst_25 = arith.constant -1.000000e+30 : f32
    %27 = vector.broadcast %cst_24 : f32 to vector<52x52xf32>
    %28 = vector.broadcast %cst_25 : f32 to vector<52x52xf32>
    %29 = arith.select %26, %27, %28 : vector<52x52xi1>, vector<52x52xf32>
    %30 = vector.extract_strided_slice %1 {offsets = [0, 0], sizes = [1, 32], strides = [1, 1]} : vector<15x32xf32> to vector<1x32xf32>
    %31 = vector.extract_strided_slice %1 {offsets = [1, 0], sizes = [1, 32], strides = [1, 1]} : vector<15x32xf32> to vector<1x32xf32>
    %cst_26 = arith.constant dense<0.000000e+00> : vector<52xf32>
    %32 = vector.multi_reduction <add>, %17, %cst_26 [1] : vector<52x32xf32> to vector<52xf32>
    %33 = vector.shape_cast %32 : vector<52xf32> to vector<52x1xf32>
    %cst_27 = arith.constant 3.200000e+01 : f32
    %34 = vector.broadcast %cst_27 : f32 to vector<52x1xf32>
    %35 = arith.divf %33, %34 : vector<52x1xf32>
    %36 = vector.broadcast %35 : vector<52x1xf32> to vector<52x32xf32>
    %37 = arith.subf %17, %36 : vector<52x32xf32>
    %38 = arith.mulf %37, %37 : vector<52x32xf32>
    %cst_28 = arith.constant dense<0.000000e+00> : vector<52xf32>
    %39 = vector.multi_reduction <add>, %38, %cst_28 [1] : vector<52x32xf32> to vector<52xf32>
    %40 = vector.shape_cast %39 : vector<52xf32> to vector<52x1xf32>
    %cst_29 = arith.constant 3.200000e+01 : f32
    %41 = vector.broadcast %cst_29 : f32 to vector<52x1xf32>
    %42 = arith.divf %40, %41 : vector<52x1xf32>
    %cst_30 = arith.constant 9.99999974E-6 : f32
    %43 = vector.broadcast %cst_30 : f32 to vector<52x1xf32>
    %44 = arith.addf %42, %43 : vector<52x1xf32>
    %45 = math.rsqrt %44 : vector<52x1xf32>
    %46 = vector.broadcast %45 : vector<52x1xf32> to vector<52x32xf32>
    %47 = arith.mulf %37, %46 : vector<52x32xf32>
    %48 = vector.broadcast %30 : vector<1x32xf32> to vector<52x32xf32>
    %49 = arith.mulf %47, %48 : vector<52x32xf32>
    %50 = vector.broadcast %31 : vector<1x32xf32> to vector<52x32xf32>
    %51 = arith.addf %49, %50 : vector<52x32xf32>
    %c0_31 = arith.constant 0 : index
    %c0_32 = arith.constant 0 : index
    %c0_33 = arith.constant 0 : index
    %52 = vector.load %arg8[%c0_31, %c0_32, %c0_33] : memref<2x32x96xf32, #tpu.memory_space<vmem>>, vector<1x32x96xf32>
    %53 = vector.shape_cast %52 : vector<1x32x96xf32> to vector<32x96xf32>
    %cst_34 = arith.constant dense<0.000000e+00> : vector<52x96xf32>
    %54 = tpu.matmul %51, %53, %cst_34 {dimension_numbers = #tpu.dot_dimension_numbers<[1], [0], [0], [1], [0, 0, 1, 1], [], []>} : vector<52x32xf32>, vector<32x96xf32>, vector<52x96xf32> -> vector<52x96xf32>
    %c0_35 = arith.constant 0 : index
    %c0_36 = arith.constant 0 : index
    %c0_37 = arith.constant 0 : index
    %55 = vector.load %arg9[%c0_35, %c0_36, %c0_37] : memref<2x1x96xf32, #tpu.memory_space<vmem>>, vector<1x1x96xf32>
    %56 = vector.shape_cast %55 : vector<1x1x96xf32> to vector<1x96xf32>
    %57 = vector.broadcast %56 : vector<1x96xf32> to vector<52x96xf32>
    %58 = arith.addf %54, %57 : vector<52x96xf32>
    %59 = vector.extract_strided_slice %58 {offsets = [0, 0], sizes = [52, 16], strides = [1, 1]} : vector<52x96xf32> to vector<52x16xf32>
    %60 = vector.extract_strided_slice %58 {offsets = [0, 32], sizes = [52, 16], strides = [1, 1]} : vector<52x96xf32> to vector<52x16xf32>
    %61 = vector.extract_strided_slice %58 {offsets = [0, 64], sizes = [52, 16], strides = [1, 1]} : vector<52x96xf32> to vector<52x16xf32>
    %cst_38 = arith.constant dense<0.000000e+00> : vector<52x52xf32>
    %62 = tpu.matmul %59, %60, %cst_38 {dimension_numbers = #tpu.dot_dimension_numbers<[1], [1], [0], [0], [0, 0, 1, 0], [], []>} : vector<52x16xf32>, vector<52x16xf32>, vector<52x52xf32> -> vector<52x52xf32>
    %63 = arith.addf %62, %29 : vector<52x52xf32>
    %cst_39 = arith.constant dense<0xFF800000> : vector<52xf32>
    %64 = vector.multi_reduction <maximumf>, %63, %cst_39 [1] : vector<52x52xf32> to vector<52xf32>
    %65 = vector.shape_cast %64 : vector<52xf32> to vector<52x1xf32>
    %66 = vector.broadcast %65 : vector<52x1xf32> to vector<52x52xf32>
    %67 = arith.subf %63, %66 : vector<52x52xf32>
    %68 = math.exp %67 : vector<52x52xf32>
    %cst_40 = arith.constant dense<0.000000e+00> : vector<52xf32>
    %69 = vector.multi_reduction <add>, %68, %cst_40 [1] : vector<52x52xf32> to vector<52xf32>
    %70 = vector.shape_cast %69 : vector<52xf32> to vector<52x1xf32>
    %cst_41 = arith.constant dense<0.000000e+00> : vector<52x16xf32>
    %71 = tpu.matmul %68, %61, %cst_41 {dimension_numbers = #tpu.dot_dimension_numbers<[1], [0], [0], [1], [0, 0, 1, 1], [], []>} : vector<52x52xf32>, vector<52x16xf32>, vector<52x16xf32> -> vector<52x16xf32>
    %72 = tpu.reciprocal %70 {approx = true} : vector<52x1xf32> -> vector<52x1xf32>
    %73 = vector.broadcast %72 : vector<52x1xf32> to vector<52x16xf32>
    %74 = arith.mulf %71, %73 : vector<52x16xf32>
    %75 = vector.extract_strided_slice %58 {offsets = [0, 16], sizes = [52, 16], strides = [1, 1]} : vector<52x96xf32> to vector<52x16xf32>
    %76 = vector.extract_strided_slice %58 {offsets = [0, 48], sizes = [52, 16], strides = [1, 1]} : vector<52x96xf32> to vector<52x16xf32>
    %77 = vector.extract_strided_slice %58 {offsets = [0, 80], sizes = [52, 16], strides = [1, 1]} : vector<52x96xf32> to vector<52x16xf32>
    %cst_42 = arith.constant dense<0.000000e+00> : vector<52x52xf32>
    %78 = tpu.matmul %75, %76, %cst_42 {dimension_numbers = #tpu.dot_dimension_numbers<[1], [1], [0], [0], [0, 0, 1, 0], [], []>} : vector<52x16xf32>, vector<52x16xf32>, vector<52x52xf32> -> vector<52x52xf32>
    %79 = arith.addf %78, %29 : vector<52x52xf32>
    %cst_43 = arith.constant dense<0xFF800000> : vector<52xf32>
    %80 = vector.multi_reduction <maximumf>, %79, %cst_43 [1] : vector<52x52xf32> to vector<52xf32>
    %81 = vector.shape_cast %80 : vector<52xf32> to vector<52x1xf32>
    %82 = vector.broadcast %81 : vector<52x1xf32> to vector<52x52xf32>
    %83 = arith.subf %79, %82 : vector<52x52xf32>
    %84 = math.exp %83 : vector<52x52xf32>
    %cst_44 = arith.constant dense<0.000000e+00> : vector<52xf32>
    %85 = vector.multi_reduction <add>, %84, %cst_44 [1] : vector<52x52xf32> to vector<52xf32>
    %86 = vector.shape_cast %85 : vector<52xf32> to vector<52x1xf32>
    %cst_45 = arith.constant dense<0.000000e+00> : vector<52x16xf32>
    %87 = tpu.matmul %84, %77, %cst_45 {dimension_numbers = #tpu.dot_dimension_numbers<[1], [0], [0], [1], [0, 0, 1, 1], [], []>} : vector<52x52xf32>, vector<52x16xf32>, vector<52x16xf32> -> vector<52x16xf32>
    %88 = tpu.reciprocal %86 {approx = true} : vector<52x1xf32> -> vector<52x1xf32>
    %89 = vector.broadcast %88 : vector<52x1xf32> to vector<52x16xf32>
    %90 = arith.mulf %87, %89 : vector<52x16xf32>
    %91 = tpu.concatenate %74, %90 in 1 : vector<52x16xf32>, vector<52x16xf32> -> vector<52x32xf32>
    %92 = vector.extract_strided_slice %0 {offsets = [64, 0], sizes = [32, 32], strides = [1, 1]} : vector<288x32xf32> to vector<32x32xf32>
    %cst_46 = arith.constant dense<0.000000e+00> : vector<52x32xf32>
    %93 = tpu.matmul %91, %92, %cst_46 {dimension_numbers = #tpu.dot_dimension_numbers<[1], [0], [0], [1], [0, 0, 1, 1], [], []>} : vector<52x32xf32>, vector<32x32xf32>, vector<52x32xf32> -> vector<52x32xf32>
    %94 = arith.addf %17, %93 : vector<52x32xf32>
    %95 = vector.extract_strided_slice %1 {offsets = [4, 0], sizes = [1, 32], strides = [1, 1]} : vector<15x32xf32> to vector<1x32xf32>
    %96 = vector.broadcast %95 : vector<1x32xf32> to vector<52x32xf32>
    %97 = arith.addf %94, %96 : vector<52x32xf32>
    %98 = vector.extract_strided_slice %1 {offsets = [2, 0], sizes = [1, 32], strides = [1, 1]} : vector<15x32xf32> to vector<1x32xf32>
    %99 = vector.extract_strided_slice %1 {offsets = [3, 0], sizes = [1, 32], strides = [1, 1]} : vector<15x32xf32> to vector<1x32xf32>
    %cst_47 = arith.constant dense<0.000000e+00> : vector<52xf32>
    %100 = vector.multi_reduction <add>, %97, %cst_47 [1] : vector<52x32xf32> to vector<52xf32>
    %101 = vector.shape_cast %100 : vector<52xf32> to vector<52x1xf32>
    %cst_48 = arith.constant 3.200000e+01 : f32
    %102 = vector.broadcast %cst_48 : f32 to vector<52x1xf32>
    %103 = arith.divf %101, %102 : vector<52x1xf32>
    %104 = vector.broadcast %103 : vector<52x1xf32> to vector<52x32xf32>
    %105 = arith.subf %97, %104 : vector<52x32xf32>
    %106 = arith.mulf %105, %105 : vector<52x32xf32>
    %cst_49 = arith.constant dense<0.000000e+00> : vector<52xf32>
    %107 = vector.multi_reduction <add>, %106, %cst_49 [1] : vector<52x32xf32> to vector<52xf32>
    %108 = vector.shape_cast %107 : vector<52xf32> to vector<52x1xf32>
    %cst_50 = arith.constant 3.200000e+01 : f32
    %109 = vector.broadcast %cst_50 : f32 to vector<52x1xf32>
    %110 = arith.divf %108, %109 : vector<52x1xf32>
    %cst_51 = arith.constant 9.99999974E-6 : f32
    %111 = vector.broadcast %cst_51 : f32 to vector<52x1xf32>
    %112 = arith.addf %110, %111 : vector<52x1xf32>
    %113 = math.rsqrt %112 : vector<52x1xf32>
    %114 = vector.broadcast %113 : vector<52x1xf32> to vector<52x32xf32>
    %115 = arith.mulf %105, %114 : vector<52x32xf32>
    %116 = vector.broadcast %98 : vector<1x32xf32> to vector<52x32xf32>
    %117 = arith.mulf %115, %116 : vector<52x32xf32>
    %118 = vector.broadcast %99 : vector<1x32xf32> to vector<52x32xf32>
    %119 = arith.addf %117, %118 : vector<52x32xf32>
    %c0_52 = arith.constant 0 : index
    %c0_53 = arith.constant 0 : index
    %c0_54 = arith.constant 0 : index
    %120 = vector.load %arg10[%c0_52, %c0_53, %c0_54] : memref<2x32x64xf32, #tpu.memory_space<vmem>>, vector<1x32x64xf32>
    %121 = vector.shape_cast %120 : vector<1x32x64xf32> to vector<32x64xf32>
    %cst_55 = arith.constant dense<0.000000e+00> : vector<52x64xf32>
    %122 = tpu.matmul %119, %121, %cst_55 {dimension_numbers = #tpu.dot_dimension_numbers<[1], [0], [0], [1], [0, 0, 1, 1], [], []>} : vector<52x32xf32>, vector<32x64xf32>, vector<52x64xf32> -> vector<52x64xf32>
    %c0_56 = arith.constant 0 : index
    %c0_57 = arith.constant 0 : index
    %c0_58 = arith.constant 0 : index
    %123 = vector.load %arg11[%c0_56, %c0_57, %c0_58] : memref<2x1x64xf32, #tpu.memory_space<vmem>>, vector<1x1x64xf32>
    %124 = vector.shape_cast %123 : vector<1x1x64xf32> to vector<1x64xf32>
    %125 = vector.broadcast %124 : vector<1x64xf32> to vector<52x64xf32>
    %126 = arith.addf %122, %125 : vector<52x64xf32>
    %127 = arith.mulf %126, %126 : vector<52x64xf32>
    %128 = arith.mulf %126, %127 : vector<52x64xf32>
    %cst_59 = arith.constant 4.471500e-02 : f32
    %129 = vector.broadcast %cst_59 : f32 to vector<52x64xf32>
    %130 = arith.mulf %129, %128 : vector<52x64xf32>
    %131 = arith.addf %126, %130 : vector<52x64xf32>
    %cst_60 = arith.constant 0.797884583 : f32
    %132 = vector.broadcast %cst_60 : f32 to vector<52x64xf32>
    %133 = arith.mulf %132, %131 : vector<52x64xf32>
    %134 = math.tanh %133 : vector<52x64xf32>
    %cst_61 = arith.constant 1.000000e+00 : f32
    %135 = vector.broadcast %cst_61 : f32 to vector<52x64xf32>
    %136 = arith.addf %135, %134 : vector<52x64xf32>
    %cst_62 = arith.constant 5.000000e-01 : f32
    %137 = vector.broadcast %cst_62 : f32 to vector<52x64xf32>
    %138 = arith.mulf %137, %136 : vector<52x64xf32>
    %139 = arith.mulf %126, %138 : vector<52x64xf32>
    %140 = vector.extract_strided_slice %0 {offsets = [128, 0], sizes = [64, 32], strides = [1, 1]} : vector<288x32xf32> to vector<64x32xf32>
    %cst_63 = arith.constant dense<0.000000e+00> : vector<52x32xf32>
    %141 = tpu.matmul %139, %140, %cst_63 {dimension_numbers = #tpu.dot_dimension_numbers<[1], [0], [0], [1], [0, 0, 1, 1], [], []>} : vector<52x64xf32>, vector<64x32xf32>, vector<52x32xf32> -> vector<52x32xf32>
    %142 = arith.addf %97, %141 : vector<52x32xf32>
    %143 = vector.extract_strided_slice %1 {offsets = [5, 0], sizes = [1, 32], strides = [1, 1]} : vector<15x32xf32> to vector<1x32xf32>
    %144 = vector.broadcast %143 : vector<1x32xf32> to vector<52x32xf32>
    %145 = arith.addf %142, %144 : vector<52x32xf32>
    %146 = vector.extract_strided_slice %1 {offsets = [6, 0], sizes = [1, 32], strides = [1, 1]} : vector<15x32xf32> to vector<1x32xf32>
    %147 = vector.extract_strided_slice %1 {offsets = [7, 0], sizes = [1, 32], strides = [1, 1]} : vector<15x32xf32> to vector<1x32xf32>
    %cst_64 = arith.constant dense<0.000000e+00> : vector<52xf32>
    %148 = vector.multi_reduction <add>, %145, %cst_64 [1] : vector<52x32xf32> to vector<52xf32>
    %149 = vector.shape_cast %148 : vector<52xf32> to vector<52x1xf32>
    %cst_65 = arith.constant 3.200000e+01 : f32
    %150 = vector.broadcast %cst_65 : f32 to vector<52x1xf32>
    %151 = arith.divf %149, %150 : vector<52x1xf32>
    %152 = vector.broadcast %151 : vector<52x1xf32> to vector<52x32xf32>
    %153 = arith.subf %145, %152 : vector<52x32xf32>
    %154 = arith.mulf %153, %153 : vector<52x32xf32>
    %cst_66 = arith.constant dense<0.000000e+00> : vector<52xf32>
    %155 = vector.multi_reduction <add>, %154, %cst_66 [1] : vector<52x32xf32> to vector<52xf32>
    %156 = vector.shape_cast %155 : vector<52xf32> to vector<52x1xf32>
    %cst_67 = arith.constant 3.200000e+01 : f32
    %157 = vector.broadcast %cst_67 : f32 to vector<52x1xf32>
    %158 = arith.divf %156, %157 : vector<52x1xf32>
    %cst_68 = arith.constant 9.99999974E-6 : f32
    %159 = vector.broadcast %cst_68 : f32 to vector<52x1xf32>
    %160 = arith.addf %158, %159 : vector<52x1xf32>
    %161 = math.rsqrt %160 : vector<52x1xf32>
    %162 = vector.broadcast %161 : vector<52x1xf32> to vector<52x32xf32>
    %163 = arith.mulf %153, %162 : vector<52x32xf32>
    %164 = vector.broadcast %146 : vector<1x32xf32> to vector<52x32xf32>
    %165 = arith.mulf %163, %164 : vector<52x32xf32>
    %166 = vector.broadcast %147 : vector<1x32xf32> to vector<52x32xf32>
    %167 = arith.addf %165, %166 : vector<52x32xf32>
    %c1 = arith.constant 1 : index
    %c0_69 = arith.constant 0 : index
    %c0_70 = arith.constant 0 : index
    %168 = vector.load %arg8[%c1, %c0_69, %c0_70] : memref<2x32x96xf32, #tpu.memory_space<vmem>>, vector<1x32x96xf32>
    %169 = vector.shape_cast %168 : vector<1x32x96xf32> to vector<32x96xf32>
    %cst_71 = arith.constant dense<0.000000e+00> : vector<52x96xf32>
    %170 = tpu.matmul %167, %169, %cst_71 {dimension_numbers = #tpu.dot_dimension_numbers<[1], [0], [0], [1], [0, 0, 1, 1], [], []>} : vector<52x32xf32>, vector<32x96xf32>, vector<52x96xf32> -> vector<52x96xf32>
    %c1_72 = arith.constant 1 : index
    %c0_73 = arith.constant 0 : index
    %c0_74 = arith.constant 0 : index
    %171 = vector.load %arg9[%c1_72, %c0_73, %c0_74] : memref<2x1x96xf32, #tpu.memory_space<vmem>>, vector<1x1x96xf32>
    %172 = vector.shape_cast %171 : vector<1x1x96xf32> to vector<1x96xf32>
    %173 = vector.broadcast %172 : vector<1x96xf32> to vector<52x96xf32>
    %174 = arith.addf %170, %173 : vector<52x96xf32>
    %175 = vector.extract_strided_slice %174 {offsets = [0, 0], sizes = [52, 16], strides = [1, 1]} : vector<52x96xf32> to vector<52x16xf32>
    %176 = vector.extract_strided_slice %174 {offsets = [0, 32], sizes = [52, 16], strides = [1, 1]} : vector<52x96xf32> to vector<52x16xf32>
    %177 = vector.extract_strided_slice %174 {offsets = [0, 64], sizes = [52, 16], strides = [1, 1]} : vector<52x96xf32> to vector<52x16xf32>
    %cst_75 = arith.constant dense<0.000000e+00> : vector<52x52xf32>
    %178 = tpu.matmul %175, %176, %cst_75 {dimension_numbers = #tpu.dot_dimension_numbers<[1], [1], [0], [0], [0, 0, 1, 0], [], []>} : vector<52x16xf32>, vector<52x16xf32>, vector<52x52xf32> -> vector<52x52xf32>
    %179 = arith.addf %178, %29 : vector<52x52xf32>
    %cst_76 = arith.constant dense<0xFF800000> : vector<52xf32>
    %180 = vector.multi_reduction <maximumf>, %179, %cst_76 [1] : vector<52x52xf32> to vector<52xf32>
    %181 = vector.shape_cast %180 : vector<52xf32> to vector<52x1xf32>
    %182 = vector.broadcast %181 : vector<52x1xf32> to vector<52x52xf32>
    %183 = arith.subf %179, %182 : vector<52x52xf32>
    %184 = math.exp %183 : vector<52x52xf32>
    %cst_77 = arith.constant dense<0.000000e+00> : vector<52xf32>
    %185 = vector.multi_reduction <add>, %184, %cst_77 [1] : vector<52x52xf32> to vector<52xf32>
    %186 = vector.shape_cast %185 : vector<52xf32> to vector<52x1xf32>
    %cst_78 = arith.constant dense<0.000000e+00> : vector<52x16xf32>
    %187 = tpu.matmul %184, %177, %cst_78 {dimension_numbers = #tpu.dot_dimension_numbers<[1], [0], [0], [1], [0, 0, 1, 1], [], []>} : vector<52x52xf32>, vector<52x16xf32>, vector<52x16xf32> -> vector<52x16xf32>
    %188 = tpu.reciprocal %186 {approx = true} : vector<52x1xf32> -> vector<52x1xf32>
    %189 = vector.broadcast %188 : vector<52x1xf32> to vector<52x16xf32>
    %190 = arith.mulf %187, %189 : vector<52x16xf32>
    %191 = vector.extract_strided_slice %174 {offsets = [0, 16], sizes = [52, 16], strides = [1, 1]} : vector<52x96xf32> to vector<52x16xf32>
    %192 = vector.extract_strided_slice %174 {offsets = [0, 48], sizes = [52, 16], strides = [1, 1]} : vector<52x96xf32> to vector<52x16xf32>
    %193 = vector.extract_strided_slice %174 {offsets = [0, 80], sizes = [52, 16], strides = [1, 1]} : vector<52x96xf32> to vector<52x16xf32>
    %cst_79 = arith.constant dense<0.000000e+00> : vector<52x52xf32>
    %194 = tpu.matmul %191, %192, %cst_79 {dimension_numbers = #tpu.dot_dimension_numbers<[1], [1], [0], [0], [0, 0, 1, 0], [], []>} : vector<52x16xf32>, vector<52x16xf32>, vector<52x52xf32> -> vector<52x52xf32>
    %195 = arith.addf %194, %29 : vector<52x52xf32>
    %cst_80 = arith.constant dense<0xFF800000> : vector<52xf32>
    %196 = vector.multi_reduction <maximumf>, %195, %cst_80 [1] : vector<52x52xf32> to vector<52xf32>
    %197 = vector.shape_cast %196 : vector<52xf32> to vector<52x1xf32>
    %198 = vector.broadcast %197 : vector<52x1xf32> to vector<52x52xf32>
    %199 = arith.subf %195, %198 : vector<52x52xf32>
    %200 = math.exp %199 : vector<52x52xf32>
    %cst_81 = arith.constant dense<0.000000e+00> : vector<52xf32>
    %201 = vector.multi_reduction <add>, %200, %cst_81 [1] : vector<52x52xf32> to vector<52xf32>
    %202 = vector.shape_cast %201 : vector<52xf32> to vector<52x1xf32>
    %cst_82 = arith.constant dense<0.000000e+00> : vector<52x16xf32>
    %203 = tpu.matmul %200, %193, %cst_82 {dimension_numbers = #tpu.dot_dimension_numbers<[1], [0], [0], [1], [0, 0, 1, 1], [], []>} : vector<52x52xf32>, vector<52x16xf32>, vector<52x16xf32> -> vector<52x16xf32>
    %204 = tpu.reciprocal %202 {approx = true} : vector<52x1xf32> -> vector<52x1xf32>
    %205 = vector.broadcast %204 : vector<52x1xf32> to vector<52x16xf32>
    %206 = arith.mulf %203, %205 : vector<52x16xf32>
    %207 = tpu.concatenate %190, %206 in 1 : vector<52x16xf32>, vector<52x16xf32> -> vector<52x32xf32>
    %208 = vector.extract_strided_slice %0 {offsets = [96, 0], sizes = [32, 32], strides = [1, 1]} : vector<288x32xf32> to vector<32x32xf32>
    %cst_83 = arith.constant dense<0.000000e+00> : vector<52x32xf32>
    %209 = tpu.matmul %207, %208, %cst_83 {dimension_numbers = #tpu.dot_dimension_numbers<[1], [0], [0], [1], [0, 0, 1, 1], [], []>} : vector<52x32xf32>, vector<32x32xf32>, vector<52x32xf32> -> vector<52x32xf32>
    %210 = arith.addf %145, %209 : vector<52x32xf32>
    %211 = vector.extract_strided_slice %1 {offsets = [10, 0], sizes = [1, 32], strides = [1, 1]} : vector<15x32xf32> to vector<1x32xf32>
    %212 = vector.broadcast %211 : vector<1x32xf32> to vector<52x32xf32>
    %213 = arith.addf %210, %212 : vector<52x32xf32>
    %214 = vector.extract_strided_slice %1 {offsets = [8, 0], sizes = [1, 32], strides = [1, 1]} : vector<15x32xf32> to vector<1x32xf32>
    %215 = vector.extract_strided_slice %1 {offsets = [9, 0], sizes = [1, 32], strides = [1, 1]} : vector<15x32xf32> to vector<1x32xf32>
    %cst_84 = arith.constant dense<0.000000e+00> : vector<52xf32>
    %216 = vector.multi_reduction <add>, %213, %cst_84 [1] : vector<52x32xf32> to vector<52xf32>
    %217 = vector.shape_cast %216 : vector<52xf32> to vector<52x1xf32>
    %cst_85 = arith.constant 3.200000e+01 : f32
    %218 = vector.broadcast %cst_85 : f32 to vector<52x1xf32>
    %219 = arith.divf %217, %218 : vector<52x1xf32>
    %220 = vector.broadcast %219 : vector<52x1xf32> to vector<52x32xf32>
    %221 = arith.subf %213, %220 : vector<52x32xf32>
    %222 = arith.mulf %221, %221 : vector<52x32xf32>
    %cst_86 = arith.constant dense<0.000000e+00> : vector<52xf32>
    %223 = vector.multi_reduction <add>, %222, %cst_86 [1] : vector<52x32xf32> to vector<52xf32>
    %224 = vector.shape_cast %223 : vector<52xf32> to vector<52x1xf32>
    %cst_87 = arith.constant 3.200000e+01 : f32
    %225 = vector.broadcast %cst_87 : f32 to vector<52x1xf32>
    %226 = arith.divf %224, %225 : vector<52x1xf32>
    %cst_88 = arith.constant 9.99999974E-6 : f32
    %227 = vector.broadcast %cst_88 : f32 to vector<52x1xf32>
    %228 = arith.addf %226, %227 : vector<52x1xf32>
    %229 = math.rsqrt %228 : vector<52x1xf32>
    %230 = vector.broadcast %229 : vector<52x1xf32> to vector<52x32xf32>
    %231 = arith.mulf %221, %230 : vector<52x32xf32>
    %232 = vector.broadcast %214 : vector<1x32xf32> to vector<52x32xf32>
    %233 = arith.mulf %231, %232 : vector<52x32xf32>
    %234 = vector.broadcast %215 : vector<1x32xf32> to vector<52x32xf32>
    %235 = arith.addf %233, %234 : vector<52x32xf32>
    %c1_89 = arith.constant 1 : index
    %c0_90 = arith.constant 0 : index
    %c0_91 = arith.constant 0 : index
    %236 = vector.load %arg10[%c1_89, %c0_90, %c0_91] : memref<2x32x64xf32, #tpu.memory_space<vmem>>, vector<1x32x64xf32>
    %237 = vector.shape_cast %236 : vector<1x32x64xf32> to vector<32x64xf32>
    %cst_92 = arith.constant dense<0.000000e+00> : vector<52x64xf32>
    %238 = tpu.matmul %235, %237, %cst_92 {dimension_numbers = #tpu.dot_dimension_numbers<[1], [0], [0], [1], [0, 0, 1, 1], [], []>} : vector<52x32xf32>, vector<32x64xf32>, vector<52x64xf32> -> vector<52x64xf32>
    %c1_93 = arith.constant 1 : index
    %c0_94 = arith.constant 0 : index
    %c0_95 = arith.constant 0 : index
    %239 = vector.load %arg11[%c1_93, %c0_94, %c0_95] : memref<2x1x64xf32, #tpu.memory_space<vmem>>, vector<1x1x64xf32>
    %240 = vector.shape_cast %239 : vector<1x1x64xf32> to vector<1x64xf32>
    %241 = vector.broadcast %240 : vector<1x64xf32> to vector<52x64xf32>
    %242 = arith.addf %238, %241 : vector<52x64xf32>
    %243 = arith.mulf %242, %242 : vector<52x64xf32>
    %244 = arith.mulf %242, %243 : vector<52x64xf32>
    %cst_96 = arith.constant 4.471500e-02 : f32
    %245 = vector.broadcast %cst_96 : f32 to vector<52x64xf32>
    %246 = arith.mulf %245, %244 : vector<52x64xf32>
    %247 = arith.addf %242, %246 : vector<52x64xf32>
    %cst_97 = arith.constant 0.797884583 : f32
    %248 = vector.broadcast %cst_97 : f32 to vector<52x64xf32>
    %249 = arith.mulf %248, %247 : vector<52x64xf32>
    %250 = math.tanh %249 : vector<52x64xf32>
    %cst_98 = arith.constant 1.000000e+00 : f32
    %251 = vector.broadcast %cst_98 : f32 to vector<52x64xf32>
    %252 = arith.addf %251, %250 : vector<52x64xf32>
    %cst_99 = arith.constant 5.000000e-01 : f32
    %253 = vector.broadcast %cst_99 : f32 to vector<52x64xf32>
    %254 = arith.mulf %253, %252 : vector<52x64xf32>
    %255 = arith.mulf %242, %254 : vector<52x64xf32>
    %256 = vector.extract_strided_slice %0 {offsets = [192, 0], sizes = [64, 32], strides = [1, 1]} : vector<288x32xf32> to vector<64x32xf32>
    %cst_100 = arith.constant dense<0.000000e+00> : vector<52x32xf32>
    %257 = tpu.matmul %255, %256, %cst_100 {dimension_numbers = #tpu.dot_dimension_numbers<[1], [0], [0], [1], [0, 0, 1, 1], [], []>} : vector<52x64xf32>, vector<64x32xf32>, vector<52x32xf32> -> vector<52x32xf32>
    %258 = arith.addf %213, %257 : vector<52x32xf32>
    %259 = vector.extract_strided_slice %1 {offsets = [11, 0], sizes = [1, 32], strides = [1, 1]} : vector<15x32xf32> to vector<1x32xf32>
    %260 = vector.broadcast %259 : vector<1x32xf32> to vector<52x32xf32>
    %261 = arith.addf %258, %260 : vector<52x32xf32>
    %262 = vector.extract_strided_slice %1 {offsets = [12, 0], sizes = [1, 32], strides = [1, 1]} : vector<15x32xf32> to vector<1x32xf32>
    %263 = vector.extract_strided_slice %1 {offsets = [13, 0], sizes = [1, 32], strides = [1, 1]} : vector<15x32xf32> to vector<1x32xf32>
    %cst_101 = arith.constant dense<0.000000e+00> : vector<52xf32>
    %264 = vector.multi_reduction <add>, %261, %cst_101 [1] : vector<52x32xf32> to vector<52xf32>
    %265 = vector.shape_cast %264 : vector<52xf32> to vector<52x1xf32>
    %cst_102 = arith.constant 3.200000e+01 : f32
    %266 = vector.broadcast %cst_102 : f32 to vector<52x1xf32>
    %267 = arith.divf %265, %266 : vector<52x1xf32>
    %268 = vector.broadcast %267 : vector<52x1xf32> to vector<52x32xf32>
    %269 = arith.subf %261, %268 : vector<52x32xf32>
    %270 = arith.mulf %269, %269 : vector<52x32xf32>
    %cst_103 = arith.constant dense<0.000000e+00> : vector<52xf32>
    %271 = vector.multi_reduction <add>, %270, %cst_103 [1] : vector<52x32xf32> to vector<52xf32>
    %272 = vector.shape_cast %271 : vector<52xf32> to vector<52x1xf32>
    %cst_104 = arith.constant 3.200000e+01 : f32
    %273 = vector.broadcast %cst_104 : f32 to vector<52x1xf32>
    %274 = arith.divf %272, %273 : vector<52x1xf32>
    %cst_105 = arith.constant 9.99999974E-6 : f32
    %275 = vector.broadcast %cst_105 : f32 to vector<52x1xf32>
    %276 = arith.addf %274, %275 : vector<52x1xf32>
    %277 = math.rsqrt %276 : vector<52x1xf32>
    %278 = vector.broadcast %277 : vector<52x1xf32> to vector<52x32xf32>
    %279 = arith.mulf %269, %278 : vector<52x32xf32>
    %280 = vector.broadcast %262 : vector<1x32xf32> to vector<52x32xf32>
    %281 = arith.mulf %279, %280 : vector<52x32xf32>
    %282 = vector.broadcast %263 : vector<1x32xf32> to vector<52x32xf32>
    %283 = arith.addf %281, %282 : vector<52x32xf32>
    %c0_106 = arith.constant 0 : index
    %c0_107 = arith.constant 0 : index
    %c0_108 = arith.constant 0 : index
    %284 = vector.load %arg13[%c0_106, %c0_107, %c0_108] : memref<1x52x32xf32, #tpu.memory_space<vmem>>, vector<1x52x32xf32>
    %285 = vector.shape_cast %284 : vector<1x52x32xf32> to vector<52x32xf32>
    %286 = vector.shape_cast %283 : vector<52x32xf32> to vector<1x52x32xf32>
    tpu.vector_store %arg13[%c0_106, %c0_107, %c0_108], %286 {strides = array<i32>} : memref<1x52x32xf32, #tpu.memory_space<vmem>>, vector<1x52x32xf32>,
    %287 = vector.extract_strided_slice %283 {offsets = [48, 0], sizes = [4, 32], strides = [1, 1]} : vector<52x32xf32> to vector<4x32xf32>
    %288 = vector.extract_strided_slice %0 {offsets = [256, 0], sizes = [32, 32], strides = [1, 1]} : vector<288x32xf32> to vector<32x32xf32>
    %cst_109 = arith.constant dense<0.000000e+00> : vector<4x32xf32>
    %289 = tpu.matmul %287, %288, %cst_109 {dimension_numbers = #tpu.dot_dimension_numbers<[1], [0], [0], [1], [0, 0, 1, 1], [], []>} : vector<4x32xf32>, vector<32x32xf32>, vector<4x32xf32> -> vector<4x32xf32>
    %290 = vector.extract_strided_slice %1 {offsets = [14, 0], sizes = [1, 32], strides = [1, 1]} : vector<15x32xf32> to vector<1x32xf32>
    %291 = vector.broadcast %290 : vector<1x32xf32> to vector<4x32xf32>
    %292 = arith.addf %289, %291 : vector<4x32xf32>
    %293 = vector.extract_strided_slice %292 {offsets = [0, 0], sizes = [4, 7], strides = [1, 1]} : vector<4x32xf32> to vector<4x7xf32>
    %c0_110 = arith.constant 0 : index
    %c0_111 = arith.constant 0 : index
    %c0_112 = arith.constant 0 : index
    %294 = vector.load %arg14[%c0_110, %c0_111, %c0_112] : memref<1x4x7xf32, #tpu.memory_space<vmem>>, vector<1x4x7xf32>
    %295 = vector.shape_cast %294 : vector<1x4x7xf32> to vector<4x7xf32>
    %296 = vector.shape_cast %293 : vector<4x7xf32> to vector<1x4x7xf32>
    tpu.vector_store %arg14[%c0_110, %c0_111, %c0_112], %296 {strides = array<i32>} : memref<1x4x7xf32, #tpu.memory_space<vmem>>, vector<1x4x7xf32>,
    return
  }
  func.func @transform_0(%arg0: i32) -> (i32, i32, i32) {
    %c0_i32 = arith.constant 0 : i32
    %c0_i32_0 = arith.constant 0 : i32
    %c0_i32_1 = arith.constant 0 : i32
    return %arg0, %c0_i32, %c0_i32_0 : i32, i32, i32
  }
  func.func @transform_1(%arg0: i32) -> (i32, i32, i32) {
    %c0_i32 = arith.constant 0 : i32
    %c0_i32_0 = arith.constant 0 : i32
    %c0_i32_1 = arith.constant 0 : i32
    return %arg0, %c0_i32, %c0_i32_0 : i32, i32, i32
  }
  func.func @transform_2(%arg0: i32) -> (i32, i32, i32) {
    %c0_i32 = arith.constant 0 : i32
    %c0_i32_0 = arith.constant 0 : i32
    %c0_i32_1 = arith.constant 0 : i32
    return %arg0, %c0_i32, %c0_i32_0 : i32, i32, i32
  }
  func.func @transform_3(%arg0: i32) -> (i32, i32, i32) {
    %c0_i32 = arith.constant 0 : i32
    %c0_i32_0 = arith.constant 0 : i32
    %c0_i32_1 = arith.constant 0 : i32
    return %arg0, %c0_i32, %c0_i32_0 : i32, i32, i32
  }
  func.func @transform_4(%arg0: i32) -> (i32, i32) {
    %c0_i32 = arith.constant 0 : i32
    %c0_i32_0 = arith.constant 0 : i32
    %c0_i32_1 = arith.constant 0 : i32
    return %c0_i32, %c0_i32_0 : i32, i32
  }
  func.func @transform_5(%arg0: i32) -> (i32, i32) {
    %c0_i32 = arith.constant 0 : i32
    %c0_i32_0 = arith.constant 0 : i32
    %c0_i32_1 = arith.constant 0 : i32
    return %c0_i32, %c0_i32_0 : i32, i32
  }
  func.func @transform_6(%arg0: i32) -> (i32, i32) {
    %c0_i32 = arith.constant 0 : i32
    %c0_i32_0 = arith.constant 0 : i32
    %c0_i32_1 = arith.constant 0 : i32
    return %c0_i32, %c0_i32_0 : i32, i32
  }
  func.func @transform_7(%arg0: i32) -> (i32, i32, i32) {
    %c0_i32 = arith.constant 0 : i32
    %c0_i32_0 = arith.constant 0 : i32
    %c0_i32_1 = arith.constant 0 : i32
    %c0_i32_2 = arith.constant 0 : i32
    return %c0_i32, %c0_i32_0, %c0_i32_1 : i32, i32, i32
  }
  func.func @transform_8(%arg0: i32) -> (i32, i32, i32) {
    %c0_i32 = arith.constant 0 : i32
    %c0_i32_0 = arith.constant 0 : i32
    %c0_i32_1 = arith.constant 0 : i32
    %c0_i32_2 = arith.constant 0 : i32
    return %c0_i32, %c0_i32_0, %c0_i32_1 : i32, i32, i32
  }
  func.func @transform_9(%arg0: i32) -> (i32, i32, i32) {
    %c0_i32 = arith.constant 0 : i32
    %c0_i32_0 = arith.constant 0 : i32
    %c0_i32_1 = arith.constant 0 : i32
    %c0_i32_2 = arith.constant 0 : i32
    return %c0_i32, %c0_i32_0, %c0_i32_1 : i32, i32, i32
  }
  func.func @transform_10(%arg0: i32) -> (i32, i32, i32) {
    %c0_i32 = arith.constant 0 : i32
    %c0_i32_0 = arith.constant 0 : i32
    %c0_i32_1 = arith.constant 0 : i32
    %c0_i32_2 = arith.constant 0 : i32
    return %c0_i32, %c0_i32_0, %c0_i32_1 : i32, i32, i32
  }
  func.func @transform_11(%arg0: i32) -> (i32, i32) {
    %c0_i32 = arith.constant 0 : i32
    %c0_i32_0 = arith.constant 0 : i32
    %c0_i32_1 = arith.constant 0 : i32
    return %c0_i32, %c0_i32_0 : i32, i32
  }
  func.func @transform_12(%arg0: i32) -> (i32, i32, i32) {
    %c0_i32 = arith.constant 0 : i32
    %c0_i32_0 = arith.constant 0 : i32
    %c0_i32_1 = arith.constant 0 : i32
    return %arg0, %c0_i32, %c0_i32_0 : i32, i32, i32
  }
  func.func @transform_13(%arg0: i32) -> (i32, i32, i32) {
    %c0_i32 = arith.constant 0 : i32
    %c0_i32_0 = arith.constant 0 : i32
    %c0_i32_1 = arith.constant 0 : i32
    return %arg0, %c0_i32, %c0_i32_0 : i32, i32, i32
  }
}

</mosaic_0001>

<llo_original>
// kernel: tile.25
$region0: #{tile.25}
  %s0 = inlined_call_operand.vmem [shape: f32[2,12,32], index: 0, kind: input, shape index: {}]
  %s1 = inlined_call_operand.vmem [shape: f32[24,32], index: 1, kind: output, shape index: {}]
  %v2 = vld [vmem:[%s0] sm:$0xff]
  %vm3 = vcmask 261120
  %4 = vst.msk [vmem:[%s1] sm:$0xff] %vm3, %v2
  %s5 = scalar_lea.vmem %s0, 8
  %v6 = vld [vmem:[%s5] sm:$0xf]
  %vm7 = vcmask 261120
  %s8 = scalar_lea.vmem %s1, 8
  %9 = vst.msk [vmem:[%s8] sm:$0xf] %vm7, %v6
  %s10 = scalar_lea.vmem %s0, 16
  %v11 = vld [vmem:[%s10] sm:$0xff]
  %vm12 = vcmask 261120
  %s13 = scalar_lea.vmem %s1, 12
  %14 = vst.msk [vmem:[%s13] sm:$0xff] %vm12, %v11
  %s15 = scalar_lea.vmem %s0, 24
  %v16 = vld [vmem:[%s15] sm:$0xf]
  %vm17 = vcmask 261120
  %s18 = scalar_lea.vmem %s1, 20
  %19 = vst.msk [vmem:[%s18] sm:$0xf] %vm17, %v16

// kernel: _lambda_.1
$region0: #{_lambda_.1}
  #allocation0 [shape = 'u32[]', space=smem, size = 0x4, offset = 0x4, fixed_abs, tag = 'smem constant byte address 0x4 - core index']
  #allocation1 [shape = 'u32[144,128]{1,0:T(1,128)}', space=vmem, size = 0x12000, scoped, tag = 'internal scratch']
  %s0 = inlined_call_operand.vmem [shape: f32[1,8,16], index: 0, kind: input, shape index: {}]
  %s1 = inlined_call_operand.vmem [shape: f32[1,24,24], index: 1, kind: input, shape index: {}]
  %s2 = inlined_call_operand.vmem [shape: f32[1,16,24], index: 2, kind: input, shape index: {}]
  %s3 = inlined_call_operand.vmem [shape: f32[1,1,52], index: 3, kind: input, shape index: {}]
  %s4 = inlined_call_operand.vmem [shape: f32[52,52], index: 4, kind: input, shape index: {}]
  %s5 = inlined_call_operand.vmem [shape: f32[52,32], index: 5, kind: input, shape index: {}]
  %s6 = inlined_call_operand.vmem [shape: f32[288,32], index: 6, kind: input, shape index: {}]
  %s7 = inlined_call_operand.vmem [shape: f32[2,32,96], index: 7, kind: input, shape index: {}]
  %s8 = inlined_call_operand.vmem [shape: f32[2,1,96], index: 8, kind: input, shape index: {}]
  %s9 = inlined_call_operand.vmem [shape: f32[2,32,64], index: 9, kind: input, shape index: {}]
  %s10 = inlined_call_operand.vmem [shape: f32[2,1,64], index: 10, kind: input, shape index: {}]
  %s11 = inlined_call_operand.vmem [shape: f32[15,32], index: 11, kind: input, shape index: {}]
  %s12 = inlined_call_operand.vmem [shape: f32[1,52,32], index: 12, kind: output, shape index: {0}]
  %s13 = inlined_call_operand.hbm [shape: f32[1,4,7], index: 13, kind: output, shape index: {1}]
  %14 = xla_tuple %s12, %s13
  %s15 = sld [smem:[#allocation0]]
  $region66: #{_lambda_.1} parent=0
    _
  %s17 = ssub.s32 1, %s15
  %s18 = scalar_select 0, %s17, %s15
  $region1: #{_lambda_.1} parent=0
    #allocation2 [shape = 'u8[2048]{0}', space=vmem, size = 0x800, scoped, tag = 'output window, operand 1, single buffered']
    #allocation3 [shape = 's32[1]{0}', space=sflag, size = 0x4, scoped, tag = 'scoped memory for _lambda_.1']
    %19 = vsyncpa [#allocation3], 0
    // Predicated region
    $region2: #{_lambda_.1} parent=1 // pred_check
      _
    $region3: #{_lambda_.1} parent=1 // pred_check_branch
      %21 = sbr.rel (0) target = $region5
    $region4: #{_lambda_.1} parent=1 // pred_region
      _
    $region5: #{_lambda_.1} parent=1 // pred_fallthru
      _
    // Predicated region
    $region6: #{_lambda_.1} parent=1 // pred_check
      _
    $region7: #{_lambda_.1} parent=1 // pred_check_branch
      %23 = sbr.rel (0) target = $region9
    $region8: #{_lambda_.1} parent=1 // pred_region
      _
    $region9: #{_lambda_.1} parent=1 // pred_fallthru
      _
    // Predicated region
    $region10: #{_lambda_.1} parent=1 // pred_check
      _
    $region11: #{_lambda_.1} parent=1 // pred_check_branch
      %25 = sbr.rel (0) target = $region13
    $region12: #{_lambda_.1} parent=1 // pred_region
      _
    $region13: #{_lambda_.1} parent=1 // pred_fallthru
      _
    // Predicated region
    $region14: #{_lambda_.1} parent=1 // pred_check
      _
    $region15: #{_lambda_.1} parent=1 // pred_check_branch
      %27 = sbr.rel (0) target = $region17
    $region16: #{_lambda_.1} parent=1 // pred_region
      _
    $region17: #{_lambda_.1} parent=1 // pred_fallthru
      _
    // Predicated region
    $region18: #{_lambda_.1} parent=1 // pred_check
      _
    $region19: #{_lambda_.1} parent=1 // pred_check_branch
      %29 = sbr.rel (0) target = $region21
    $region20: #{_lambda_.1} parent=1 // pred_region
      _
    $region21: #{_lambda_.1} parent=1 // pred_fallthru
      _
    // Predicated region
    $region22: #{_lambda_.1} parent=1 // pred_check
      _
    $region23: #{_lambda_.1} parent=1 // pred_check_branch
      %31 = sbr.rel (0) target = $region25
    $region24: #{_lambda_.1} parent=1 // pred_region
      _
    $region25: #{_lambda_.1} parent=1 // pred_fallthru
      _
    // Predicated region
    $region26: #{_lambda_.1} parent=1 // pred_check
      _
    $region27: #{_lambda_.1} parent=1 // pred_check_branch
      %33 = sbr.rel (0) target = $region29
    $region28: #{_lambda_.1} parent=1 // pred_region
      _
    $region29: #{_lambda_.1} parent=1 // pred_fallthru
      _
    // Predicated region
    $region30: #{_lambda_.1} parent=1 // pred_check
      _
    $region31: #{_lambda_.1} parent=1 // pred_check_branch
      %35 = sbr.rel (0) target = $region33
    $region32: #{_lambda_.1} parent=1 // pred_region
      _
    $region33: #{_lambda_.1} parent=1 // pred_fallthru
      _
    // Predicated region
    $region34: #{_lambda_.1} parent=1 // pred_check
      _
    $region35: #{_lambda_.1} parent=1 // pred_check_branch
      %37 = sbr.rel (0) target = $region37
    $region36: #{_lambda_.1} parent=1 // pred_region
      _
    $region37: #{_lambda_.1} parent=1 // pred_fallthru
      _
    // Predicated region
    $region38: #{_lambda_.1} parent=1 // pred_check
      _
    $region39: #{_lambda_.1} parent=1 // pred_check_branch
      %39 = sbr.rel (0) target = $region41
    $region40: #{_lambda_.1} parent=1 // pred_region
      _
    $region41: #{_lambda_.1} parent=1 // pred_fallthru
      _
    // Predicated region
    $region42: #{_lambda_.1} parent=1 // pred_check
      _
    $region43: #{_lambda_.1} parent=1 // pred_check_branch
      %41 = sbr.rel (0) target = $region45
    $region44: #{_lambda_.1} parent=1 // pred_region
      _
    $region45: #{_lambda_.1} parent=1 // pred_fallthru
      _
    // Predicated region
    $region46: #{_lambda_.1} parent=1 // pred_check
      _
    $region47: #{_lambda_.1} parent=1 // pred_check_branch
      %43 = sbr.rel (0) target = $region49
    $region48: #{_lambda_.1} parent=1 // pred_region
      _
    $region49: #{_lambda_.1} parent=1 // pred_fallthru
      _
    %v44 = vld [vmem:[%s6] sm:$0xff]
    %v45 = vld [vmem:[%s6 + $0x8] sm:$0xff]
    %v46 = vld [vmem:[%s6 + $0x10] sm:$0xff]
    %v47 = vld [vmem:[%s6 + $0x18] sm:$0xff]
    %v48 = vld [vmem:[%s6 + $0x20] sm:$0xff]
    %v49 = vld [vmem:[%s6 + $0x28] sm:$0xff]
    %v50 = vld [vmem:[%s6 + $0x30] sm:$0xff]
    %v51 = vld [vmem:[%s6 + $0x38] sm:$0xff]
    %v52 = vld [vmem:[%s6 + $0x40] sm:$0xff]
    %v53 = vld [vmem:[%s6 + $0x48] sm:$0xff]
    %v54 = vld [vmem:[%s6 + $0x50] sm:$0xff]
    %v55 = vld [vmem:[%s6 + $0x58] sm:$0xff]
    %v56 = vld [vmem:[%s6 + $0x60] sm:$0xff]
    %v57 = vld [vmem:[%s6 + $0x68] sm:$0xff]
    %v58 = vld [vmem:[%s6 + $0x70] sm:$0xff]
    %v59 = vld [vmem:[%s6 + $0x78] sm:$0xff]
    %v60 = vld [vmem:[%s6 + $0x80] sm:$0xff]
    %v61 = vld [vmem:[%s6 + $0x88] sm:$0xff]
    %v62 = vld [vmem:[%s6 + $0x90] sm:$0xff]
    %v63 = vld [vmem:[%s6 + $0x98] sm:$0xff]
    %v64 = vld [vmem:[%s6 + $0xa0] sm:$0xff]
    %v65 = vld [vmem:[%s6 + $0xa8] sm:$0xff]
    %v66 = vld [vmem:[%s6 + $0xb0] sm:$0xff]
    %v67 = vld [vmem:[%s6 + $0xb8] sm:$0xff]
    %v68 = vld [vmem:[%s6 + $0xc0] sm:$0xff]
    %v69 = vld [vmem:[%s6 + $0xc8] sm:$0xff]
    %v70 = vld [vmem:[%s6 + $0xd0] sm:$0xff]
    %v71 = vld [vmem:[%s6 + $0xd8] sm:$0xff]
    %v72 = vld [vmem:[%s6 + $0xe0] sm:$0xff]
    %v73 = vld [vmem:[%s6 + $0xe8] sm:$0xff]
    %v74 = vld [vmem:[%s6 + $0xf0] sm:$0xff]
    %v75 = vld [vmem:[%s6 + $0xf8] sm:$0xff]
    %v76 = vld [vmem:[%s6 + $0x100] sm:$0xff]
    %v77 = vld [vmem:[%s6 + $0x108] sm:$0xff]
    %v78 = vld [vmem:[%s6 + $0x110] sm:$0xff]
    %v79 = vld [vmem:[%s6 + $0x118] sm:$0xff]
    %v80 = vld [vmem:[%s11] sm:$0xff]
    %v81 = vld [vmem:[%s11 + $0x8] sm:$0x7f]
    %v82 = vld [vmem:[%s0] sm:$0xff]
    %vm83 = vcmask 130048
    %v85 = vsel %vm83, %v82, 0
    %87 = vmatprep.subr.mxu0 0.0
    %88 = vmatpush1.msra.mxu0 0.0
    %89 = vmatprep.subr.mxu0 0.0
    %90 = vmatpush1.msra.mxu0 0.0
    %91 = vmatprep.subr.mxu0 0.0
    %92 = vmatpush1.msra.mxu0 0.0
    %93 = vmatprep.subr.mxu0 0.0
    %94 = vmatpush1.msra.mxu0 0.0
    %95 = vmatprep.subr.mxu0 0.0
    %96 = vmatpush1.msra.mxu0 0.0
    %97 = vmatprep.subr.mxu0 0.0
    %98 = vmatpush1.msra.mxu0 0.0
    %99 = vmatprep.subr.mxu0 0.0
    %100 = vmatpush1.msra.mxu0 0.0
    %101 = vmatprep.subr.mxu0 0.0
    %102 = vmatpush1.msra.mxu0 0.0
    %103 = vmatprep.subr.mxu0 0.0
    %104 = vmatpush1.msra.mxu0 0.0
    %105 = vmatprep.subr.mxu0 0.0
    %106 = vmatpush1.msra.mxu0 0.0
    %107 = vmatprep.subr.mxu0 0.0
    %108 = vmatpush1.msra.mxu0 0.0
    %109 = vmatprep.subr.mxu0 0.0
    %110 = vmatpush1.msra.mxu0 0.0
    %111 = vmatprep.subr.mxu0 0.0
    %112 = vmatpush1.msra.mxu0 0.0
    %113 = vmatprep.subr.mxu0 0.0
    %114 = vmatpush1.msra.mxu0 0.0
    %115 = vmatprep.subr.mxu0 0.0
    %116 = vmatpush1.msra.mxu0 %v45
    %117 = vmatprep.subr.mxu0 0.0
    %118 = vmatpush1.msra.mxu0 %v44
    %119 = vmatprep.subr.mxu0 0.0
    %120 = vmatpush2.msra.mxu0 0.0
    %121 = vmatprep.subr.mxu0 0.0
    %122 = vmatpush2.msra.mxu0 0.0
    %123 = vmatprep.subr.mxu0 0.0
    %124 = vmatpush2.msra.mxu0 0.0
    %125 = vmatprep.subr.mxu0 0.0
    %126 = vmatpush2.msra.mxu0 0.0
    %127 = vmatprep.subr.mxu0 0.0
    %128 = vmatpush2.msra.mxu0 0.0
    %129 = vmatprep.subr.mxu0 0.0
    %130 = vmatpush2.msra.mxu0 0.0
    %131 = vmatprep.subr.mxu0 0.0
    %132 = vmatpush2.msra.mxu0 0.0
    %133 = vmatprep.subr.mxu0 0.0
    %134 = vmatpush2.msra.mxu0 0.0
    %135 = vmatprep.subr.mxu0 0.0
    %136 = vmatpush2.msra.mxu0 0.0
    %137 = vmatprep.subr.mxu0 0.0
    %138 = vmatpush2.msra.mxu0 0.0
    %139 = vmatprep.subr.mxu0 0.0
    %140 = vmatpush2.msra.mxu0 0.0
    %141 = vmatprep.subr.mxu0 0.0
    %142 = vmatpush2.msra.mxu0 0.0
    %143 = vmatprep.subr.mxu0 0.0
    %144 = vmatpush2.msra.mxu0 0.0
    %145 = vmatprep.subr.mxu0 0.0
    %146 = vmatpush2.msra.mxu0 0.0
    %147 = vmatprep.subr.mxu0 0.0
    %148 = vmatpush2.msra.mxu0 0.0
    %149 = vmatprep.subr.mxu0 0.0
    %150 = vmatpush2.msra.mxu0 0.0
    %151 = vmatprep.mubr.f32.mxu0 0.0
    %152 = vmatmul.mubr.f32.gmra.mxu0 %v85
    %v153 = vpop.f32.mrf.mxu0
    %v154 = vadd.f32 0.0, %v153
    %v155 = vpop.f32.mrf.mxu0
    %156 = vdwg.mxu0
    %v157 = vld [vmem:[%s1] sm:$0xff]
    %v158 = vld [vmem:[%s1 + $0x8] sm:$0xff]
    %v159 = vld [vmem:[%s1 + $0x10] sm:$0xff]
    %vm160 = vcmask 195584
    %v162 = vsel %vm160, %v157, 0
    %v165 = vsel %vm160, %v158, 0
    %v168 = vsel %vm160, %v159, 0
    %170 = vmatprep.subr.mxu0 0.0
    %171 = vmatpush1.msra.mxu0 0.0
    %172 = vmatprep.subr.mxu0 0.0
    %173 = vmatpush1.msra.mxu0 0.0
    %174 = vmatprep.subr.mxu0 0.0
    %175 = vmatpush1.msra.mxu0 0.0
    %176 = vmatprep.subr.mxu0 0.0
    %177 = vmatpush1.msra.mxu0 0.0
    %178 = vmatprep.subr.mxu0 0.0
    %179 = vmatpush1.msra.mxu0 0.0
    %180 = vmatprep.subr.mxu0 0.0
    %181 = vmatpush1.msra.mxu0 0.0
    %182 = vmatprep.subr.mxu0 0.0
    %183 = vmatpush1.msra.mxu0 0.0
    %184 = vmatprep.subr.mxu0 0.0
    %185 = vmatpush1.msra.mxu0 0.0
    %186 = vmatprep.subr.mxu0 0.0
    %187 = vmatpush1.msra.mxu0 0.0
    %188 = vmatprep.subr.mxu0 0.0
    %189 = vmatpush1.msra.mxu0 0.0
    %190 = vmatprep.subr.mxu0 0.0
    %191 = vmatpush1.msra.mxu0 0.0
    %192 = vmatprep.subr.mxu0 0.0
    %193 = vmatpush1.msra.mxu0 0.0
    %194 = vmatprep.subr.mxu0 0.0
    %195 = vmatpush1.msra.mxu0 0.0
    %196 = vmatprep.subr.mxu0 0.0
    %197 = vmatpush1.msra.mxu0 %v48
    %198 = vmatprep.subr.mxu0 0.0
    %199 = vmatpush1.msra.mxu0 %v47
    %200 = vmatprep.subr.mxu0 0.0
    %201 = vmatpush1.msra.mxu0 %v46
    %202 = vmatprep.subr.mxu0 0.0
    %203 = vmatpush2.msra.mxu0 0.0
    %204 = vmatprep.subr.mxu0 0.0
    %205 = vmatpush2.msra.mxu0 0.0
    %206 = vmatprep.subr.mxu0 0.0
    %207 = vmatpush2.msra.mxu0 0.0
    %208 = vmatprep.subr.mxu0 0.0
    %209 = vmatpush2.msra.mxu0 0.0
    %210 = vmatprep.subr.mxu0 0.0
    %211 = vmatpush2.msra.mxu0 0.0
    %212 = vmatprep.subr.mxu0 0.0
    %213 = vmatpush2.msra.mxu0 0.0
    %214 = vmatprep.subr.mxu0 0.0
    %215 = vmatpush2.msra.mxu0 0.0
    %216 = vmatprep.subr.mxu0 0.0
    %217 = vmatpush2.msra.mxu0 0.0
    %218 = vmatprep.subr.mxu0 0.0
    %219 = vmatpush2.msra.mxu0 0.0
    %220 = vmatprep.subr.mxu0 0.0
    %221 = vmatpush2.msra.mxu0 0.0
    %222 = vmatprep.subr.mxu0 0.0
    %223 = vmatpush2.msra.mxu0 0.0
    %224 = vmatprep.subr.mxu0 0.0
    %225 = vmatpush2.msra.mxu0 0.0
    %226 = vmatprep.subr.mxu0 0.0
    %227 = vmatpush2.msra.mxu0 0.0
    %228 = vmatprep.subr.mxu0 0.0
    %229 = vmatpush2.msra.mxu0 0.0
    %230 = vmatprep.subr.mxu0 0.0
    %231 = vmatpush2.msra.mxu0 0.0
    %232 = vmatprep.subr.mxu0 0.0
    %233 = vmatpush2.msra.mxu0 0.0
    %234 = vmatprep.mubr.f32.mxu0 0.0
    %235 = vmatmul.mubr.f32.gmra.mxu0 %v162
    %v236 = vpop.f32.mrf.mxu0
    %v237 = vadd.f32 0.0, %v236
    %v238 = vpop.f32.mrf.mxu0
    %239 = vmatprep.mubr.f32.mxu0 0.0
    %240 = vmatmul.mubr.f32.gmra.mxu0 %v165
    %v241 = vpop.f32.mrf.mxu0
    %v242 = vadd.f32 0.0, %v241
    %v243 = vpop.f32.mrf.mxu0
    %244 = vmatprep.mubr.f32.mxu0 0.0
    %245 = vmatmul.mubr.f32.gmra.mxu0 %v168
    %v246 = vpop.f32.mrf.mxu0
    %v247 = vadd.f32 0.0, %v246
    %v248 = vpop.f32.mrf.mxu0
    %249 = vdwg.mxu0
    %v250 = vld [vmem:[%s2] sm:$0xff]
    %v251 = vld [vmem:[%s2 + $0x8] sm:$0xff]
    %v253 = vsel %vm160, %v250, 0
    %v256 = vsel %vm160, %v251, 0
    %258 = vmatprep.subr.mxu0 0.0
    %259 = vmatpush1.msra.mxu0 0.0
    %260 = vmatprep.subr.mxu0 0.0
    %261 = vmatpush1.msra.mxu0 0.0
    %262 = vmatprep.subr.mxu0 0.0
    %263 = vmatpush1.msra.mxu0 0.0
    %264 = vmatprep.subr.mxu0 0.0
    %265 = vmatpush1.msra.mxu0 0.0
    %266 = vmatprep.subr.mxu0 0.0
    %267 = vmatpush1.msra.mxu0 0.0
    %268 = vmatprep.subr.mxu0 0.0
    %269 = vmatpush1.msra.mxu0 0.0
    %270 = vmatprep.subr.mxu0 0.0
    %271 = vmatpush1.msra.mxu0 0.0
    %272 = vmatprep.subr.mxu0 0.0
    %273 = vmatpush1.msra.mxu0 0.0
    %274 = vmatprep.subr.mxu0 0.0
    %275 = vmatpush1.msra.mxu0 0.0
    %276 = vmatprep.subr.mxu0 0.0
    %277 = vmatpush1.msra.mxu0 0.0
    %278 = vmatprep.subr.mxu0 0.0
    %279 = vmatpush1.msra.mxu0 0.0
    %280 = vmatprep.subr.mxu0 0.0
    %281 = vmatpush1.msra.mxu0 0.0
    %282 = vmatprep.subr.mxu0 0.0
    %283 = vmatpush1.msra.mxu0 0.0
    %284 = vmatprep.subr.mxu0 0.0
    %285 = vmatpush1.msra.mxu0 %v51
    %286 = vmatprep.subr.mxu0 0.0
    %287 = vmatpush1.msra.mxu0 %v50
    %288 = vmatprep.subr.mxu0 0.0
    %289 = vmatpush1.msra.mxu0 %v49
    %290 = vmatprep.subr.mxu0 0.0
    %291 = vmatpush2.msra.mxu0 0.0
    %292 = vmatprep.subr.mxu0 0.0
    %293 = vmatpush2.msra.mxu0 0.0
    %294 = vmatprep.subr.mxu0 0.0
    %295 = vmatpush2.msra.mxu0 0.0
    %296 = vmatprep.subr.mxu0 0.0
    %297 = vmatpush2.msra.mxu0 0.0
    %298 = vmatprep.subr.mxu0 0.0
    %299 = vmatpush2.msra.mxu0 0.0
    %300 = vmatprep.subr.mxu0 0.0
    %301 = vmatpush2.msra.mxu0 0.0
    %302 = vmatprep.subr.mxu0 0.0
    %303 = vmatpush2.msra.mxu0 0.0
    %304 = vmatprep.subr.mxu0 0.0
    %305 = vmatpush2.msra.mxu0 0.0
    %306 = vmatprep.subr.mxu0 0.0
    %307 = vmatpush2.msra.mxu0 0.0
    %308 = vmatprep.subr.mxu0 0.0
    %309 = vmatpush2.msra.mxu0 0.0
    %310 = vmatprep.subr.mxu0 0.0
    %311 = vmatpush2.msra.mxu0 0.0
    %312 = vmatprep.subr.mxu0 0.0
    %313 = vmatpush2.msra.mxu0 0.0
    %314 = vmatprep.subr.mxu0 0.0
    %315 = vmatpush2.msra.mxu0 0.0
    %316 = vmatprep.subr.mxu0 0.0
    %317 = vmatpush2.msra.mxu0 0.0
    %318 = vmatprep.subr.mxu0 0.0
    %319 = vmatpush2.msra.mxu0 0.0
    %320 = vmatprep.subr.mxu0 0.0
    %321 = vmatpush2.msra.mxu0 0.0
    %322 = vmatprep.mubr.f32.mxu0 0.0
    %323 = vmatmul.mubr.f32.gmra.mxu0 %v253
    %v324 = vpop.f32.mrf.mxu0
    %v325 = vadd.f32 0.0, %v324
    %v326 = vpop.f32.mrf.mxu0
    %327 = vmatprep.mubr.f32.mxu0 0.0
    %328 = vmatmul.mubr.f32.gmra.mxu0 %v256
    %v329 = vpop.f32.mrf.mxu0
    %v330 = vadd.f32 0.0, %v329
    %v331 = vpop.f32.mrf.mxu0
    %332 = vdwg.mxu0
    %v333 = vld [vmem:[%s5] sm:$0xff]
    %v334 = vld [vmem:[%s5 + $0x8] sm:$0xff]
    %v335 = vld [vmem:[%s5 + $0x10] sm:$0xff]
    %v336 = vld [vmem:[%s5 + $0x18] sm:$0xff]
    %v337 = vld [vmem:[%s5 + $0x20] sm:$0xff]
    %v338 = vld [vmem:[%s5 + $0x28] sm:$0xff]
    %v339 = vld [vmem:[%s5 + $0x30] sm:$0xf]
    %v340 = vadd.f32 %v154, %v333
    %v341 = vadd.f32 %v237, %v334
    %v342 = vadd.f32 %v242, %v335
    %v343 = vadd.f32 %v247, %v336
    %v344 = vadd.f32 %v325, %v337
    %v345 = vadd.f32 %v330, %v338
    %v346 = vadd.f32 %v339, 0.0
    %v347 = vld [vmem:[%s4] sm:$0xff]
    %v348 = vld [vmem:[%s4 + $0x8] sm:$0xff]
    %v349 = vld [vmem:[%s4 + $0x10] sm:$0xff]
    %v350 = vld [vmem:[%s4 + $0x18] sm:$0xff]
    %v351 = vld [vmem:[%s4 + $0x20] sm:$0xff]
    %v352 = vld [vmem:[%s4 + $0x28] sm:$0xff]
    %v353 = vld [vmem:[%s4 + $0x30] sm:$0xf]
    %vm354 = vcmp.gt.f32.partialorder %v347, 0.5
    %vm355 = vcmp.gt.f32.partialorder %v348, 0.5
    %vm356 = vcmp.gt.f32.partialorder %v349, 0.5
    %vm357 = vcmp.gt.f32.partialorder %v350, 0.5
    %vm358 = vcmp.gt.f32.partialorder %v351, 0.5
    %vm359 = vcmp.gt.f32.partialorder %v352, 0.5
    %vm360 = vcmp.gt.f32.partialorder %v353, 0.5
    %v361 = vld [vmem:[%s3] sm:$0x1]
    %vm362 = vcmp.gt.f32.partialorder %v361, 0.5
    %v363 = vsel %vm362, 1, 0
    %v364 = vlaneseq
    %v365 = vshrl.u32 %v364, 7
    %v366 = vsub.s32 0, %v365
    %v367 = vrot.slane %v363, %v366
    %vm368 = vcmp.eq.s32.totalorder %v367, 1
    %vm369 = vmand %vm354, %vm368
    %vm370 = vmand %vm355, %vm368
    %vm371 = vmand %vm356, %vm368
    %vm372 = vmand %vm357, %vm368
    %vm373 = vmand %vm358, %vm368
    %vm374 = vmand %vm359, %vm368
    %vm375 = vmand %vm360, %vm368
    %v376 = vsel %vm369, 0.0, -1e+30
    %v377 = vsel %vm370, 0.0, -1e+30
    %v378 = vsel %vm371, 0.0, -1e+30
    %v379 = vsel %vm372, 0.0, -1e+30
    %v380 = vsel %vm373, 0.0, -1e+30
    %v381 = vsel %vm374, 0.0, -1e+30
    %v382 = vsel %vm375, 0.0, -1e+30
    %vm383 = vcmask 261120
    %v384 = vsel %vm383, %v340, 0.0
    %385 = vadd.xlane.f32.xlu0 %v384
    %v386 = vpop.xlane.xlu0 %385
    %v387 = vsel %vm383, %v341, 0.0
    %388 = vadd.xlane.f32.xlu0 %v387
    %v389 = vpop.xlane.xlu0 %388
    %v390 = vsel %vm383, %v342, 0.0
    %391 = vadd.xlane.f32.xlu0 %v390
    %v392 = vpop.xlane.xlu0 %391
    %v393 = vsel %vm383, %v343, 0.0
    %394 = vadd.xlane.f32.xlu0 %v393
    %v395 = vpop.xlane.xlu0 %394
    %v396 = vsel %vm383, %v344, 0.0
    %397 = vadd.xlane.f32.xlu0 %v396
    %v398 = vpop.xlane.xlu0 %397
    %v399 = vsel %vm383, %v345, 0.0
    %400 = vadd.xlane.f32.xlu0 %v399
    %v401 = vpop.xlane.xlu0 %400
    %vm402 = vcmask 257024
    %v403 = vsel %vm402, %v346, 0.0
    %404 = vadd.xlane.f32.xlu0 %v403
    %v405 = vpop.xlane.xlu0 %404
    %v406 = vrcp.pop 32.0
    %v407 = vmul.f32 %v386, %v406
    %v408 = vmul.f32 %v389, %v406
    %v409 = vmul.f32 %v392, %v406
    %v410 = vmul.f32 %v395, %v406
    %v411 = vmul.f32 %v398, %v406
    %v412 = vmul.f32 %v401, %v406
    %v413 = vmul.f32 %v405, %v406
    %v414 = vsub.f32 %v340, %v407
    %v415 = vsub.f32 %v341, %v408
    %v416 = vsub.f32 %v342, %v409
    %v417 = vsub.f32 %v343, %v410
    %v418 = vsub.f32 %v344, %v411
    %v419 = vsub.f32 %v345, %v412
    %v420 = vsub.f32 %v346, %v413
    %v421 = vmul.f32 %v414, %v414
    %v422 = vmul.f32 %v415, %v415
    %v423 = vmul.f32 %v416, %v416
    %v424 = vmul.f32 %v417, %v417
    %v425 = vmul.f32 %v418, %v418
    %v426 = vmul.f32 %v419, %v419
    %v427 = vmul.f32 %v420, %v420
    %v428 = vsel %vm383, %v421, 0.0
    %429 = vadd.xlane.f32.xlu0 %v428
    %v430 = vpop.xlane.xlu0 %429
    %v431 = vsel %vm383, %v422, 0.0
    %432 = vadd.xlane.f32.xlu0 %v431
    %v433 = vpop.xlane.xlu0 %432
    %v434 = vsel %vm383, %v423, 0.0
    %435 = vadd.xlane.f32.xlu0 %v434
    %v436 = vpop.xlane.xlu0 %435
    %v437 = vsel %vm383, %v424, 0.0
    %438 = vadd.xlane.f32.xlu0 %v437
    %v439 = vpop.xlane.xlu0 %438
    %v440 = vsel %vm383, %v425, 0.0
    %441 = vadd.xlane.f32.xlu0 %v440
    %v442 = vpop.xlane.xlu0 %441
    %v443 = vsel %vm383, %v426, 0.0
    %444 = vadd.xlane.f32.xlu0 %v443
    %v445 = vpop.xlane.xlu0 %444
    %v446 = vsel %vm402, %v427, 0.0
    %447 = vadd.xlane.f32.xlu0 %v446
    %v448 = vpop.xlane.xlu0 %447
    %v449 = vmul.f32 %v430, %v406
    %v450 = vmul.f32 %v433, %v406
    %v451 = vmul.f32 %v436, %v406
    %v452 = vmul.f32 %v439, %v406
    %v453 = vmul.f32 %v442, %v406
    %v454 = vmul.f32 %v445, %v406
    %v455 = vmul.f32 %v448, %v406
    %v456 = vadd.f32 %v449, 1e-05
    %v457 = vadd.f32 %v450, 1e-05
    %v458 = vadd.f32 %v451, 1e-05
    %v459 = vadd.f32 %v452, 1e-05
    %v460 = vadd.f32 %v453, 1e-05
    %v461 = vadd.f32 %v454, 1e-05
    %v462 = vadd.f32 %v455, 1e-05
    %v463 = vrsqrt.pop %v456
    %v464 = vrsqrt.pop %v457
    %v465 = vrsqrt.pop %v458
    %v466 = vrsqrt.pop %v459
    %v467 = vrsqrt.pop %v460
    %v468 = vrsqrt.pop %v461
    %v469 = vrsqrt.pop %v462
    %v470 = vmul.f32 %v414, %v463
    %v471 = vmul.f32 %v415, %v464
    %v472 = vmul.f32 %v416, %v465
    %v473 = vmul.f32 %v417, %v466
    %v474 = vmul.f32 %v418, %v467
    %v475 = vmul.f32 %v419, %v468
    %v476 = vmul.f32 %v420, %v469
    %v477 = vlaneseq
    %v478 = vshrl.u32 %v477, 7
    %v479 = vsub.s32 0, %v478
    %v480 = vrot.slane %v80, %v479
    %v481 = vmul.f32 %v470, %v480
    %v482 = vmul.f32 %v471, %v480
    %v483 = vmul.f32 %v472, %v480
    %v484 = vmul.f32 %v473, %v480
    %v485 = vmul.f32 %v474, %v480
    %v486 = vmul.f32 %v475, %v480
    %v487 = vmul.f32 %v476, %v480
    %v488 = vlaneseq
    %v489 = vshrl.u32 %v488, 7
    %v490 = vsub.s32 1, %v489
    %v491 = vrot.slane %v80, %v490
    %v492 = vadd.f32 %v481, %v491
    %v493 = vadd.f32 %v482, %v491
    %v494 = vadd.f32 %v483, %v491
    %v495 = vadd.f32 %v484, %v491
    %v496 = vadd.f32 %v485, %v491
    %v497 = vadd.f32 %v486, %v491
    %v498 = vadd.f32 %v487, %v491
    %v499 = vld [vmem:[%s7] sm:$0xff]
    %v500 = vld [vmem:[%s7 + $0x8] sm:$0xff]
    %v501 = vld [vmem:[%s7 + $0x10] sm:$0xff]
    %v502 = vld [vmem:[%s7 + $0x18] sm:$0xff]
    %v503 = vld [vmem:[%s8] sm:$0x1]
    %v505 = vlaneseq
    %v506 = vshrl.u32 %v505, 7
    %v507 = vsub.s32 0, %v506
    %v508 = vrot.slane %v503, %v507
    %v511 = vsel %vm383, %v492, 0
    %v514 = vsel %vm383, %v493, 0
    %v517 = vsel %vm383, %v494, 0
    %v520 = vsel %vm383, %v495, 0
    %v523 = vsel %vm383, %v496, 0
    %v526 = vsel %vm383, %v497, 0
    %v529 = vsel %vm383, %v498, 0
    %531 = vmatprep.subr.mxu0 0.0
    %532 = vmatpush1.msra.mxu0 0.0
    %533 = vmatprep.subr.mxu0 0.0
    %534 = vmatpush1.msra.mxu0 0.0
    %535 = vmatprep.subr.mxu0 0.0
    %536 = vmatpush1.msra.mxu0 0.0
    %537 = vmatprep.subr.mxu0 0.0
    %538 = vmatpush1.msra.mxu0 0.0
    %539 = vmatprep.subr.mxu0 0.0
    %540 = vmatpush1.msra.mxu0 0.0
    %541 = vmatprep.subr.mxu0 0.0
    %542 = vmatpush1.msra.mxu0 0.0
    %543 = vmatprep.subr.mxu0 0.0
    %544 = vmatpush1.msra.mxu0 0.0
    %545 = vmatprep.subr.mxu0 0.0
    %546 = vmatpush1.msra.mxu0 0.0
    %547 = vmatprep.subr.mxu0 0.0
    %548 = vmatpush1.msra.mxu0 0.0
    %549 = vmatprep.subr.mxu0 0.0
    %550 = vmatpush1.msra.mxu0 0.0
    %551 = vmatprep.subr.mxu0 0.0
    %552 = vmatpush1.msra.mxu0 0.0
    %553 = vmatprep.subr.mxu0 0.0
    %554 = vmatpush1.msra.mxu0 0.0
    %555 = vmatprep.subr.mxu0 0.0
    %556 = vmatpush1.msra.mxu0 %v502
    %557 = vmatprep.subr.mxu0 0.0
    %558 = vmatpush1.msra.mxu0 %v501
    %559 = vmatprep.subr.mxu0 0.0
    %560 = vmatpush1.msra.mxu0 %v500
    %561 = vmatprep.subr.mxu0 0.0
    %562 = vmatpush1.msra.mxu0 %v499
    %563 = vmatprep.subr.mxu0 0.0
    %564 = vmatpush2.msra.mxu0 0.0
    %565 = vmatprep.subr.mxu0 0.0
    %566 = vmatpush2.msra.mxu0 0.0
    %567 = vmatprep.subr.mxu0 0.0
    %568 = vmatpush2.msra.mxu0 0.0
    %569 = vmatprep.subr.mxu0 0.0
    %570 = vmatpush2.msra.mxu0 0.0
    %571 = vmatprep.subr.mxu0 0.0
    %572 = vmatpush2.msra.mxu0 0.0
    %573 = vmatprep.subr.mxu0 0.0
    %574 = vmatpush2.msra.mxu0 0.0
    %575 = vmatprep.subr.mxu0 0.0
    %576 = vmatpush2.msra.mxu0 0.0
    %577 = vmatprep.subr.mxu0 0.0
    %578 = vmatpush2.msra.mxu0 0.0
    %579 = vmatprep.subr.mxu0 0.0
    %580 = vmatpush2.msra.mxu0 0.0
    %581 = vmatprep.subr.mxu0 0.0
    %582 = vmatpush2.msra.mxu0 0.0
    %583 = vmatprep.subr.mxu0 0.0
    %584 = vmatpush2.msra.mxu0 0.0
    %585 = vmatprep.subr.mxu0 0.0
    %586 = vmatpush2.msra.mxu0 0.0
    %587 = vmatprep.subr.mxu0 0.0
    %588 = vmatpush2.msra.mxu0 0.0
    %589 = vmatprep.subr.mxu0 0.0
    %590 = vmatpush2.msra.mxu0 0.0
    %591 = vmatprep.subr.mxu0 0.0
    %592 = vmatpush2.msra.mxu0 0.0
    %593 = vmatprep.subr.mxu0 0.0
    %594 = vmatpush2.msra.mxu0 0.0
    %595 = vmatprep.mubr.f32.mxu0 0.0
    %596 = vmatmul.mubr.f32.gmra.mxu0 %v511
    %v597 = vpop.f32.mrf.mxu0
    %v598 = vadd.f32 %v508, %v597
    %v599 = vpop.f32.mrf.mxu0
    %600 = vmatprep.mubr.f32.mxu0 0.0
    %601 = vmatmul.mubr.f32.gmra.mxu0 %v514
    %v602 = vpop.f32.mrf.mxu0
    %v603 = vadd.f32 %v508, %v602
    %v604 = vpop.f32.mrf.mxu0
    %605 = vmatprep.mubr.f32.mxu0 0.0
    %606 = vmatmul.mubr.f32.gmra.mxu0 %v517
    %v607 = vpop.f32.mrf.mxu0
    %v608 = vadd.f32 %v508, %v607
    %v609 = vpop.f32.mrf.mxu0
    %610 = vmatprep.mubr.f32.mxu0 0.0
    %611 = vmatmul.mubr.f32.gmra.mxu0 %v520
    %v612 = vpop.f32.mrf.mxu0
    %v613 = vadd.f32 %v508, %v612
    %v614 = vpop.f32.mrf.mxu0
    %615 = vmatprep.mubr.f32.mxu0 0.0
    %616 = vmatmul.mubr.f32.gmra.mxu0 %v523
    %v617 = vpop.f32.mrf.mxu0
    %v618 = vadd.f32 %v508, %v617
    %v619 = vpop.f32.mrf.mxu0
    %620 = vmatprep.mubr.f32.mxu0 0.0
    %621 = vmatmul.mubr.f32.gmra.mxu0 %v526
    %v622 = vpop.f32.mrf.mxu0
    %v623 = vadd.f32 %v508, %v622
    %v624 = vpop.f32.mrf.mxu0
    %625 = vmatprep.mubr.f32.mxu0 0.0
    %626 = vmatmul.mubr.f32.gmra.mxu0 %v529
    %v627 = vpop.f32.mrf.mxu0
    %v628 = vadd.f32 %v508, %v627
    %v629 = vpop.f32.mrf.mxu0
    %630 = vdwg.mxu0
    %638 = vrot.lane.b32.xlu0 %v598, 96
    %v639 = vpop.permute.xlu0 %638
    %640 = vrot.lane.b32.xlu0 %v603, 96
    %v641 = vpop.permute.xlu0 %640
    %642 = vrot.lane.b32.xlu0 %v608, 96
    %v643 = vpop.permute.xlu0 %642
    %644 = vrot.lane.b32.xlu0 %v613, 96
    %v645 = vpop.permute.xlu0 %644
    %646 = vrot.lane.b32.xlu0 %v618, 96
    %v647 = vpop.permute.xlu0 %646
    %648 = vrot.lane.b32.xlu0 %v623, 96
    %v649 = vpop.permute.xlu0 %648
    %650 = vrot.lane.b32.xlu0 %v628, 96
    %v651 = vpop.permute.xlu0 %650
    %v652 = vsel %vm83, %v598, 0
    %v654 = vsel %vm83, %v603, 0
    %v656 = vsel %vm83, %v608, 0
    %v658 = vsel %vm83, %v613, 0
    %v660 = vsel %vm83, %v618, 0
    %v662 = vsel %vm83, %v623, 0
    %v664 = vsel %vm83, %v628, 0
    %v666 = vsel %vm83, %v639, 0
    %v668 = vsel %vm83, %v641, 0
    %v670 = vsel %vm83, %v643, 0
    %v672 = vsel %vm83, %v645, 0
    %v674 = vsel %vm83, %v647, 0
    %v676 = vsel %vm83, %v649, 0
    %v678 = vsel %vm83, %v651, 0
    %680 = vmatprep.subr.mxu0 0.0
    %681 = vmatpush1.xpose.msra.mxu0 0.0
    %682 = vmatprep.subr.mxu0 0.0
    %683 = vmatpush1.xpose.msra.mxu0 0.0
    %684 = vmatprep.subr.mxu0 0.0
    %685 = vmatpush1.xpose.msra.mxu0 0.0
    %686 = vmatprep.subr.mxu0 0.0
    %687 = vmatpush1.xpose.msra.mxu0 0.0
    %688 = vmatprep.subr.mxu0 0.0
    %689 = vmatpush1.xpose.msra.mxu0 0.0
    %690 = vmatprep.subr.mxu0 0.0
    %691 = vmatpush1.xpose.msra.mxu0 0.0
    %692 = vmatprep.subr.mxu0 0.0
    %693 = vmatpush1.xpose.msra.mxu0 0.0
    %694 = vmatprep.subr.mxu0 0.0
    %695 = vmatpush1.xpose.msra.mxu0 0.0
    %696 = vmatprep.subr.mxu0 0.0
    %697 = vmatpush1.xpose.msra.mxu0 0.0
    %698 = vmatprep.subr.mxu0 0.0
    %699 = vmatpush1.xpose.msra.mxu0 %v678
    %700 = vmatprep.subr.mxu0 0.0
    %701 = vmatpush1.xpose.msra.mxu0 %v676
    %702 = vmatprep.subr.mxu0 0.0
    %703 = vmatpush1.xpose.msra.mxu0 %v674
    %704 = vmatprep.subr.mxu0 0.0
    %705 = vmatpush1.xpose.msra.mxu0 %v672
    %706 = vmatprep.subr.mxu0 0.0
    %707 = vmatpush1.xpose.msra.mxu0 %v670
    %708 = vmatprep.subr.mxu0 0.0
    %709 = vmatpush1.xpose.msra.mxu0 %v668
    %710 = vmatprep.subr.mxu0 0.0
    %711 = vmatpush1.xpose.msra.mxu0 %v666
    %712 = vmatprep.subr.mxu0 0.0
    %713 = vmatpush2.xpose.msra.mxu0 0.0
    %714 = vmatprep.subr.mxu0 0.0
    %715 = vmatpush2.xpose.msra.mxu0 0.0
    %716 = vmatprep.subr.mxu0 0.0
    %717 = vmatpush2.xpose.msra.mxu0 0.0
    %718 = vmatprep.subr.mxu0 0.0
    %719 = vmatpush2.xpose.msra.mxu0 0.0
    %720 = vmatprep.subr.mxu0 0.0
    %721 = vmatpush2.xpose.msra.mxu0 0.0
    %722 = vmatprep.subr.mxu0 0.0
    %723 = vmatpush2.xpose.msra.mxu0 0.0
    %724 = vmatprep.subr.mxu0 0.0
    %725 = vmatpush2.xpose.msra.mxu0 0.0
    %726 = vmatprep.subr.mxu0 0.0
    %727 = vmatpush2.xpose.msra.mxu0 0.0
    %728 = vmatprep.subr.mxu0 0.0
    %729 = vmatpush2.xpose.msra.mxu0 0.0
    %730 = vmatprep.subr.mxu0 0.0
    %731 = vmatpush2.xpose.msra.mxu0 0.0
    %732 = vmatprep.subr.mxu0 0.0
    %733 = vmatpush2.xpose.msra.mxu0 0.0
    %734 = vmatprep.subr.mxu0 0.0
    %735 = vmatpush2.xpose.msra.mxu0 0.0
    %736 = vmatprep.subr.mxu0 0.0
    %737 = vmatpush2.xpose.msra.mxu0 0.0
    %738 = vmatprep.subr.mxu0 0.0
    %739 = vmatpush2.xpose.msra.mxu0 0.0
    %740 = vmatprep.subr.mxu0 0.0
    %741 = vmatpush2.xpose.msra.mxu0 0.0
    %742 = vmatprep.subr.mxu0 0.0
    %743 = vmatpush2.xpose.msra.mxu0 0.0
    %744 = vmatprep.mubr.f32.mxu0 0.0
    %745 = vmatmul.mubr.f32.gmra.mxu0 %v652
    %v746 = vpop.f32.mrf.mxu0
    %v747 = vadd.f32 %v376, %v746
    %v748 = vpop.f32.mrf.mxu0
    %749 = vmatprep.mubr.f32.mxu0 0.0
    %750 = vmatmul.mubr.f32.gmra.mxu0 %v654
    %v751 = vpop.f32.mrf.mxu0
    %v752 = vadd.f32 %v377, %v751
    %v753 = vpop.f32.mrf.mxu0
    %754 = vmatprep.mubr.f32.mxu0 0.0
    %755 = vmatmul.mubr.f32.gmra.mxu0 %v656
    %v756 = vpop.f32.mrf.mxu0
    %v757 = vadd.f32 %v378, %v756
    %v758 = vpop.f32.mrf.mxu0
    %759 = vmatprep.mubr.f32.mxu0 0.0
    %760 = vmatmul.mubr.f32.gmra.mxu0 %v658
    %v761 = vpop.f32.mrf.mxu0
    %v762 = vadd.f32 %v379, %v761
    %v763 = vpop.f32.mrf.mxu0
    %764 = vmatprep.mubr.f32.mxu0 0.0
    %765 = vmatmul.mubr.f32.gmra.mxu0 %v660
    %v766 = vpop.f32.mrf.mxu0
    %v767 = vadd.f32 %v380, %v766
    %v768 = vpop.f32.mrf.mxu0
    %769 = vmatprep.mubr.f32.mxu0 0.0
    %770 = vmatmul.mubr.f32.gmra.mxu0 %v662
    %v771 = vpop.f32.mrf.mxu0
    %v772 = vadd.f32 %v381, %v771
    %v773 = vpop.f32.mrf.mxu0
    %774 = vmatprep.mubr.f32.mxu0 0.0
    %775 = vmatmul.mubr.f32.gmra.mxu0 %v664
    %v776 = vpop.f32.mrf.mxu0
    %v777 = vadd.f32 %v382, %v776
    %v778 = vpop.f32.mrf.mxu0
    %779 = vdwg.mxu0
    %vm780 = vcmask 424960
    %v781 = vsel %vm780, %v747, -inf
    %782 = vmax.xlane.f32.xlu0 %v781
    %v783 = vpop.xlane.xlu0 %782
    %v784 = vsel %vm780, %v752, -inf
    %785 = vmax.xlane.f32.xlu0 %v784
    %v786 = vpop.xlane.xlu0 %785
    %v787 = vsel %vm780, %v757, -inf
    %788 = vmax.xlane.f32.xlu0 %v787
    %v789 = vpop.xlane.xlu0 %788
    %v790 = vsel %vm780, %v762, -inf
    %791 = vmax.xlane.f32.xlu0 %v790
    %v792 = vpop.xlane.xlu0 %791
    %v793 = vsel %vm780, %v767, -inf
    %794 = vmax.xlane.f32.xlu0 %v793
    %v795 = vpop.xlane.xlu0 %794
    %v796 = vsel %vm780, %v772, -inf
    %797 = vmax.xlane.f32.xlu0 %v796
    %v798 = vpop.xlane.xlu0 %797
    %vm799 = vcmask 420864
    %v800 = vsel %vm799, %v777, -inf
    %801 = vmax.xlane.f32.xlu0 %v800
    %v802 = vpop.xlane.xlu0 %801
    %v803 = vsub.f32 %v747, %v783
    %v804 = vsub.f32 %v752, %v786
    %v805 = vsub.f32 %v757, %v789
    %v806 = vsub.f32 %v762, %v792
    %v807 = vsub.f32 %v767, %v795
    %v808 = vsub.f32 %v772, %v798
    %v809 = vsub.f32 %v777, %v802
    %v810 = vmul.f32 %v803, 1.442695
    %v811 = vpow.pop %v810
    %v812 = vmul.f32 %v804, 1.442695
    %v813 = vpow.pop %v812
    %v814 = vmul.f32 %v805, 1.442695
    %v815 = vpow.pop %v814
    %v816 = vmul.f32 %v806, 1.442695
    %v817 = vpow.pop %v816
    %v818 = vmul.f32 %v807, 1.442695
    %v819 = vpow.pop %v818
    %v820 = vmul.f32 %v808, 1.442695
    %v821 = vpow.pop %v820
    %v822 = vmul.f32 %v809, 1.442695
    %v823 = vpow.pop %v822
    %v824 = vsel %vm780, %v811, 0.0
    %825 = vadd.xlane.f32.xlu0 %v824
    %v826 = vpop.xlane.xlu0 %825
    %v827 = vsel %vm780, %v813, 0.0
    %828 = vadd.xlane.f32.xlu0 %v827
    %v829 = vpop.xlane.xlu0 %828
    %v830 = vsel %vm780, %v815, 0.0
    %831 = vadd.xlane.f32.xlu0 %v830
    %v832 = vpop.xlane.xlu0 %831
    %v833 = vsel %vm780, %v817, 0.0
    %834 = vadd.xlane.f32.xlu0 %v833
    %v835 = vpop.xlane.xlu0 %834
    %v836 = vsel %vm780, %v819, 0.0
    %837 = vadd.xlane.f32.xlu0 %v836
    %v838 = vpop.xlane.xlu0 %837
    %v839 = vsel %vm780, %v821, 0.0
    %840 = vadd.xlane.f32.xlu0 %v839
    %v841 = vpop.xlane.xlu0 %840
    %v842 = vsel %vm799, %v823, 0.0
    %843 = vadd.xlane.f32.xlu0 %v842
    %v844 = vpop.xlane.xlu0 %843
    %845 = vrot.lane.b32.xlu0 %v598, 64
    %v846 = vpop.permute.xlu0 %845
    %847 = vrot.lane.b32.xlu0 %v603, 64
    %v848 = vpop.permute.xlu0 %847
    %849 = vrot.lane.b32.xlu0 %v608, 64
    %v850 = vpop.permute.xlu0 %849
    %851 = vrot.lane.b32.xlu0 %v613, 64
    %v852 = vpop.permute.xlu0 %851
    %853 = vrot.lane.b32.xlu0 %v618, 64
    %v854 = vpop.permute.xlu0 %853
    %855 = vrot.lane.b32.xlu0 %v623, 64
    %v856 = vpop.permute.xlu0 %855
    %857 = vrot.lane.b32.xlu0 %v628, 64
    %v858 = vpop.permute.xlu0 %857
    %v866 = vsel %vm780, %v811, 0
    %v869 = vsel %vm780, %v813, 0
    %v872 = vsel %vm780, %v815, 0
    %v875 = vsel %vm780, %v817, 0
    %v878 = vsel %vm780, %v819, 0
    %v881 = vsel %vm780, %v821, 0
    %v884 = vsel %vm780, %v823, 0
    %vm886 = vcmask 1043456
    %v887 = vsel %vm886, %v858, 0
    %889 = vmatprep.subr.mxu0 0.0
    %890 = vmatpush1.msra.mxu0 0.0
    %891 = vmatprep.subr.mxu0 0.0
    %892 = vmatpush1.msra.mxu0 0.0
    %893 = vmatprep.subr.mxu0 0.0
    %894 = vmatpush1.msra.mxu0 0.0
    %895 = vmatprep.subr.mxu0 0.0
    %896 = vmatpush1.msra.mxu0 0.0
    %897 = vmatprep.subr.mxu0 0.0
    %898 = vmatpush1.msra.mxu0 0.0
    %899 = vmatprep.subr.mxu0 0.0
    %900 = vmatpush1.msra.mxu0 0.0
    %901 = vmatprep.subr.mxu0 0.0
    %902 = vmatpush1.msra.mxu0 0.0
    %903 = vmatprep.subr.mxu0 0.0
    %904 = vmatpush1.msra.mxu0 0.0
    %905 = vmatprep.subr.mxu0 0.0
    %906 = vmatpush1.msra.mxu0 0.0
    %907 = vmatprep.subr.mxu0 0.0
    %908 = vmatpush1.msra.mxu0 %v887
    %909 = vmatprep.subr.mxu0 0.0
    %910 = vmatpush1.msra.mxu0 %v856
    %911 = vmatprep.subr.mxu0 0.0
    %912 = vmatpush1.msra.mxu0 %v854
    %913 = vmatprep.subr.mxu0 0.0
    %914 = vmatpush1.msra.mxu0 %v852
    %915 = vmatprep.subr.mxu0 0.0
    %916 = vmatpush1.msra.mxu0 %v850
    %917 = vmatprep.subr.mxu0 0.0
    %918 = vmatpush1.msra.mxu0 %v848
    %919 = vmatprep.subr.mxu0 0.0
    %920 = vmatpush1.msra.mxu0 %v846
    %921 = vmatprep.subr.mxu0 0.0
    %922 = vmatpush2.msra.mxu0 0.0
    %923 = vmatprep.subr.mxu0 0.0
    %924 = vmatpush2.msra.mxu0 0.0
    %925 = vmatprep.subr.mxu0 0.0
    %926 = vmatpush2.msra.mxu0 0.0
    %927 = vmatprep.subr.mxu0 0.0
    %928 = vmatpush2.msra.mxu0 0.0
    %929 = vmatprep.subr.mxu0 0.0
    %930 = vmatpush2.msra.mxu0 0.0
    %931 = vmatprep.subr.mxu0 0.0
    %932 = vmatpush2.msra.mxu0 0.0
    %933 = vmatprep.subr.mxu0 0.0
    %934 = vmatpush2.msra.mxu0 0.0
    %935 = vmatprep.subr.mxu0 0.0
    %936 = vmatpush2.msra.mxu0 0.0
    %937 = vmatprep.subr.mxu0 0.0
    %938 = vmatpush2.msra.mxu0 0.0
    %939 = vmatprep.subr.mxu0 0.0
    %940 = vmatpush2.msra.mxu0 0.0
    %941 = vmatprep.subr.mxu0 0.0
    %942 = vmatpush2.msra.mxu0 0.0
    %943 = vmatprep.subr.mxu0 0.0
    %944 = vmatpush2.msra.mxu0 0.0
    %945 = vmatprep.subr.mxu0 0.0
    %946 = vmatpush2.msra.mxu0 0.0
    %947 = vmatprep.subr.mxu0 0.0
    %948 = vmatpush2.msra.mxu0 0.0
    %949 = vmatprep.subr.mxu0 0.0
    %950 = vmatpush2.msra.mxu0 0.0
    %951 = vmatprep.subr.mxu0 0.0
    %952 = vmatpush2.msra.mxu0 0.0
    %953 = vmatprep.mubr.f32.mxu0 0.0
    %954 = vmatmul.mubr.f32.gmra.mxu0 %v866
    %v955 = vpop.f32.mrf.mxu0
    %v956 = vadd.f32 0.0, %v955
    %v957 = vpop.f32.mrf.mxu0
    %958 = vmatprep.mubr.f32.mxu0 0.0
    %959 = vmatmul.mubr.f32.gmra.mxu0 %v869
    %v960 = vpop.f32.mrf.mxu0
    %v961 = vadd.f32 0.0, %v960
    %v962 = vpop.f32.mrf.mxu0
    %963 = vmatprep.mubr.f32.mxu0 0.0
    %964 = vmatmul.mubr.f32.gmra.mxu0 %v872
    %v965 = vpop.f32.mrf.mxu0
    %v966 = vadd.f32 0.0, %v965
    %v967 = vpop.f32.mrf.mxu0
    %968 = vmatprep.mubr.f32.mxu0 0.0
    %969 = vmatmul.mubr.f32.gmra.mxu0 %v875
    %v970 = vpop.f32.mrf.mxu0
    %v971 = vadd.f32 0.0, %v970
    %v972 = vpop.f32.mrf.mxu0
    %973 = vmatprep.mubr.f32.mxu0 0.0
    %974 = vmatmul.mubr.f32.gmra.mxu0 %v878
    %v975 = vpop.f32.mrf.mxu0
    %v976 = vadd.f32 0.0, %v975
    %v977 = vpop.f32.mrf.mxu0
    %978 = vmatprep.mubr.f32.mxu0 0.0
    %979 = vmatmul.mubr.f32.gmra.mxu0 %v881
    %v980 = vpop.f32.mrf.mxu0
    %v981 = vadd.f32 0.0, %v980
    %v982 = vpop.f32.mrf.mxu0
    %983 = vmatprep.mubr.f32.mxu0 0.0
    %984 = vmatmul.mubr.f32.gmra.mxu0 %v884
    %v985 = vpop.f32.mrf.mxu0
    %v986 = vadd.f32 0.0, %v985
    %v987 = vpop.f32.mrf.mxu0
    %988 = vdwg.mxu0
    %v989 = vrcp.pop %v826
    %v990 = vrcp.pop %v829
    %v991 = vrcp.pop %v832
    %v992 = vrcp.pop %v835
    %v993 = vrcp.pop %v838
    %v994 = vrcp.pop %v841
    %v995 = vrcp.pop %v844
    %v996 = vmul.f32 %v956, %v989
    %v997 = vmul.f32 %v961, %v990
    %v998 = vmul.f32 %v966, %v991
    %v999 = vmul.f32 %v971, %v992
    %v1000 = vmul.f32 %v976, %v993
    %v1001 = vmul.f32 %v981, %v994
    %v1002 = vmul.f32 %v986, %v995
    %1003 = vrot.lane.b32.xlu0 %v598, 112
    %v1004 = vpop.permute.xlu0 %1003
    %1005 = vrot.lane.b32.xlu0 %v603, 112
    %v1006 = vpop.permute.xlu0 %1005
    %1007 = vrot.lane.b32.xlu0 %v608, 112
    %v1008 = vpop.permute.xlu0 %1007
    %1009 = vrot.lane.b32.xlu0 %v613, 112
    %v1010 = vpop.permute.xlu0 %1009
    %1011 = vrot.lane.b32.xlu0 %v618, 112
    %v1012 = vpop.permute.xlu0 %1011
    %1013 = vrot.lane.b32.xlu0 %v623, 112
    %v1014 = vpop.permute.xlu0 %1013
    %1015 = vrot.lane.b32.xlu0 %v628, 112
    %v1016 = vpop.permute.xlu0 %1015
    %1017 = vrot.lane.b32.xlu0 %v598, 80
    %v1018 = vpop.permute.xlu0 %1017
    %1019 = vrot.lane.b32.xlu0 %v603, 80
    %v1020 = vpop.permute.xlu0 %1019
    %1021 = vrot.lane.b32.xlu0 %v608, 80
    %v1022 = vpop.permute.xlu0 %1021
    %1023 = vrot.lane.b32.xlu0 %v613, 80
    %v1024 = vpop.permute.xlu0 %1023
    %1025 = vrot.lane.b32.xlu0 %v618, 80
    %v1026 = vpop.permute.xlu0 %1025
    %1027 = vrot.lane.b32.xlu0 %v623, 80
    %v1028 = vpop.permute.xlu0 %1027
    %1029 = vrot.lane.b32.xlu0 %v628, 80
    %v1030 = vpop.permute.xlu0 %1029
    %v1031 = vsel %vm83, %v1004, 0
    %v1033 = vsel %vm83, %v1006, 0
    %v1035 = vsel %vm83, %v1008, 0
    %v1037 = vsel %vm83, %v1010, 0
    %v1039 = vsel %vm83, %v1012, 0
    %v1041 = vsel %vm83, %v1014, 0
    %v1043 = vsel %vm83, %v1016, 0
    %v1045 = vsel %vm83, %v1018, 0
    %v1047 = vsel %vm83, %v1020, 0
    %v1049 = vsel %vm83, %v1022, 0
    %v1051 = vsel %vm83, %v1024, 0
    %v1053 = vsel %vm83, %v1026, 0
    %v1055 = vsel %vm83, %v1028, 0
    %v1057 = vsel %vm83, %v1030, 0
    %1059 = vmatprep.subr.mxu0 0.0
    %1060 = vmatpush1.xpose.msra.mxu0 0.0
    %1061 = vmatprep.subr.mxu0 0.0
    %1062 = vmatpush1.xpose.msra.mxu0 0.0
    %1063 = vmatprep.subr.mxu0 0.0
    %1064 = vmatpush1.xpose.msra.mxu0 0.0
    %1065 = vmatprep.subr.mxu0 0.0
    %1066 = vmatpush1.xpose.msra.mxu0 0.0
    %1067 = vmatprep.subr.mxu0 0.0
    %1068 = vmatpush1.xpose.msra.mxu0 0.0
    %1069 = vmatprep.subr.mxu0 0.0
    %1070 = vmatpush1.xpose.msra.mxu0 0.0
    %1071 = vmatprep.subr.mxu0 0.0
    %1072 = vmatpush1.xpose.msra.mxu0 0.0
    %1073 = vmatprep.subr.mxu0 0.0
    %1074 = vmatpush1.xpose.msra.mxu0 0.0
    %1075 = vmatprep.subr.mxu0 0.0
    %1076 = vmatpush1.xpose.msra.mxu0 0.0
    %1077 = vmatprep.subr.mxu0 0.0
    %1078 = vmatpush1.xpose.msra.mxu0 %v1057
    %1079 = vmatprep.subr.mxu0 0.0
    %1080 = vmatpush1.xpose.msra.mxu0 %v1055
    %1081 = vmatprep.subr.mxu0 0.0
    %1082 = vmatpush1.xpose.msra.mxu0 %v1053
    %1083 = vmatprep.subr.mxu0 0.0
    %1084 = vmatpush1.xpose.msra.mxu0 %v1051
    %1085 = vmatprep.subr.mxu0 0.0
    %1086 = vmatpush1.xpose.msra.mxu0 %v1049
    %1087 = vmatprep.subr.mxu0 0.0
    %1088 = vmatpush1.xpose.msra.mxu0 %v1047
    %1089 = vmatprep.subr.mxu0 0.0
    %1090 = vmatpush1.xpose.msra.mxu0 %v1045
    %1091 = vmatprep.subr.mxu0 0.0
    %1092 = vmatpush2.xpose.msra.mxu0 0.0
    %1093 = vmatprep.subr.mxu0 0.0
    %1094 = vmatpush2.xpose.msra.mxu0 0.0
    %1095 = vmatprep.subr.mxu0 0.0
    %1096 = vmatpush2.xpose.msra.mxu0 0.0
    %1097 = vmatprep.subr.mxu0 0.0
    %1098 = vmatpush2.xpose.msra.mxu0 0.0
    %1099 = vmatprep.subr.mxu0 0.0
    %1100 = vmatpush2.xpose.msra.mxu0 0.0
    %1101 = vmatprep.subr.mxu0 0.0
    %1102 = vmatpush2.xpose.msra.mxu0 0.0
    %1103 = vmatprep.subr.mxu0 0.0
    %1104 = vmatpush2.xpose.msra.mxu0 0.0
    %1105 = vmatprep.subr.mxu0 0.0
    %1106 = vmatpush2.xpose.msra.mxu0 0.0
    %1107 = vmatprep.subr.mxu0 0.0
    %1108 = vmatpush2.xpose.msra.mxu0 0.0
    %1109 = vmatprep.subr.mxu0 0.0
    %1110 = vmatpush2.xpose.msra.mxu0 0.0
    %1111 = vmatprep.subr.mxu0 0.0
    %1112 = vmatpush2.xpose.msra.mxu0 0.0
    %1113 = vmatprep.subr.mxu0 0.0
    %1114 = vmatpush2.xpose.msra.mxu0 0.0
    %1115 = vmatprep.subr.mxu0 0.0
    %1116 = vmatpush2.xpose.msra.mxu0 0.0
    %1117 = vmatprep.subr.mxu0 0.0
    %1118 = vmatpush2.xpose.msra.mxu0 0.0
    %1119 = vmatprep.subr.mxu0 0.0
    %1120 = vmatpush2.xpose.msra.mxu0 0.0
    %1121 = vmatprep.subr.mxu0 0.0
    %1122 = vmatpush2.xpose.msra.mxu0 0.0
    %1123 = vmatprep.mubr.f32.mxu0 0.0
    %1124 = vmatmul.mubr.f32.gmra.mxu0 %v1031
    %v1125 = vpop.f32.mrf.mxu0
    %v1126 = vadd.f32 %v376, %v1125
    %v1127 = vpop.f32.mrf.mxu0
    %1128 = vmatprep.mubr.f32.mxu0 0.0
    %1129 = vmatmul.mubr.f32.gmra.mxu0 %v1033
    %v1130 = vpop.f32.mrf.mxu0
    %v1131 = vadd.f32 %v377, %v1130
    %v1132 = vpop.f32.mrf.mxu0
    %1133 = vmatprep.mubr.f32.mxu0 0.0
    %1134 = vmatmul.mubr.f32.gmra.mxu0 %v1035
    %v1135 = vpop.f32.mrf.mxu0
    %v1136 = vadd.f32 %v378, %v1135
    %v1137 = vpop.f32.mrf.mxu0
    %1138 = vmatprep.mubr.f32.mxu0 0.0
    %1139 = vmatmul.mubr.f32.gmra.mxu0 %v1037
    %v1140 = vpop.f32.mrf.mxu0
    %v1141 = vadd.f32 %v379, %v1140
    %v1142 = vpop.f32.mrf.mxu0
    %1143 = vmatprep.mubr.f32.mxu0 0.0
    %1144 = vmatmul.mubr.f32.gmra.mxu0 %v1039
    %v1145 = vpop.f32.mrf.mxu0
    %v1146 = vadd.f32 %v380, %v1145
    %v1147 = vpop.f32.mrf.mxu0
    %1148 = vmatprep.mubr.f32.mxu0 0.0
    %1149 = vmatmul.mubr.f32.gmra.mxu0 %v1041
    %v1150 = vpop.f32.mrf.mxu0
    %v1151 = vadd.f32 %v381, %v1150
    %v1152 = vpop.f32.mrf.mxu0
    %1153 = vmatprep.mubr.f32.mxu0 0.0
    %1154 = vmatmul.mubr.f32.gmra.mxu0 %v1043
    %v1155 = vpop.f32.mrf.mxu0
    %v1156 = vadd.f32 %v382, %v1155
    %v1157 = vpop.f32.mrf.mxu0
    %1158 = vdwg.mxu0
    %v1159 = vsel %vm780, %v1126, -inf
    %1160 = vmax.xlane.f32.xlu0 %v1159
    %v1161 = vpop.xlane.xlu0 %1160
    %v1162 = vsel %vm780, %v1131, -inf
    %1163 = vmax.xlane.f32.xlu0 %v1162
    %v1164 = vpop.xlane.xlu0 %1163
    %v1165 = vsel %vm780, %v1136, -inf
    %1166 = vmax.xlane.f32.xlu0 %v1165
    %v1167 = vpop.xlane.xlu0 %1166
    %v1168 = vsel %vm780, %v1141, -inf
    %1169 = vmax.xlane.f32.xlu0 %v1168
    %v1170 = vpop.xlane.xlu0 %1169
    %v1171 = vsel %vm780, %v1146, -inf
    %1172 = vmax.xlane.f32.xlu0 %v1171
    %v1173 = vpop.xlane.xlu0 %1172
    %v1174 = vsel %vm780, %v1151, -inf
    %1175 = vmax.xlane.f32.xlu0 %v1174
    %v1176 = vpop.xlane.xlu0 %1175
    %v1177 = vsel %vm799, %v1156, -inf
    %1178 = vmax.xlane.f32.xlu0 %v1177
    %v1179 = vpop.xlane.xlu0 %1178
    %v1180 = vsub.f32 %v1126, %v1161
    %v1181 = vsub.f32 %v1131, %v1164
    %v1182 = vsub.f32 %v1136, %v1167
    %v1183 = vsub.f32 %v1141, %v1170
    %v1184 = vsub.f32 %v1146, %v1173
    %v1185 = vsub.f32 %v1151, %v1176
    %v1186 = vsub.f32 %v1156, %v1179
    %v1187 = vmul.f32 %v1180, 1.442695
    %v1188 = vpow.pop %v1187
    %v1189 = vmul.f32 %v1181, 1.442695
    %v1190 = vpow.pop %v1189
    %v1191 = vmul.f32 %v1182, 1.442695
    %v1192 = vpow.pop %v1191
    %v1193 = vmul.f32 %v1183, 1.442695
    %v1194 = vpow.pop %v1193
    %v1195 = vmul.f32 %v1184, 1.442695
    %v1196 = vpow.pop %v1195
    %v1197 = vmul.f32 %v1185, 1.442695
    %v1198 = vpow.pop %v1197
    %v1199 = vmul.f32 %v1186, 1.442695
    %v1200 = vpow.pop %v1199
    %v1201 = vsel %vm780, %v1188, 0.0
    %1202 = vadd.xlane.f32.xlu0 %v1201
    %v1203 = vpop.xlane.xlu0 %1202
    %v1204 = vsel %vm780, %v1190, 0.0
    %1205 = vadd.xlane.f32.xlu0 %v1204
    %v1206 = vpop.xlane.xlu0 %1205
    %v1207 = vsel %vm780, %v1192, 0.0
    %1208 = vadd.xlane.f32.xlu0 %v1207
    %v1209 = vpop.xlane.xlu0 %1208
    %v1210 = vsel %vm780, %v1194, 0.0
    %1211 = vadd.xlane.f32.xlu0 %v1210
    %v1212 = vpop.xlane.xlu0 %1211
    %v1213 = vsel %vm780, %v1196, 0.0
    %1214 = vadd.xlane.f32.xlu0 %v1213
    %v1215 = vpop.xlane.xlu0 %1214
    %v1216 = vsel %vm780, %v1198, 0.0
    %1217 = vadd.xlane.f32.xlu0 %v1216
    %v1218 = vpop.xlane.xlu0 %1217
    %v1219 = vsel %vm799, %v1200, 0.0
    %1220 = vadd.xlane.f32.xlu0 %v1219
    %v1221 = vpop.xlane.xlu0 %1220
    %1222 = vrot.lane.b32.xlu0 %v598, 48
    %v1223 = vpop.permute.xlu0 %1222
    %1224 = vrot.lane.b32.xlu0 %v603, 48
    %v1225 = vpop.permute.xlu0 %1224
    %1226 = vrot.lane.b32.xlu0 %v608, 48
    %v1227 = vpop.permute.xlu0 %1226
    %1228 = vrot.lane.b32.xlu0 %v613, 48
    %v1229 = vpop.permute.xlu0 %1228
    %1230 = vrot.lane.b32.xlu0 %v618, 48
    %v1231 = vpop.permute.xlu0 %1230
    %1232 = vrot.lane.b32.xlu0 %v623, 48
    %v1233 = vpop.permute.xlu0 %1232
    %1234 = vrot.lane.b32.xlu0 %v628, 48
    %v1235 = vpop.permute.xlu0 %1234
    %v1243 = vsel %vm780, %v1188, 0
    %v1246 = vsel %vm780, %v1190, 0
    %v1249 = vsel %vm780, %v1192, 0
    %v1252 = vsel %vm780, %v1194, 0
    %v1255 = vsel %vm780, %v1196, 0
    %v1258 = vsel %vm780, %v1198, 0
    %v1261 = vsel %vm780, %v1200, 0
    %v1263 = vsel %vm886, %v1235, 0
    %1265 = vmatprep.subr.mxu0 0.0
    %1266 = vmatpush1.msra.mxu0 0.0
    %1267 = vmatprep.subr.mxu0 0.0
    %1268 = vmatpush1.msra.mxu0 0.0
    %1269 = vmatprep.subr.mxu0 0.0
    %1270 = vmatpush1.msra.mxu0 0.0
    %1271 = vmatprep.subr.mxu0 0.0
    %1272 = vmatpush1.msra.mxu0 0.0
    %1273 = vmatprep.subr.mxu0 0.0
    %1274 = vmatpush1.msra.mxu0 0.0
    %1275 = vmatprep.subr.mxu0 0.0
    %1276 = vmatpush1.msra.mxu0 0.0
    %1277 = vmatprep.subr.mxu0 0.0
    %1278 = vmatpush1.msra.mxu0 0.0
    %1279 = vmatprep.subr.mxu0 0.0
    %1280 = vmatpush1.msra.mxu0 0.0
    %1281 = vmatprep.subr.mxu0 0.0
    %1282 = vmatpush1.msra.mxu0 0.0
    %1283 = vmatprep.subr.mxu0 0.0
    %1284 = vmatpush1.msra.mxu0 %v1263
    %1285 = vmatprep.subr.mxu0 0.0
    %1286 = vmatpush1.msra.mxu0 %v1233
    %1287 = vmatprep.subr.mxu0 0.0
    %1288 = vmatpush1.msra.mxu0 %v1231
    %1289 = vmatprep.subr.mxu0 0.0
    %1290 = vmatpush1.msra.mxu0 %v1229
    %1291 = vmatprep.subr.mxu0 0.0
    %1292 = vmatpush1.msra.mxu0 %v1227
    %1293 = vmatprep.subr.mxu0 0.0
    %1294 = vmatpush1.msra.mxu0 %v1225
    %1295 = vmatprep.subr.mxu0 0.0
    %1296 = vmatpush1.msra.mxu0 %v1223
    %1297 = vmatprep.subr.mxu0 0.0
    %1298 = vmatpush2.msra.mxu0 0.0
    %1299 = vmatprep.subr.mxu0 0.0
    %1300 = vmatpush2.msra.mxu0 0.0
    %1301 = vmatprep.subr.mxu0 0.0
    %1302 = vmatpush2.msra.mxu0 0.0
    %1303 = vmatprep.subr.mxu0 0.0
    %1304 = vmatpush2.msra.mxu0 0.0
    %1305 = vmatprep.subr.mxu0 0.0
    %1306 = vmatpush2.msra.mxu0 0.0
    %1307 = vmatprep.subr.mxu0 0.0
    %1308 = vmatpush2.msra.mxu0 0.0
    %1309 = vmatprep.subr.mxu0 0.0
    %1310 = vmatpush2.msra.mxu0 0.0
    %1311 = vmatprep.subr.mxu0 0.0
    %1312 = vmatpush2.msra.mxu0 0.0
    %1313 = vmatprep.subr.mxu0 0.0
    %1314 = vmatpush2.msra.mxu0 0.0
    %1315 = vmatprep.subr.mxu0 0.0
    %1316 = vmatpush2.msra.mxu0 0.0
    %1317 = vmatprep.subr.mxu0 0.0
    %1318 = vmatpush2.msra.mxu0 0.0
    %1319 = vmatprep.subr.mxu0 0.0
    %1320 = vmatpush2.msra.mxu0 0.0
    %1321 = vmatprep.subr.mxu0 0.0
    %1322 = vmatpush2.msra.mxu0 0.0
    %1323 = vmatprep.subr.mxu0 0.0
    %1324 = vmatpush2.msra.mxu0 0.0
    %1325 = vmatprep.subr.mxu0 0.0
    %1326 = vmatpush2.msra.mxu0 0.0
    %1327 = vmatprep.subr.mxu0 0.0
    %1328 = vmatpush2.msra.mxu0 0.0
    %1329 = vmatprep.mubr.f32.mxu0 0.0
    %1330 = vmatmul.mubr.f32.gmra.mxu0 %v1243
    %v1331 = vpop.f32.mrf.mxu0
    %v1332 = vadd.f32 0.0, %v1331
    %v1333 = vpop.f32.mrf.mxu0
    %1334 = vmatprep.mubr.f32.mxu0 0.0
    %1335 = vmatmul.mubr.f32.gmra.mxu0 %v1246
    %v1336 = vpop.f32.mrf.mxu0
    %v1337 = vadd.f32 0.0, %v1336
    %v1338 = vpop.f32.mrf.mxu0
    %1339 = vmatprep.mubr.f32.mxu0 0.0
    %1340 = vmatmul.mubr.f32.gmra.mxu0 %v1249
    %v1341 = vpop.f32.mrf.mxu0
    %v1342 = vadd.f32 0.0, %v1341
    %v1343 = vpop.f32.mrf.mxu0
    %1344 = vmatprep.mubr.f32.mxu0 0.0
    %1345 = vmatmul.mubr.f32.gmra.mxu0 %v1252
    %v1346 = vpop.f32.mrf.mxu0
    %v1347 = vadd.f32 0.0, %v1346
    %v1348 = vpop.f32.mrf.mxu0
    %1349 = vmatprep.mubr.f32.mxu0 0.0
    %1350 = vmatmul.mubr.f32.gmra.mxu0 %v1255
    %v1351 = vpop.f32.mrf.mxu0
    %v1352 = vadd.f32 0.0, %v1351
    %v1353 = vpop.f32.mrf.mxu0
    %1354 = vmatprep.mubr.f32.mxu0 0.0
    %1355 = vmatmul.mubr.f32.gmra.mxu0 %v1258
    %v1356 = vpop.f32.mrf.mxu0
    %v1357 = vadd.f32 0.0, %v1356
    %v1358 = vpop.f32.mrf.mxu0
    %1359 = vmatprep.mubr.f32.mxu0 0.0
    %1360 = vmatmul.mubr.f32.gmra.mxu0 %v1261
    %v1361 = vpop.f32.mrf.mxu0
    %v1362 = vadd.f32 0.0, %v1361
    %v1363 = vpop.f32.mrf.mxu0
    %1364 = vdwg.mxu0
    %v1365 = vrcp.pop %v1203
    %v1366 = vrcp.pop %v1206
    %v1367 = vrcp.pop %v1209
    %v1368 = vrcp.pop %v1212
    %v1369 = vrcp.pop %v1215
    %v1370 = vrcp.pop %v1218
    %v1371 = vrcp.pop %v1221
    %v1372 = vmul.f32 %v1332, %v1365
    %v1373 = vmul.f32 %v1337, %v1366
    %v1374 = vmul.f32 %v1342, %v1367
    %v1375 = vmul.f32 %v1347, %v1368
    %v1376 = vmul.f32 %v1352, %v1369
    %v1377 = vmul.f32 %v1357, %v1370
    %v1378 = vmul.f32 %v1362, %v1371
    %1386 = vrot.lane.b32.xlu0 %v1372, 16
    %v1387 = vpop.permute.xlu0 %1386
    %1388 = vrot.lane.b32.xlu0 %v1373, 16
    %v1389 = vpop.permute.xlu0 %1388
    %1390 = vrot.lane.b32.xlu0 %v1374, 16
    %v1391 = vpop.permute.xlu0 %1390
    %1392 = vrot.lane.b32.xlu0 %v1375, 16
    %v1393 = vpop.permute.xlu0 %1392
    %1394 = vrot.lane.b32.xlu0 %v1376, 16
    %v1395 = vpop.permute.xlu0 %1394
    %1396 = vrot.lane.b32.xlu0 %v1377, 16
    %v1397 = vpop.permute.xlu0 %1396
    %1398 = vrot.lane.b32.xlu0 %v1378, 16
    %v1399 = vpop.permute.xlu0 %1398
    %v1407 = vsel %vm83, %v996, %v1387
    %v1408 = vsel %vm83, %v997, %v1389
    %v1409 = vsel %vm83, %v998, %v1391
    %v1410 = vsel %vm83, %v999, %v1393
    %v1411 = vsel %vm83, %v1000, %v1395
    %v1412 = vsel %vm83, %v1001, %v1397
    %v1413 = vsel %vm83, %v1002, %v1399
    %v1415 = vsel %vm383, %v1407, 0
    %v1418 = vsel %vm383, %v1408, 0
    %v1421 = vsel %vm383, %v1409, 0
    %v1424 = vsel %vm383, %v1410, 0
    %v1427 = vsel %vm383, %v1411, 0
    %v1430 = vsel %vm383, %v1412, 0
    %v1433 = vsel %vm383, %v1413, 0
    %1435 = vmatprep.subr.mxu0 0.0
    %1436 = vmatpush1.msra.mxu0 0.0
    %1437 = vmatprep.subr.mxu0 0.0
    %1438 = vmatpush1.msra.mxu0 0.0
    %1439 = vmatprep.subr.mxu0 0.0
    %1440 = vmatpush1.msra.mxu0 0.0
    %1441 = vmatprep.subr.mxu0 0.0
    %1442 = vmatpush1.msra.mxu0 0.0
    %1443 = vmatprep.subr.mxu0 0.0
    %1444 = vmatpush1.msra.mxu0 0.0
    %1445 = vmatprep.subr.mxu0 0.0
    %1446 = vmatpush1.msra.mxu0 0.0
    %1447 = vmatprep.subr.mxu0 0.0
    %1448 = vmatpush1.msra.mxu0 0.0
    %1449 = vmatprep.subr.mxu0 0.0
    %1450 = vmatpush1.msra.mxu0 0.0
    %1451 = vmatprep.subr.mxu0 0.0
    %1452 = vmatpush1.msra.mxu0 0.0
    %1453 = vmatprep.subr.mxu0 0.0
    %1454 = vmatpush1.msra.mxu0 0.0
    %1455 = vmatprep.subr.mxu0 0.0
    %1456 = vmatpush1.msra.mxu0 0.0
    %1457 = vmatprep.subr.mxu0 0.0
    %1458 = vmatpush1.msra.mxu0 0.0
    %1459 = vmatprep.subr.mxu0 0.0
    %1460 = vmatpush1.msra.mxu0 %v55
    %1461 = vmatprep.subr.mxu0 0.0
    %1462 = vmatpush1.msra.mxu0 %v54
    %1463 = vmatprep.subr.mxu0 0.0
    %1464 = vmatpush1.msra.mxu0 %v53
    %1465 = vmatprep.subr.mxu0 0.0
    %1466 = vmatpush1.msra.mxu0 %v52
    %1467 = vmatprep.subr.mxu0 0.0
    %1468 = vmatpush2.msra.mxu0 0.0
    %1469 = vmatprep.subr.mxu0 0.0
    %1470 = vmatpush2.msra.mxu0 0.0
    %1471 = vmatprep.subr.mxu0 0.0
    %1472 = vmatpush2.msra.mxu0 0.0
    %1473 = vmatprep.subr.mxu0 0.0
    %1474 = vmatpush2.msra.mxu0 0.0
    %1475 = vmatprep.subr.mxu0 0.0
    %1476 = vmatpush2.msra.mxu0 0.0
    %1477 = vmatprep.subr.mxu0 0.0
    %1478 = vmatpush2.msra.mxu0 0.0
    %1479 = vmatprep.subr.mxu0 0.0
    %1480 = vmatpush2.msra.mxu0 0.0
    %1481 = vmatprep.subr.mxu0 0.0
    %1482 = vmatpush2.msra.mxu0 0.0
    %1483 = vmatprep.subr.mxu0 0.0
    %1484 = vmatpush2.msra.mxu0 0.0
    %1485 = vmatprep.subr.mxu0 0.0
    %1486 = vmatpush2.msra.mxu0 0.0
    %1487 = vmatprep.subr.mxu0 0.0
    %1488 = vmatpush2.msra.mxu0 0.0
    %1489 = vmatprep.subr.mxu0 0.0
    %1490 = vmatpush2.msra.mxu0 0.0
    %1491 = vmatprep.subr.mxu0 0.0
    %1492 = vmatpush2.msra.mxu0 0.0
    %1493 = vmatprep.subr.mxu0 0.0
    %1494 = vmatpush2.msra.mxu0 0.0
    %1495 = vmatprep.subr.mxu0 0.0
    %1496 = vmatpush2.msra.mxu0 0.0
    %1497 = vmatprep.subr.mxu0 0.0
    %1498 = vmatpush2.msra.mxu0 0.0
    %1499 = vmatprep.mubr.f32.mxu0 0.0
    %1500 = vmatmul.mubr.f32.gmra.mxu0 %v1415
    %v1501 = vpop.f32.mrf.mxu0
    %v1502 = vadd.f32 0.0, %v1501
    %v1503 = vpop.f32.mrf.mxu0
    %1504 = vmatprep.mubr.f32.mxu0 0.0
    %1505 = vmatmul.mubr.f32.gmra.mxu0 %v1418
    %v1506 = vpop.f32.mrf.mxu0
    %v1507 = vadd.f32 0.0, %v1506
    %v1508 = vpop.f32.mrf.mxu0
    %1509 = vmatprep.mubr.f32.mxu0 0.0
    %1510 = vmatmul.mubr.f32.gmra.mxu0 %v1421
    %v1511 = vpop.f32.mrf.mxu0
    %v1512 = vadd.f32 0.0, %v1511
    %v1513 = vpop.f32.mrf.mxu0
    %1514 = vmatprep.mubr.f32.mxu0 0.0
    %1515 = vmatmul.mubr.f32.gmra.mxu0 %v1424
    %v1516 = vpop.f32.mrf.mxu0
    %v1517 = vadd.f32 0.0, %v1516
    %v1518 = vpop.f32.mrf.mxu0
    %1519 = vmatprep.mubr.f32.mxu0 0.0
    %1520 = vmatmul.mubr.f32.gmra.mxu0 %v1427
    %v1521 = vpop.f32.mrf.mxu0
    %v1522 = vadd.f32 0.0, %v1521
    %v1523 = vpop.f32.mrf.mxu0
    %1524 = vmatprep.mubr.f32.mxu0 0.0
    %1525 = vmatmul.mubr.f32.gmra.mxu0 %v1430
    %v1526 = vpop.f32.mrf.mxu0
    %v1527 = vadd.f32 0.0, %v1526
    %v1528 = vpop.f32.mrf.mxu0
    %1529 = vmatprep.mubr.f32.mxu0 0.0
    %1530 = vmatmul.mubr.f32.gmra.mxu0 %v1433
    %v1531 = vpop.f32.mrf.mxu0
    %v1532 = vadd.f32 0.0, %v1531
    %v1533 = vpop.f32.mrf.mxu0
    %1534 = vdwg.mxu0
    %v1535 = vadd.f32 %v340, %v1502
    %v1536 = vadd.f32 %v341, %v1507
    %v1537 = vadd.f32 %v342, %v1512
    %v1538 = vadd.f32 %v343, %v1517
    %v1539 = vadd.f32 %v344, %v1522
    %v1540 = vadd.f32 %v345, %v1527
    %v1541 = vadd.f32 %v346, %v1532
    %v1542 = vlaneseq
    %v1543 = vshrl.u32 %v1542, 7
    %v1544 = vsub.s32 4, %v1543
    %v1545 = vrot.slane %v80, %v1544
    %v1546 = vadd.f32 %v1535, %v1545
    %v1547 = vadd.f32 %v1536, %v1545
    %v1548 = vadd.f32 %v1537, %v1545
    %v1549 = vadd.f32 %v1538, %v1545
    %v1550 = vadd.f32 %v1539, %v1545
    %v1551 = vadd.f32 %v1540, %v1545
    %v1552 = vadd.f32 %v1541, %v1545
    %v1553 = vsel %vm383, %v1546, 0.0
    %1554 = vadd.xlane.f32.xlu0 %v1553
    %v1555 = vpop.xlane.xlu0 %1554
    %v1556 = vsel %vm383, %v1547, 0.0
    %1557 = vadd.xlane.f32.xlu0 %v1556
    %v1558 = vpop.xlane.xlu0 %1557
    %v1559 = vsel %vm383, %v1548, 0.0
    %1560 = vadd.xlane.f32.xlu0 %v1559
    %v1561 = vpop.xlane.xlu0 %1560
    %v1562 = vsel %vm383, %v1549, 0.0
    %1563 = vadd.xlane.f32.xlu0 %v1562
    %v1564 = vpop.xlane.xlu0 %1563
    %v1565 = vsel %vm383, %v1550, 0.0
    %1566 = vadd.xlane.f32.xlu0 %v1565
    %v1567 = vpop.xlane.xlu0 %1566
    %v1568 = vsel %vm383, %v1551, 0.0
    %1569 = vadd.xlane.f32.xlu0 %v1568
    %v1570 = vpop.xlane.xlu0 %1569
    %v1571 = vsel %vm402, %v1552, 0.0
    %1572 = vadd.xlane.f32.xlu0 %v1571
    %v1573 = vpop.xlane.xlu0 %1572
    %v1574 = vmul.f32 %v1555, %v406
    %v1575 = vmul.f32 %v1558, %v406
    %v1576 = vmul.f32 %v1561, %v406
    %v1577 = vmul.f32 %v1564, %v406
    %v1578 = vmul.f32 %v1567, %v406
    %v1579 = vmul.f32 %v1570, %v406
    %v1580 = vmul.f32 %v1573, %v406
    %v1581 = vsub.f32 %v1546, %v1574
    %v1582 = vsub.f32 %v1547, %v1575
    %v1583 = vsub.f32 %v1548, %v1576
    %v1584 = vsub.f32 %v1549, %v1577
    %v1585 = vsub.f32 %v1550, %v1578
    %v1586 = vsub.f32 %v1551, %v1579
    %v1587 = vsub.f32 %v1552, %v1580
    %v1588 = vmul.f32 %v1581, %v1581
    %v1589 = vmul.f32 %v1582, %v1582
    %v1590 = vmul.f32 %v1583, %v1583
    %v1591 = vmul.f32 %v1584, %v1584
    %v1592 = vmul.f32 %v1585, %v1585
    %v1593 = vmul.f32 %v1586, %v1586
    %v1594 = vmul.f32 %v1587, %v1587
    %v1595 = vsel %vm383, %v1588, 0.0
    %1596 = vadd.xlane.f32.xlu0 %v1595
    %v1597 = vpop.xlane.xlu0 %1596
    %v1598 = vsel %vm383, %v1589, 0.0
    %1599 = vadd.xlane.f32.xlu0 %v1598
    %v1600 = vpop.xlane.xlu0 %1599
    %v1601 = vsel %vm383, %v1590, 0.0
    %1602 = vadd.xlane.f32.xlu0 %v1601
    %v1603 = vpop.xlane.xlu0 %1602
    %v1604 = vsel %vm383, %v1591, 0.0
    %1605 = vadd.xlane.f32.xlu0 %v1604
    %v1606 = vpop.xlane.xlu0 %1605
    %v1607 = vsel %vm383, %v1592, 0.0
    %1608 = vadd.xlane.f32.xlu0 %v1607
    %v1609 = vpop.xlane.xlu0 %1608
    %v1610 = vsel %vm383, %v1593, 0.0
    %1611 = vadd.xlane.f32.xlu0 %v1610
    %v1612 = vpop.xlane.xlu0 %1611
    %v1613 = vsel %vm402, %v1594, 0.0
    %1614 = vadd.xlane.f32.xlu0 %v1613
    %v1615 = vpop.xlane.xlu0 %1614
    %v1616 = vmul.f32 %v1597, %v406
    %v1617 = vmul.f32 %v1600, %v406
    %v1618 = vmul.f32 %v1603, %v406
    %v1619 = vmul.f32 %v1606, %v406
    %v1620 = vmul.f32 %v1609, %v406
    %v1621 = vmul.f32 %v1612, %v406
    %v1622 = vmul.f32 %v1615, %v406
    %v1623 = vadd.f32 %v1616, 1e-05
    %v1624 = vadd.f32 %v1617, 1e-05
    %v1625 = vadd.f32 %v1618, 1e-05
    %v1626 = vadd.f32 %v1619, 1e-05
    %v1627 = vadd.f32 %v1620, 1e-05
    %v1628 = vadd.f32 %v1621, 1e-05
    %v1629 = vadd.f32 %v1622, 1e-05
    %v1630 = vrsqrt.pop %v1623
    %v1631 = vrsqrt.pop %v1624
    %v1632 = vrsqrt.pop %v1625
    %v1633 = vrsqrt.pop %v1626
    %v1634 = vrsqrt.pop %v1627
    %v1635 = vrsqrt.pop %v1628
    %v1636 = vrsqrt.pop %v1629
    %v1637 = vmul.f32 %v1581, %v1630
    %v1638 = vmul.f32 %v1582, %v1631
    %v1639 = vmul.f32 %v1583, %v1632
    %v1640 = vmul.f32 %v1584, %v1633
    %v1641 = vmul.f32 %v1585, %v1634
    %v1642 = vmul.f32 %v1586, %v1635
    %v1643 = vmul.f32 %v1587, %v1636
    %v1644 = vlaneseq
    %v1645 = vshrl.u32 %v1644, 7
    %v1646 = vsub.s32 2, %v1645
    %v1647 = vrot.slane %v80, %v1646
    %v1648 = vmul.f32 %v1637, %v1647
    %v1649 = vmul.f32 %v1638, %v1647
    %v1650 = vmul.f32 %v1639, %v1647
    %v1651 = vmul.f32 %v1640, %v1647
    %v1652 = vmul.f32 %v1641, %v1647
    %v1653 = vmul.f32 %v1642, %v1647
    %v1654 = vmul.f32 %v1643, %v1647
    %v1655 = vlaneseq
    %v1656 = vshrl.u32 %v1655, 7
    %v1657 = vsub.s32 3, %v1656
    %v1658 = vrot.slane %v80, %v1657
    %v1659 = vadd.f32 %v1648, %v1658
    %v1660 = vadd.f32 %v1649, %v1658
    %v1661 = vadd.f32 %v1650, %v1658
    %v1662 = vadd.f32 %v1651, %v1658
    %v1663 = vadd.f32 %v1652, %v1658
    %v1664 = vadd.f32 %v1653, %v1658
    %v1665 = vadd.f32 %v1654, %v1658
    %v1666 = vld [vmem:[%s9] sm:$0xff]
    %v1667 = vld [vmem:[%s9 + $0x8] sm:$0xff]
    %v1668 = vld [vmem:[%s9 + $0x10] sm:$0xff]
    %v1669 = vld [vmem:[%s9 + $0x18] sm:$0xff]
    %v1670 = vld [vmem:[%s10] sm:$0x1]
    %v1672 = vlaneseq
    %v1673 = vshrl.u32 %v1672, 7
    %v1674 = vsub.s32 0, %v1673
    %v1675 = vrot.slane %v1670, %v1674
    %v1678 = vsel %vm383, %v1659, 0
    %v1681 = vsel %vm383, %v1660, 0
    %v1684 = vsel %vm383, %v1661, 0
    %v1687 = vsel %vm383, %v1662, 0
    %v1690 = vsel %vm383, %v1663, 0
    %v1693 = vsel %vm383, %v1664, 0
    %v1696 = vsel %vm383, %v1665, 0
    %1698 = vmatprep.subr.mxu0 0.0
    %1699 = vmatpush1.msra.mxu0 0.0
    %1700 = vmatprep.subr.mxu0 0.0
    %1701 = vmatpush1.msra.mxu0 0.0
    %1702 = vmatprep.subr.mxu0 0.0
    %1703 = vmatpush1.msra.mxu0 0.0
    %1704 = vmatprep.subr.mxu0 0.0
    %1705 = vmatpush1.msra.mxu0 0.0
    %1706 = vmatprep.subr.mxu0 0.0
    %1707 = vmatpush1.msra.mxu0 0.0
    %1708 = vmatprep.subr.mxu0 0.0
    %1709 = vmatpush1.msra.mxu0 0.0
    %1710 = vmatprep.subr.mxu0 0.0
    %1711 = vmatpush1.msra.mxu0 0.0
    %1712 = vmatprep.subr.mxu0 0.0
    %1713 = vmatpush1.msra.mxu0 0.0
    %1714 = vmatprep.subr.mxu0 0.0
    %1715 = vmatpush1.msra.mxu0 0.0
    %1716 = vmatprep.subr.mxu0 0.0
    %1717 = vmatpush1.msra.mxu0 0.0
    %1718 = vmatprep.subr.mxu0 0.0
    %1719 = vmatpush1.msra.mxu0 0.0
    %1720 = vmatprep.subr.mxu0 0.0
    %1721 = vmatpush1.msra.mxu0 0.0
    %1722 = vmatprep.subr.mxu0 0.0
    %1723 = vmatpush1.msra.mxu0 %v1669
    %1724 = vmatprep.subr.mxu0 0.0
    %1725 = vmatpush1.msra.mxu0 %v1668
    %1726 = vmatprep.subr.mxu0 0.0
    %1727 = vmatpush1.msra.mxu0 %v1667
    %1728 = vmatprep.subr.mxu0 0.0
    %1729 = vmatpush1.msra.mxu0 %v1666
    %1730 = vmatprep.subr.mxu0 0.0
    %1731 = vmatpush2.msra.mxu0 0.0
    %1732 = vmatprep.subr.mxu0 0.0
    %1733 = vmatpush2.msra.mxu0 0.0
    %1734 = vmatprep.subr.mxu0 0.0
    %1735 = vmatpush2.msra.mxu0 0.0
    %1736 = vmatprep.subr.mxu0 0.0
    %1737 = vmatpush2.msra.mxu0 0.0
    %1738 = vmatprep.subr.mxu0 0.0
    %1739 = vmatpush2.msra.mxu0 0.0
    %1740 = vmatprep.subr.mxu0 0.0
    %1741 = vmatpush2.msra.mxu0 0.0
    %1742 = vmatprep.subr.mxu0 0.0
    %1743 = vmatpush2.msra.mxu0 0.0
    %1744 = vmatprep.subr.mxu0 0.0
    %1745 = vmatpush2.msra.mxu0 0.0
    %1746 = vmatprep.subr.mxu0 0.0
    %1747 = vmatpush2.msra.mxu0 0.0
    %1748 = vmatprep.subr.mxu0 0.0
    %1749 = vmatpush2.msra.mxu0 0.0
    %1750 = vmatprep.subr.mxu0 0.0
    %1751 = vmatpush2.msra.mxu0 0.0
    %1752 = vmatprep.subr.mxu0 0.0
    %1753 = vmatpush2.msra.mxu0 0.0
    %1754 = vmatprep.subr.mxu0 0.0
    %1755 = vmatpush2.msra.mxu0 0.0
    %1756 = vmatprep.subr.mxu0 0.0
    %1757 = vmatpush2.msra.mxu0 0.0
    %1758 = vmatprep.subr.mxu0 0.0
    %1759 = vmatpush2.msra.mxu0 0.0
    %1760 = vmatprep.subr.mxu0 0.0
    %1761 = vmatpush2.msra.mxu0 0.0
    %1762 = vmatprep.mubr.f32.mxu0 0.0
    %1763 = vmatmul.mubr.f32.gmra.mxu0 %v1678
    %v1764 = vpop.f32.mrf.mxu0
    %v1765 = vadd.f32 %v1675, %v1764
    %v1766 = vpop.f32.mrf.mxu0
    %1767 = vmatprep.mubr.f32.mxu0 0.0
    %1768 = vmatmul.mubr.f32.gmra.mxu0 %v1681
    %v1769 = vpop.f32.mrf.mxu0
    %v1770 = vadd.f32 %v1675, %v1769
    %v1771 = vpop.f32.mrf.mxu0
    %1772 = vmatprep.mubr.f32.mxu0 0.0
    %1773 = vmatmul.mubr.f32.gmra.mxu0 %v1684
    %v1774 = vpop.f32.mrf.mxu0
    %v1775 = vadd.f32 %v1675, %v1774
    %v1776 = vpop.f32.mrf.mxu0
    %1777 = vmatprep.mubr.f32.mxu0 0.0
    %1778 = vmatmul.mubr.f32.gmra.mxu0 %v1687
    %v1779 = vpop.f32.mrf.mxu0
    %v1780 = vadd.f32 %v1675, %v1779
    %v1781 = vpop.f32.mrf.mxu0
    %1782 = vmatprep.mubr.f32.mxu0 0.0
    %1783 = vmatmul.mubr.f32.gmra.mxu0 %v1690
    %v1784 = vpop.f32.mrf.mxu0
    %v1785 = vadd.f32 %v1675, %v1784
    %v1786 = vpop.f32.mrf.mxu0
    %1787 = vmatprep.mubr.f32.mxu0 0.0
    %1788 = vmatmul.mubr.f32.gmra.mxu0 %v1693
    %v1789 = vpop.f32.mrf.mxu0
    %v1790 = vadd.f32 %v1675, %v1789
    %v1791 = vpop.f32.mrf.mxu0
    %1792 = vmatprep.mubr.f32.mxu0 0.0
    %1793 = vmatmul.mubr.f32.gmra.mxu0 %v1696
    %v1794 = vpop.f32.mrf.mxu0
    %v1795 = vadd.f32 %v1675, %v1794
    %v1796 = vpop.f32.mrf.mxu0
    %1797 = vdwg.mxu0
    %v1798 = vmul.f32 %v1765, %v1765
    %v1799 = vmul.f32 %v1770, %v1770
    %v1800 = vmul.f32 %v1775, %v1775
    %v1801 = vmul.f32 %v1780, %v1780
    %v1802 = vmul.f32 %v1785, %v1785
    %v1803 = vmul.f32 %v1790, %v1790
    %v1804 = vmul.f32 %v1795, %v1795
    %v1805 = vmul.f32 %v1765, %v1798
    %v1806 = vmul.f32 %v1770, %v1799
    %v1807 = vmul.f32 %v1775, %v1800
    %v1808 = vmul.f32 %v1780, %v1801
    %v1809 = vmul.f32 %v1785, %v1802
    %v1810 = vmul.f32 %v1790, %v1803
    %v1811 = vmul.f32 %v1795, %v1804
    %v1812 = vmul.f32 %v1805, 0.044715
    %v1813 = vmul.f32 %v1806, 0.044715
    %v1814 = vmul.f32 %v1807, 0.044715
    %v1815 = vmul.f32 %v1808, 0.044715
    %v1816 = vmul.f32 %v1809, 0.044715
    %v1817 = vmul.f32 %v1810, 0.044715
    %v1818 = vmul.f32 %v1811, 0.044715
    %v1819 = vadd.f32 %v1765, %v1812
    %v1820 = vadd.f32 %v1770, %v1813
    %v1821 = vadd.f32 %v1775, %v1814
    %v1822 = vadd.f32 %v1780, %v1815
    %v1823 = vadd.f32 %v1785, %v1816
    %v1824 = vadd.f32 %v1790, %v1817
    %v1825 = vadd.f32 %v1795, %v1818
    %v1826 = vmul.f32 %v1819, 0.7978846
    %v1827 = vmul.f32 %v1820, 0.7978846
    %v1828 = vmul.f32 %v1821, 0.7978846
    %v1829 = vmul.f32 %v1822, 0.7978846
    %v1830 = vmul.f32 %v1823, 0.7978846
    %v1831 = vmul.f32 %v1824, 0.7978846
    %v1832 = vmul.f32 %v1825, 0.7978846
    %v1833 = vtanh.pop %v1826
    %v1834 = vtanh.pop %v1827
    %v1835 = vtanh.pop %v1828
    %v1836 = vtanh.pop %v1829
    %v1837 = vtanh.pop %v1830
    %v1838 = vtanh.pop %v1831
    %v1839 = vtanh.pop %v1832
    %v1840 = vadd.f32 %v1833, 1.0
    %v1841 = vadd.f32 %v1834, 1.0
    %v1842 = vadd.f32 %v1835, 1.0
    %v1843 = vadd.f32 %v1836, 1.0
    %v1844 = vadd.f32 %v1837, 1.0
    %v1845 = vadd.f32 %v1838, 1.0
    %v1846 = vadd.f32 %v1839, 1.0
    %v1847 = vmul.f32 %v1840, 0.5
    %v1848 = vmul.f32 %v1841, 0.5
    %v1849 = vmul.f32 %v1842, 0.5
    %v1850 = vmul.f32 %v1843, 0.5
    %v1851 = vmul.f32 %v1844, 0.5
    %v1852 = vmul.f32 %v1845, 0.5
    %v1853 = vmul.f32 %v1846, 0.5
    %v1854 = vmul.f32 %v1765, %v1847
    %v1855 = vmul.f32 %v1770, %v1848
    %v1856 = vmul.f32 %v1775, %v1849
    %v1857 = vmul.f32 %v1780, %v1850
    %v1858 = vmul.f32 %v1785, %v1851
    %v1859 = vmul.f32 %v1790, %v1852
    %v1860 = vmul.f32 %v1795, %v1853
    %vm1861 = vcmask 523264
    %v1863 = vsel %vm1861, %v1854, 0
    %v1866 = vsel %vm1861, %v1855, 0
    %v1869 = vsel %vm1861, %v1856, 0
    %v1872 = vsel %vm1861, %v1857, 0
    %v1875 = vsel %vm1861, %v1858, 0
    %v1878 = vsel %vm1861, %v1859, 0
    %v1881 = vsel %vm1861, %v1860, 0
    %1883 = vmatprep.subr.mxu0 0.0
    %1884 = vmatpush1.msra.mxu0 0.0
    %1885 = vmatprep.subr.mxu0 0.0
    %1886 = vmatpush1.msra.mxu0 0.0
    %1887 = vmatprep.subr.mxu0 0.0
    %1888 = vmatpush1.msra.mxu0 0.0
    %1889 = vmatprep.subr.mxu0 0.0
    %1890 = vmatpush1.msra.mxu0 0.0
    %1891 = vmatprep.subr.mxu0 0.0
    %1892 = vmatpush1.msra.mxu0 0.0
    %1893 = vmatprep.subr.mxu0 0.0
    %1894 = vmatpush1.msra.mxu0 0.0
    %1895 = vmatprep.subr.mxu0 0.0
    %1896 = vmatpush1.msra.mxu0 0.0
    %1897 = vmatprep.subr.mxu0 0.0
    %1898 = vmatpush1.msra.mxu0 0.0
    %1899 = vmatprep.subr.mxu0 0.0
    %1900 = vmatpush1.msra.mxu0 %v67
    %1901 = vmatprep.subr.mxu0 0.0
    %1902 = vmatpush1.msra.mxu0 %v66
    %1903 = vmatprep.subr.mxu0 0.0
    %1904 = vmatpush1.msra.mxu0 %v65
    %1905 = vmatprep.subr.mxu0 0.0
    %1906 = vmatpush1.msra.mxu0 %v64
    %1907 = vmatprep.subr.mxu0 0.0
    %1908 = vmatpush1.msra.mxu0 %v63
    %1909 = vmatprep.subr.mxu0 0.0
    %1910 = vmatpush1.msra.mxu0 %v62
    %1911 = vmatprep.subr.mxu0 0.0
    %1912 = vmatpush1.msra.mxu0 %v61
    %1913 = vmatprep.subr.mxu0 0.0
    %1914 = vmatpush1.msra.mxu0 %v60
    %1915 = vmatprep.subr.mxu0 0.0
    %1916 = vmatpush2.msra.mxu0 0.0
    %1917 = vmatprep.subr.mxu0 0.0
    %1918 = vmatpush2.msra.mxu0 0.0
    %1919 = vmatprep.subr.mxu0 0.0
    %1920 = vmatpush2.msra.mxu0 0.0
    %1921 = vmatprep.subr.mxu0 0.0
    %1922 = vmatpush2.msra.mxu0 0.0
    %1923 = vmatprep.subr.mxu0 0.0
    %1924 = vmatpush2.msra.mxu0 0.0
    %1925 = vmatprep.subr.mxu0 0.0
    %1926 = vmatpush2.msra.mxu0 0.0
    %1927 = vmatprep.subr.mxu0 0.0
    %1928 = vmatpush2.msra.mxu0 0.0
    %1929 = vmatprep.subr.mxu0 0.0
    %1930 = vmatpush2.msra.mxu0 0.0
    %1931 = vmatprep.subr.mxu0 0.0
    %1932 = vmatpush2.msra.mxu0 0.0
    %1933 = vmatprep.subr.mxu0 0.0
    %1934 = vmatpush2.msra.mxu0 0.0
    %1935 = vmatprep.subr.mxu0 0.0
    %1936 = vmatpush2.msra.mxu0 0.0
    %1937 = vmatprep.subr.mxu0 0.0
    %1938 = vmatpush2.msra.mxu0 0.0
    %1939 = vmatprep.subr.mxu0 0.0
    %1940 = vmatpush2.msra.mxu0 0.0
    %1941 = vmatprep.subr.mxu0 0.0
    %1942 = vmatpush2.msra.mxu0 0.0
    %1943 = vmatprep.subr.mxu0 0.0
    %1944 = vmatpush2.msra.mxu0 0.0
    %1945 = vmatprep.subr.mxu0 0.0
    %1946 = vmatpush2.msra.mxu0 0.0
    %1947 = vmatprep.mubr.f32.mxu0 0.0
    %1948 = vmatmul.mubr.f32.gmra.mxu0 %v1863
    %v1949 = vpop.f32.mrf.mxu0
    %v1950 = vadd.f32 0.0, %v1949
    %v1951 = vpop.f32.mrf.mxu0
    %1952 = vmatprep.mubr.f32.mxu0 0.0
    %1953 = vmatmul.mubr.f32.gmra.mxu0 %v1866
    %v1954 = vpop.f32.mrf.mxu0
    %v1955 = vadd.f32 0.0, %v1954
    %v1956 = vpop.f32.mrf.mxu0
    %1957 = vmatprep.mubr.f32.mxu0 0.0
    %1958 = vmatmul.mubr.f32.gmra.mxu0 %v1869
    %v1959 = vpop.f32.mrf.mxu0
    %v1960 = vadd.f32 0.0, %v1959
    %v1961 = vpop.f32.mrf.mxu0
    %1962 = vmatprep.mubr.f32.mxu0 0.0
    %1963 = vmatmul.mubr.f32.gmra.mxu0 %v1872
    %v1964 = vpop.f32.mrf.mxu0
    %v1965 = vadd.f32 0.0, %v1964
    %v1966 = vpop.f32.mrf.mxu0
    %1967 = vmatprep.mubr.f32.mxu0 0.0
    %1968 = vmatmul.mubr.f32.gmra.mxu0 %v1875
    %v1969 = vpop.f32.mrf.mxu0
    %v1970 = vadd.f32 0.0, %v1969
    %v1971 = vpop.f32.mrf.mxu0
    %1972 = vmatprep.mubr.f32.mxu0 0.0
    %1973 = vmatmul.mubr.f32.gmra.mxu0 %v1878
    %v1974 = vpop.f32.mrf.mxu0
    %v1975 = vadd.f32 0.0, %v1974
    %v1976 = vpop.f32.mrf.mxu0
    %1977 = vmatprep.mubr.f32.mxu0 0.0
    %1978 = vmatmul.mubr.f32.gmra.mxu0 %v1881
    %v1979 = vpop.f32.mrf.mxu0
    %v1980 = vadd.f32 0.0, %v1979
    %v1981 = vpop.f32.mrf.mxu0
    %1982 = vdwg.mxu0
    %v1983 = vadd.f32 %v1546, %v1950
    %v1984 = vadd.f32 %v1547, %v1955
    %v1985 = vadd.f32 %v1548, %v1960
    %v1986 = vadd.f32 %v1549, %v1965
    %v1987 = vadd.f32 %v1550, %v1970
    %v1988 = vadd.f32 %v1551, %v1975
    %v1989 = vadd.f32 %v1552, %v1980
    %v1990 = vlaneseq
    %v1991 = vshrl.u32 %v1990, 7
    %v1992 = vsub.s32 5, %v1991
    %v1993 = vrot.slane %v80, %v1992
    %v1994 = vadd.f32 %v1983, %v1993
    %v1995 = vadd.f32 %v1984, %v1993
    %v1996 = vadd.f32 %v1985, %v1993
    %v1997 = vadd.f32 %v1986, %v1993
    %v1998 = vadd.f32 %v1987, %v1993
    %v1999 = vadd.f32 %v1988, %v1993
    %v2000 = vadd.f32 %v1989, %v1993
    %v2001 = vsel %vm383, %v1994, 0.0
    %2002 = vadd.xlane.f32.xlu0 %v2001
    %v2003 = vpop.xlane.xlu0 %2002
    %v2004 = vsel %vm383, %v1995, 0.0
    %2005 = vadd.xlane.f32.xlu0 %v2004
    %v2006 = vpop.xlane.xlu0 %2005
    %v2007 = vsel %vm383, %v1996, 0.0
    %2008 = vadd.xlane.f32.xlu0 %v2007
    %v2009 = vpop.xlane.xlu0 %2008
    %v2010 = vsel %vm383, %v1997, 0.0
    %2011 = vadd.xlane.f32.xlu0 %v2010
    %v2012 = vpop.xlane.xlu0 %2011
    %v2013 = vsel %vm383, %v1998, 0.0
    %2014 = vadd.xlane.f32.xlu0 %v2013
    %v2015 = vpop.xlane.xlu0 %2014
    %v2016 = vsel %vm383, %v1999, 0.0
    %2017 = vadd.xlane.f32.xlu0 %v2016
    %v2018 = vpop.xlane.xlu0 %2017
    %v2019 = vsel %vm402, %v2000, 0.0
    %2020 = vadd.xlane.f32.xlu0 %v2019
    %v2021 = vpop.xlane.xlu0 %2020
    %v2022 = vmul.f32 %v2003, %v406
    %v2023 = vmul.f32 %v2006, %v406
    %v2024 = vmul.f32 %v2009, %v406
    %v2025 = vmul.f32 %v2012, %v406
    %v2026 = vmul.f32 %v2015, %v406
    %v2027 = vmul.f32 %v2018, %v406
    %v2028 = vmul.f32 %v2021, %v406
    %v2029 = vsub.f32 %v1994, %v2022
    %v2030 = vsub.f32 %v1995, %v2023
    %v2031 = vsub.f32 %v1996, %v2024
    %v2032 = vsub.f32 %v1997, %v2025
    %v2033 = vsub.f32 %v1998, %v2026
    %v2034 = vsub.f32 %v1999, %v2027
    %v2035 = vsub.f32 %v2000, %v2028
    %v2036 = vmul.f32 %v2029, %v2029
    %v2037 = vmul.f32 %v2030, %v2030
    %v2038 = vmul.f32 %v2031, %v2031
    %v2039 = vmul.f32 %v2032, %v2032
    %v2040 = vmul.f32 %v2033, %v2033
    %v2041 = vmul.f32 %v2034, %v2034
    %v2042 = vmul.f32 %v2035, %v2035
    %v2043 = vsel %vm383, %v2036, 0.0
    %2044 = vadd.xlane.f32.xlu0 %v2043
    %v2045 = vpop.xlane.xlu0 %2044
    %v2046 = vsel %vm383, %v2037, 0.0
    %2047 = vadd.xlane.f32.xlu0 %v2046
    %v2048 = vpop.xlane.xlu0 %2047
    %v2049 = vsel %vm383, %v2038, 0.0
    %2050 = vadd.xlane.f32.xlu0 %v2049
    %v2051 = vpop.xlane.xlu0 %2050
    %v2052 = vsel %vm383, %v2039, 0.0
    %2053 = vadd.xlane.f32.xlu0 %v2052
    %v2054 = vpop.xlane.xlu0 %2053
    %v2055 = vsel %vm383, %v2040, 0.0
    %2056 = vadd.xlane.f32.xlu0 %v2055
    %v2057 = vpop.xlane.xlu0 %2056
    %v2058 = vsel %vm383, %v2041, 0.0
    %2059 = vadd.xlane.f32.xlu0 %v2058
    %v2060 = vpop.xlane.xlu0 %2059
    %v2061 = vsel %vm402, %v2042, 0.0
    %2062 = vadd.xlane.f32.xlu0 %v2061
    %v2063 = vpop.xlane.xlu0 %2062
    %v2064 = vmul.f32 %v2045, %v406
    %v2065 = vmul.f32 %v2048, %v406
    %v2066 = vmul.f32 %v2051, %v406
    %v2067 = vmul.f32 %v2054, %v406
    %v2068 = vmul.f32 %v2057, %v406
    %v2069 = vmul.f32 %v2060, %v406
    %v2070 = vmul.f32 %v2063, %v406
    %v2071 = vadd.f32 %v2064, 1e-05
    %v2072 = vadd.f32 %v2065, 1e-05
    %v2073 = vadd.f32 %v2066, 1e-05
    %v2074 = vadd.f32 %v2067, 1e-05
    %v2075 = vadd.f32 %v2068, 1e-05
    %v2076 = vadd.f32 %v2069, 1e-05
    %v2077 = vadd.f32 %v2070, 1e-05
    %v2078 = vrsqrt.pop %v2071
    %v2079 = vrsqrt.pop %v2072
    %v2080 = vrsqrt.pop %v2073
    %v2081 = vrsqrt.pop %v2074
    %v2082 = vrsqrt.pop %v2075
    %v2083 = vrsqrt.pop %v2076
    %v2084 = vrsqrt.pop %v2077
    %v2085 = vmul.f32 %v2029, %v2078
    %v2086 = vmul.f32 %v2030, %v2079
    %v2087 = vmul.f32 %v2031, %v2080
    %v2088 = vmul.f32 %v2032, %v2081
    %v2089 = vmul.f32 %v2033, %v2082
    %v2090 = vmul.f32 %v2034, %v2083
    %v2091 = vmul.f32 %v2035, %v2084
    %v2092 = vlaneseq
    %v2093 = vshrl.u32 %v2092, 7
    %v2094 = vsub.s32 6, %v2093
    %v2095 = vrot.slane %v80, %v2094
    %v2096 = vmul.f32 %v2085, %v2095
    %v2097 = vmul.f32 %v2086, %v2095
    %v2098 = vmul.f32 %v2087, %v2095
    %v2099 = vmul.f32 %v2088, %v2095
    %v2100 = vmul.f32 %v2089, %v2095
    %v2101 = vmul.f32 %v2090, %v2095
    %v2102 = vmul.f32 %v2091, %v2095
    %v2103 = vlaneseq
    %v2104 = vshrl.u32 %v2103, 7
    %v2105 = vsub.s32 7, %v2104
    %v2106 = vrot.slane %v80, %v2105
    %v2107 = vadd.f32 %v2096, %v2106
    %v2108 = vadd.f32 %v2097, %v2106
    %v2109 = vadd.f32 %v2098, %v2106
    %v2110 = vadd.f32 %v2099, %v2106
    %v2111 = vadd.f32 %v2100, %v2106
    %v2112 = vadd.f32 %v2101, %v2106
    %v2113 = vadd.f32 %v2102, %v2106
    %s2114 = scalar_lea.vmem %s7, 32
    %v2115 = vld [vmem:[%s2114] sm:$0xff]
    %v2116 = vld [vmem:[%s2114 + $0x8] sm:$0xff]
    %v2117 = vld [vmem:[%s2114 + $0x10] sm:$0xff]
    %v2118 = vld [vmem:[%s2114 + $0x18] sm:$0xff]
    %s2119 = scalar_lea.vmem %s8, 1
    %v2120 = vld [vmem:[%s2119] sm:$0x1]
    %v2122 = vlaneseq
    %v2123 = vshrl.u32 %v2122, 7
    %v2124 = vsub.s32 0, %v2123
    %v2125 = vrot.slane %v2120, %v2124
    %v2128 = vsel %vm383, %v2107, 0
    %v2131 = vsel %vm383, %v2108, 0
    %v2134 = vsel %vm383, %v2109, 0
    %v2137 = vsel %vm383, %v2110, 0
    %v2140 = vsel %vm383, %v2111, 0
    %v2143 = vsel %vm383, %v2112, 0
    %v2146 = vsel %vm383, %v2113, 0
    %2148 = vmatprep.subr.mxu0 0.0
    %2149 = vmatpush1.msra.mxu0 0.0
    %2150 = vmatprep.subr.mxu0 0.0
    %2151 = vmatpush1.msra.mxu0 0.0
    %2152 = vmatprep.subr.mxu0 0.0
    %2153 = vmatpush1.msra.mxu0 0.0
    %2154 = vmatprep.subr.mxu0 0.0
    %2155 = vmatpush1.msra.mxu0 0.0
    %2156 = vmatprep.subr.mxu0 0.0
    %2157 = vmatpush1.msra.mxu0 0.0
    %2158 = vmatprep.subr.mxu0 0.0
    %2159 = vmatpush1.msra.mxu0 0.0
    %2160 = vmatprep.subr.mxu0 0.0
    %2161 = vmatpush1.msra.mxu0 0.0
    %2162 = vmatprep.subr.mxu0 0.0
    %2163 = vmatpush1.msra.mxu0 0.0
    %2164 = vmatprep.subr.mxu0 0.0
    %2165 = vmatpush1.msra.mxu0 0.0
    %2166 = vmatprep.subr.mxu0 0.0
    %2167 = vmatpush1.msra.mxu0 0.0
    %2168 = vmatprep.subr.mxu0 0.0
    %2169 = vmatpush1.msra.mxu0 0.0
    %2170 = vmatprep.subr.mxu0 0.0
    %2171 = vmatpush1.msra.mxu0 0.0
    %2172 = vmatprep.subr.mxu0 0.0
    %2173 = vmatpush1.msra.mxu0 %v2118
    %2174 = vmatprep.subr.mxu0 0.0
    %2175 = vmatpush1.msra.mxu0 %v2117
    %2176 = vmatprep.subr.mxu0 0.0
    %2177 = vmatpush1.msra.mxu0 %v2116
    %2178 = vmatprep.subr.mxu0 0.0
    %2179 = vmatpush1.msra.mxu0 %v2115
    %2180 = vmatprep.subr.mxu0 0.0
    %2181 = vmatpush2.msra.mxu0 0.0
    %2182 = vmatprep.subr.mxu0 0.0
    %2183 = vmatpush2.msra.mxu0 0.0
    %2184 = vmatprep.subr.mxu0 0.0
    %2185 = vmatpush2.msra.mxu0 0.0
    %2186 = vmatprep.subr.mxu0 0.0
    %2187 = vmatpush2.msra.mxu0 0.0
    %2188 = vmatprep.subr.mxu0 0.0
    %2189 = vmatpush2.msra.mxu0 0.0
    %2190 = vmatprep.subr.mxu0 0.0
    %2191 = vmatpush2.msra.mxu0 0.0
    %2192 = vmatprep.subr.mxu0 0.0
    %2193 = vmatpush2.msra.mxu0 0.0
    %2194 = vmatprep.subr.mxu0 0.0
    %2195 = vmatpush2.msra.mxu0 0.0
    %2196 = vmatprep.subr.mxu0 0.0
    %2197 = vmatpush2.msra.mxu0 0.0
    %2198 = vmatprep.subr.mxu0 0.0
    %2199 = vmatpush2.msra.mxu0 0.0
    %2200 = vmatprep.subr.mxu0 0.0
    %2201 = vmatpush2.msra.mxu0 0.0
    %2202 = vmatprep.subr.mxu0 0.0
    %2203 = vmatpush2.msra.mxu0 0.0
    %2204 = vmatprep.subr.mxu0 0.0
    %2205 = vmatpush2.msra.mxu0 0.0
    %2206 = vmatprep.subr.mxu0 0.0
    %2207 = vmatpush2.msra.mxu0 0.0
    %2208 = vmatprep.subr.mxu0 0.0
    %2209 = vmatpush2.msra.mxu0 0.0
    %2210 = vmatprep.subr.mxu0 0.0
    %2211 = vmatpush2.msra.mxu0 0.0
    %2212 = vmatprep.mubr.f32.mxu0 0.0
    %2213 = vmatmul.mubr.f32.gmra.mxu0 %v2128
    %v2214 = vpop.f32.mrf.mxu0
    %v2215 = vadd.f32 %v2125, %v2214
    %v2216 = vpop.f32.mrf.mxu0
    %2217 = vmatprep.mubr.f32.mxu0 0.0
    %2218 = vmatmul.mubr.f32.gmra.mxu0 %v2131
    %v2219 = vpop.f32.mrf.mxu0
    %v2220 = vadd.f32 %v2125, %v2219
    %v2221 = vpop.f32.mrf.mxu0
    %2222 = vmatprep.mubr.f32.mxu0 0.0
    %2223 = vmatmul.mubr.f32.gmra.mxu0 %v2134
    %v2224 = vpop.f32.mrf.mxu0
    %v2225 = vadd.f32 %v2125, %v2224
    %v2226 = vpop.f32.mrf.mxu0
    %2227 = vmatprep.mubr.f32.mxu0 0.0
    %2228 = vmatmul.mubr.f32.gmra.mxu0 %v2137
    %v2229 = vpop.f32.mrf.mxu0
    %v2230 = vadd.f32 %v2125, %v2229
    %v2231 = vpop.f32.mrf.mxu0
    %2232 = vmatprep.mubr.f32.mxu0 0.0
    %2233 = vmatmul.mubr.f32.gmra.mxu0 %v2140
    %v2234 = vpop.f32.mrf.mxu0
    %v2235 = vadd.f32 %v2125, %v2234
    %v2236 = vpop.f32.mrf.mxu0
    %2237 = vmatprep.mubr.f32.mxu0 0.0
    %2238 = vmatmul.mubr.f32.gmra.mxu0 %v2143
    %v2239 = vpop.f32.mrf.mxu0
    %v2240 = vadd.f32 %v2125, %v2239
    %v2241 = vpop.f32.mrf.mxu0
    %2242 = vmatprep.mubr.f32.mxu0 0.0
    %2243 = vmatmul.mubr.f32.gmra.mxu0 %v2146
    %v2244 = vpop.f32.mrf.mxu0
    %v2245 = vadd.f32 %v2125, %v2244
    %v2246 = vpop.f32.mrf.mxu0
    %2247 = vdwg.mxu0
    %2255 = vrot.lane.b32.xlu0 %v2215, 96
    %v2256 = vpop.permute.xlu0 %2255
    %2257 = vrot.lane.b32.xlu0 %v2220, 96
    %v2258 = vpop.permute.xlu0 %2257
    %2259 = vrot.lane.b32.xlu0 %v2225, 96
    %v2260 = vpop.permute.xlu0 %2259
    %2261 = vrot.lane.b32.xlu0 %v2230, 96
    %v2262 = vpop.permute.xlu0 %2261
    %2263 = vrot.lane.b32.xlu0 %v2235, 96
    %v2264 = vpop.permute.xlu0 %2263
    %2265 = vrot.lane.b32.xlu0 %v2240, 96
    %v2266 = vpop.permute.xlu0 %2265
    %2267 = vrot.lane.b32.xlu0 %v2245, 96
    %v2268 = vpop.permute.xlu0 %2267
    %v2269 = vsel %vm83, %v2215, 0
    %v2271 = vsel %vm83, %v2220, 0
    %v2273 = vsel %vm83, %v2225, 0
    %v2275 = vsel %vm83, %v2230, 0
    %v2277 = vsel %vm83, %v2235, 0
    %v2279 = vsel %vm83, %v2240, 0
    %v2281 = vsel %vm83, %v2245, 0
    %v2283 = vsel %vm83, %v2256, 0
    %v2285 = vsel %vm83, %v2258, 0
    %v2287 = vsel %vm83, %v2260, 0
    %v2289 = vsel %vm83, %v2262, 0
    %v2291 = vsel %vm83, %v2264, 0
    %v2293 = vsel %vm83, %v2266, 0
    %v2295 = vsel %vm83, %v2268, 0
    %2297 = vmatprep.subr.mxu0 0.0
    %2298 = vmatpush1.xpose.msra.mxu0 0.0
    %2299 = vmatprep.subr.mxu0 0.0
    %2300 = vmatpush1.xpose.msra.mxu0 0.0
    %2301 = vmatprep.subr.mxu0 0.0
    %2302 = vmatpush1.xpose.msra.mxu0 0.0
    %2303 = vmatprep.subr.mxu0 0.0
    %2304 = vmatpush1.xpose.msra.mxu0 0.0
    %2305 = vmatprep.subr.mxu0 0.0
    %2306 = vmatpush1.xpose.msra.mxu0 0.0
    %2307 = vmatprep.subr.mxu0 0.0
    %2308 = vmatpush1.xpose.msra.mxu0 0.0
    %2309 = vmatprep.subr.mxu0 0.0
    %2310 = vmatpush1.xpose.msra.mxu0 0.0
    %2311 = vmatprep.subr.mxu0 0.0
    %2312 = vmatpush1.xpose.msra.mxu0 0.0
    %2313 = vmatprep.subr.mxu0 0.0
    %2314 = vmatpush1.xpose.msra.mxu0 0.0
    %2315 = vmatprep.subr.mxu0 0.0
    %2316 = vmatpush1.xpose.msra.mxu0 %v2295
    %2317 = vmatprep.subr.mxu0 0.0
    %2318 = vmatpush1.xpose.msra.mxu0 %v2293
    %2319 = vmatprep.subr.mxu0 0.0
    %2320 = vmatpush1.xpose.msra.mxu0 %v2291
    %2321 = vmatprep.subr.mxu0 0.0
    %2322 = vmatpush1.xpose.msra.mxu0 %v2289
    %2323 = vmatprep.subr.mxu0 0.0
    %2324 = vmatpush1.xpose.msra.mxu0 %v2287
    %2325 = vmatprep.subr.mxu0 0.0
    %2326 = vmatpush1.xpose.msra.mxu0 %v2285
    %2327 = vmatprep.subr.mxu0 0.0
    %2328 = vmatpush1.xpose.msra.mxu0 %v2283
    %2329 = vmatprep.subr.mxu0 0.0
    %2330 = vmatpush2.xpose.msra.mxu0 0.0
    %2331 = vmatprep.subr.mxu0 0.0
    %2332 = vmatpush2.xpose.msra.mxu0 0.0
    %2333 = vmatprep.subr.mxu0 0.0
    %2334 = vmatpush2.xpose.msra.mxu0 0.0
    %2335 = vmatprep.subr.mxu0 0.0
    %2336 = vmatpush2.xpose.msra.mxu0 0.0
    %2337 = vmatprep.subr.mxu0 0.0
    %2338 = vmatpush2.xpose.msra.mxu0 0.0
    %2339 = vmatprep.subr.mxu0 0.0
    %2340 = vmatpush2.xpose.msra.mxu0 0.0
    %2341 = vmatprep.subr.mxu0 0.0
    %2342 = vmatpush2.xpose.msra.mxu0 0.0
    %2343 = vmatprep.subr.mxu0 0.0
    %2344 = vmatpush2.xpose.msra.mxu0 0.0
    %2345 = vmatprep.subr.mxu0 0.0
    %2346 = vmatpush2.xpose.msra.mxu0 0.0
    %2347 = vmatprep.subr.mxu0 0.0
    %2348 = vmatpush2.xpose.msra.mxu0 0.0
    %2349 = vmatprep.subr.mxu0 0.0
    %2350 = vmatpush2.xpose.msra.mxu0 0.0
    %2351 = vmatprep.subr.mxu0 0.0
    %2352 = vmatpush2.xpose.msra.mxu0 0.0
    %2353 = vmatprep.subr.mxu0 0.0
    %2354 = vmatpush2.xpose.msra.mxu0 0.0
    %2355 = vmatprep.subr.mxu0 0.0
    %2356 = vmatpush2.xpose.msra.mxu0 0.0
    %2357 = vmatprep.subr.mxu0 0.0
    %2358 = vmatpush2.xpose.msra.mxu0 0.0
    %2359 = vmatprep.subr.mxu0 0.0
    %2360 = vmatpush2.xpose.msra.mxu0 0.0
    %2361 = vmatprep.mubr.f32.mxu0 0.0
    %2362 = vmatmul.mubr.f32.gmra.mxu0 %v2269
    %v2363 = vpop.f32.mrf.mxu0
    %v2364 = vadd.f32 %v376, %v2363
    %v2365 = vpop.f32.mrf.mxu0
    %2366 = vmatprep.mubr.f32.mxu0 0.0
    %2367 = vmatmul.mubr.f32.gmra.mxu0 %v2271
    %v2368 = vpop.f32.mrf.mxu0
    %v2369 = vadd.f32 %v377, %v2368
    %v2370 = vpop.f32.mrf.mxu0
    %2371 = vmatprep.mubr.f32.mxu0 0.0
    %2372 = vmatmul.mubr.f32.gmra.mxu0 %v2273
    %v2373 = vpop.f32.mrf.mxu0
    %v2374 = vadd.f32 %v378, %v2373
    %v2375 = vpop.f32.mrf.mxu0
    %2376 = vmatprep.mubr.f32.mxu0 0.0
    %2377 = vmatmul.mubr.f32.gmra.mxu0 %v2275
    %v2378 = vpop.f32.mrf.mxu0
    %v2379 = vadd.f32 %v379, %v2378
    %v2380 = vpop.f32.mrf.mxu0
    %2381 = vmatprep.mubr.f32.mxu0 0.0
    %2382 = vmatmul.mubr.f32.gmra.mxu0 %v2277
    %v2383 = vpop.f32.mrf.mxu0
    %v2384 = vadd.f32 %v380, %v2383
    %v2385 = vpop.f32.mrf.mxu0
    %2386 = vmatprep.mubr.f32.mxu0 0.0
    %2387 = vmatmul.mubr.f32.gmra.mxu0 %v2279
    %v2388 = vpop.f32.mrf.mxu0
    %v2389 = vadd.f32 %v381, %v2388
    %v2390 = vpop.f32.mrf.mxu0
    %2391 = vmatprep.mubr.f32.mxu0 0.0
    %2392 = vmatmul.mubr.f32.gmra.mxu0 %v2281
    %v2393 = vpop.f32.mrf.mxu0
    %v2394 = vadd.f32 %v382, %v2393
    %v2395 = vpop.f32.mrf.mxu0
    %2396 = vdwg.mxu0
    %v2397 = vsel %vm780, %v2364, -inf
    %2398 = vmax.xlane.f32.xlu0 %v2397
    %v2399 = vpop.xlane.xlu0 %2398
    %v2400 = vsel %vm780, %v2369, -inf
    %2401 = vmax.xlane.f32.xlu0 %v2400
    %v2402 = vpop.xlane.xlu0 %2401
    %v2403 = vsel %vm780, %v2374, -inf
    %2404 = vmax.xlane.f32.xlu0 %v2403
    %v2405 = vpop.xlane.xlu0 %2404
    %v2406 = vsel %vm780, %v2379, -inf
    %2407 = vmax.xlane.f32.xlu0 %v2406
    %v2408 = vpop.xlane.xlu0 %2407
    %v2409 = vsel %vm780, %v2384, -inf
    %2410 = vmax.xlane.f32.xlu0 %v2409
    %v2411 = vpop.xlane.xlu0 %2410
    %v2412 = vsel %vm780, %v2389, -inf
    %2413 = vmax.xlane.f32.xlu0 %v2412
    %v2414 = vpop.xlane.xlu0 %2413
    %v2415 = vsel %vm799, %v2394, -inf
    %2416 = vmax.xlane.f32.xlu0 %v2415
    %v2417 = vpop.xlane.xlu0 %2416
    %v2418 = vsub.f32 %v2364, %v2399
    %v2419 = vsub.f32 %v2369, %v2402
    %v2420 = vsub.f32 %v2374, %v2405
    %v2421 = vsub.f32 %v2379, %v2408
    %v2422 = vsub.f32 %v2384, %v2411
    %v2423 = vsub.f32 %v2389, %v2414
    %v2424 = vsub.f32 %v2394, %v2417
    %v2425 = vmul.f32 %v2418, 1.442695
    %v2426 = vpow.pop %v2425
    %v2427 = vmul.f32 %v2419, 1.442695
    %v2428 = vpow.pop %v2427
    %v2429 = vmul.f32 %v2420, 1.442695
    %v2430 = vpow.pop %v2429
    %v2431 = vmul.f32 %v2421, 1.442695
    %v2432 = vpow.pop %v2431
    %v2433 = vmul.f32 %v2422, 1.442695
    %v2434 = vpow.pop %v2433
    %v2435 = vmul.f32 %v2423, 1.442695
    %v2436 = vpow.pop %v2435
    %v2437 = vmul.f32 %v2424, 1.442695
    %v2438 = vpow.pop %v2437
    %v2439 = vsel %vm780, %v2426, 0.0
    %2440 = vadd.xlane.f32.xlu0 %v2439
    %v2441 = vpop.xlane.xlu0 %2440
    %v2442 = vsel %vm780, %v2428, 0.0
    %2443 = vadd.xlane.f32.xlu0 %v2442
    %v2444 = vpop.xlane.xlu0 %2443
    %v2445 = vsel %vm780, %v2430, 0.0
    %2446 = vadd.xlane.f32.xlu0 %v2445
    %v2447 = vpop.xlane.xlu0 %2446
    %v2448 = vsel %vm780, %v2432, 0.0
    %2449 = vadd.xlane.f32.xlu0 %v2448
    %v2450 = vpop.xlane.xlu0 %2449
    %v2451 = vsel %vm780, %v2434, 0.0
    %2452 = vadd.xlane.f32.xlu0 %v2451
    %v2453 = vpop.xlane.xlu0 %2452
    %v2454 = vsel %vm780, %v2436, 0.0
    %2455 = vadd.xlane.f32.xlu0 %v2454
    %v2456 = vpop.xlane.xlu0 %2455
    %v2457 = vsel %vm799, %v2438, 0.0
    %2458 = vadd.xlane.f32.xlu0 %v2457
    %v2459 = vpop.xlane.xlu0 %2458
    %2460 = vrot.lane.b32.xlu0 %v2215, 64
    %v2461 = vpop.permute.xlu0 %2460
    %2462 = vrot.lane.b32.xlu0 %v2220, 64
    %v2463 = vpop.permute.xlu0 %2462
    %2464 = vrot.lane.b32.xlu0 %v2225, 64
    %v2465 = vpop.permute.xlu0 %2464
    %2466 = vrot.lane.b32.xlu0 %v2230, 64
    %v2467 = vpop.permute.xlu0 %2466
    %2468 = vrot.lane.b32.xlu0 %v2235, 64
    %v2469 = vpop.permute.xlu0 %2468
    %2470 = vrot.lane.b32.xlu0 %v2240, 64
    %v2471 = vpop.permute.xlu0 %2470
    %2472 = vrot.lane.b32.xlu0 %v2245, 64
    %v2473 = vpop.permute.xlu0 %2472
    %v2481 = vsel %vm780, %v2426, 0
    %v2484 = vsel %vm780, %v2428, 0
    %v2487 = vsel %vm780, %v2430, 0
    %v2490 = vsel %vm780, %v2432, 0
    %v2493 = vsel %vm780, %v2434, 0
    %v2496 = vsel %vm780, %v2436, 0
    %v2499 = vsel %vm780, %v2438, 0
    %v2501 = vsel %vm886, %v2473, 0
    %2503 = vmatprep.subr.mxu0 0.0
    %2504 = vmatpush1.msra.mxu0 0.0
    %2505 = vmatprep.subr.mxu0 0.0
    %2506 = vmatpush1.msra.mxu0 0.0
    %2507 = vmatprep.subr.mxu0 0.0
    %2508 = vmatpush1.msra.mxu0 0.0
    %2509 = vmatprep.subr.mxu0 0.0
    %2510 = vmatpush1.msra.mxu0 0.0
    %2511 = vmatprep.subr.mxu0 0.0
    %2512 = vmatpush1.msra.mxu0 0.0
    %2513 = vmatprep.subr.mxu0 0.0
    %2514 = vmatpush1.msra.mxu0 0.0
    %2515 = vmatprep.subr.mxu0 0.0
    %2516 = vmatpush1.msra.mxu0 0.0
    %2517 = vmatprep.subr.mxu0 0.0
    %2518 = vmatpush1.msra.mxu0 0.0
    %2519 = vmatprep.subr.mxu0 0.0
    %2520 = vmatpush1.msra.mxu0 0.0
    %2521 = vmatprep.subr.mxu0 0.0
    %2522 = vmatpush1.msra.mxu0 %v2501
    %2523 = vmatprep.subr.mxu0 0.0
    %2524 = vmatpush1.msra.mxu0 %v2471
    %2525 = vmatprep.subr.mxu0 0.0
    %2526 = vmatpush1.msra.mxu0 %v2469
    %2527 = vmatprep.subr.mxu0 0.0
    %2528 = vmatpush1.msra.mxu0 %v2467
    %2529 = vmatprep.subr.mxu0 0.0
    %2530 = vmatpush1.msra.mxu0 %v2465
    %2531 = vmatprep.subr.mxu0 0.0
    %2532 = vmatpush1.msra.mxu0 %v2463
    %2533 = vmatprep.subr.mxu0 0.0
    %2534 = vmatpush1.msra.mxu0 %v2461
    %2535 = vmatprep.subr.mxu0 0.0
    %2536 = vmatpush2.msra.mxu0 0.0
    %2537 = vmatprep.subr.mxu0 0.0
    %2538 = vmatpush2.msra.mxu0 0.0
    %2539 = vmatprep.subr.mxu0 0.0
    %2540 = vmatpush2.msra.mxu0 0.0
    %2541 = vmatprep.subr.mxu0 0.0
    %2542 = vmatpush2.msra.mxu0 0.0
    %2543 = vmatprep.subr.mxu0 0.0
    %2544 = vmatpush2.msra.mxu0 0.0
    %2545 = vmatprep.subr.mxu0 0.0
    %2546 = vmatpush2.msra.mxu0 0.0
    %2547 = vmatprep.subr.mxu0 0.0
    %2548 = vmatpush2.msra.mxu0 0.0
    %2549 = vmatprep.subr.mxu0 0.0
    %2550 = vmatpush2.msra.mxu0 0.0
    %2551 = vmatprep.subr.mxu0 0.0
    %2552 = vmatpush2.msra.mxu0 0.0
    %2553 = vmatprep.subr.mxu0 0.0
    %2554 = vmatpush2.msra.mxu0 0.0
    %2555 = vmatprep.subr.mxu0 0.0
    %2556 = vmatpush2.msra.mxu0 0.0
    %2557 = vmatprep.subr.mxu0 0.0
    %2558 = vmatpush2.msra.mxu0 0.0
    %2559 = vmatprep.subr.mxu0 0.0
    %2560 = vmatpush2.msra.mxu0 0.0
    %2561 = vmatprep.subr.mxu0 0.0
    %2562 = vmatpush2.msra.mxu0 0.0
    %2563 = vmatprep.subr.mxu0 0.0
    %2564 = vmatpush2.msra.mxu0 0.0
    %2565 = vmatprep.subr.mxu0 0.0
    %2566 = vmatpush2.msra.mxu0 0.0
    %2567 = vmatprep.mubr.f32.mxu0 0.0
    %2568 = vmatmul.mubr.f32.gmra.mxu0 %v2481
    %v2569 = vpop.f32.mrf.mxu0
    %v2570 = vadd.f32 0.0, %v2569
    %v2571 = vpop.f32.mrf.mxu0
    %2572 = vmatprep.mubr.f32.mxu0 0.0
    %2573 = vmatmul.mubr.f32.gmra.mxu0 %v2484
    %v2574 = vpop.f32.mrf.mxu0
    %v2575 = vadd.f32 0.0, %v2574
    %v2576 = vpop.f32.mrf.mxu0
    %2577 = vmatprep.mubr.f32.mxu0 0.0
    %2578 = vmatmul.mubr.f32.gmra.mxu0 %v2487
    %v2579 = vpop.f32.mrf.mxu0
    %v2580 = vadd.f32 0.0, %v2579
    %v2581 = vpop.f32.mrf.mxu0
    %2582 = vmatprep.mubr.f32.mxu0 0.0
    %2583 = vmatmul.mubr.f32.gmra.mxu0 %v2490
    %v2584 = vpop.f32.mrf.mxu0
    %v2585 = vadd.f32 0.0, %v2584
    %v2586 = vpop.f32.mrf.mxu0
    %2587 = vmatprep.mubr.f32.mxu0 0.0
    %2588 = vmatmul.mubr.f32.gmra.mxu0 %v2493
    %v2589 = vpop.f32.mrf.mxu0
    %v2590 = vadd.f32 0.0, %v2589
    %v2591 = vpop.f32.mrf.mxu0
    %2592 = vmatprep.mubr.f32.mxu0 0.0
    %2593 = vmatmul.mubr.f32.gmra.mxu0 %v2496
    %v2594 = vpop.f32.mrf.mxu0
    %v2595 = vadd.f32 0.0, %v2594
    %v2596 = vpop.f32.mrf.mxu0
    %2597 = vmatprep.mubr.f32.mxu0 0.0
    %2598 = vmatmul.mubr.f32.gmra.mxu0 %v2499
    %v2599 = vpop.f32.mrf.mxu0
    %v2600 = vadd.f32 0.0, %v2599
    %v2601 = vpop.f32.mrf.mxu0
    %2602 = vdwg.mxu0
    %v2603 = vrcp.pop %v2441
    %v2604 = vrcp.pop %v2444
    %v2605 = vrcp.pop %v2447
    %v2606 = vrcp.pop %v2450
    %v2607 = vrcp.pop %v2453
    %v2608 = vrcp.pop %v2456
    %v2609 = vrcp.pop %v2459
    %v2610 = vmul.f32 %v2570, %v2603
    %v2611 = vmul.f32 %v2575, %v2604
    %v2612 = vmul.f32 %v2580, %v2605
    %v2613 = vmul.f32 %v2585, %v2606
    %v2614 = vmul.f32 %v2590, %v2607
    %v2615 = vmul.f32 %v2595, %v2608
    %v2616 = vmul.f32 %v2600, %v2609
    %2617 = vrot.lane.b32.xlu0 %v2215, 112
    %v2618 = vpop.permute.xlu0 %2617
    %2619 = vrot.lane.b32.xlu0 %v2220, 112
    %v2620 = vpop.permute.xlu0 %2619
    %2621 = vrot.lane.b32.xlu0 %v2225, 112
    %v2622 = vpop.permute.xlu0 %2621
    %2623 = vrot.lane.b32.xlu0 %v2230, 112
    %v2624 = vpop.permute.xlu0 %2623
    %2625 = vrot.lane.b32.xlu0 %v2235, 112
    %v2626 = vpop.permute.xlu0 %2625
    %2627 = vrot.lane.b32.xlu0 %v2240, 112
    %v2628 = vpop.permute.xlu0 %2627
    %2629 = vrot.lane.b32.xlu0 %v2245, 112
    %v2630 = vpop.permute.xlu0 %2629
    %2631 = vrot.lane.b32.xlu0 %v2215, 80
    %v2632 = vpop.permute.xlu0 %2631
    %2633 = vrot.lane.b32.xlu0 %v2220, 80
    %v2634 = vpop.permute.xlu0 %2633
    %2635 = vrot.lane.b32.xlu0 %v2225, 80
    %v2636 = vpop.permute.xlu0 %2635
    %2637 = vrot.lane.b32.xlu0 %v2230, 80
    %v2638 = vpop.permute.xlu0 %2637
    %2639 = vrot.lane.b32.xlu0 %v2235, 80
    %v2640 = vpop.permute.xlu0 %2639
    %2641 = vrot.lane.b32.xlu0 %v2240, 80
    %v2642 = vpop.permute.xlu0 %2641
    %2643 = vrot.lane.b32.xlu0 %v2245, 80
    %v2644 = vpop.permute.xlu0 %2643
    %v2645 = vsel %vm83, %v2618, 0
    %v2647 = vsel %vm83, %v2620, 0
    %v2649 = vsel %vm83, %v2622, 0
    %v2651 = vsel %vm83, %v2624, 0
    %v2653 = vsel %vm83, %v2626, 0
    %v2655 = vsel %vm83, %v2628, 0
    %v2657 = vsel %vm83, %v2630, 0
    %v2659 = vsel %vm83, %v2632, 0
    %v2661 = vsel %vm83, %v2634, 0
    %v2663 = vsel %vm83, %v2636, 0
    %v2665 = vsel %vm83, %v2638, 0
    %v2667 = vsel %vm83, %v2640, 0
    %v2669 = vsel %vm83, %v2642, 0
    %v2671 = vsel %vm83, %v2644, 0
    %2673 = vmatprep.subr.mxu0 0.0
    %2674 = vmatpush1.xpose.msra.mxu0 0.0
    %2675 = vmatprep.subr.mxu0 0.0
    %2676 = vmatpush1.xpose.msra.mxu0 0.0
    %2677 = vmatprep.subr.mxu0 0.0
    %2678 = vmatpush1.xpose.msra.mxu0 0.0
    %2679 = vmatprep.subr.mxu0 0.0
    %2680 = vmatpush1.xpose.msra.mxu0 0.0
    %2681 = vmatprep.subr.mxu0 0.0
    %2682 = vmatpush1.xpose.msra.mxu0 0.0
    %2683 = vmatprep.subr.mxu0 0.0
    %2684 = vmatpush1.xpose.msra.mxu0 0.0
    %2685 = vmatprep.subr.mxu0 0.0
    %2686 = vmatpush1.xpose.msra.mxu0 0.0
    %2687 = vmatprep.subr.mxu0 0.0
    %2688 = vmatpush1.xpose.msra.mxu0 0.0
    %2689 = vmatprep.subr.mxu0 0.0
    %2690 = vmatpush1.xpose.msra.mxu0 0.0
    %2691 = vmatprep.subr.mxu0 0.0
    %2692 = vmatpush1.xpose.msra.mxu0 %v2671
    %2693 = vmatprep.subr.mxu0 0.0
    %2694 = vmatpush1.xpose.msra.mxu0 %v2669
    %2695 = vmatprep.subr.mxu0 0.0
    %2696 = vmatpush1.xpose.msra.mxu0 %v2667
    %2697 = vmatprep.subr.mxu0 0.0
    %2698 = vmatpush1.xpose.msra.mxu0 %v2665
    %2699 = vmatprep.subr.mxu0 0.0
    %2700 = vmatpush1.xpose.msra.mxu0 %v2663
    %2701 = vmatprep.subr.mxu0 0.0
    %2702 = vmatpush1.xpose.msra.mxu0 %v2661
    %2703 = vmatprep.subr.mxu0 0.0
    %2704 = vmatpush1.xpose.msra.mxu0 %v2659
    %2705 = vmatprep.subr.mxu0 0.0
    %2706 = vmatpush2.xpose.msra.mxu0 0.0
    %2707 = vmatprep.subr.mxu0 0.0
    %2708 = vmatpush2.xpose.msra.mxu0 0.0
    %2709 = vmatprep.subr.mxu0 0.0
    %2710 = vmatpush2.xpose.msra.mxu0 0.0
    %2711 = vmatprep.subr.mxu0 0.0
    %2712 = vmatpush2.xpose.msra.mxu0 0.0
    %2713 = vmatprep.subr.mxu0 0.0
    %2714 = vmatpush2.xpose.msra.mxu0 0.0
    %2715 = vmatprep.subr.mxu0 0.0
    %2716 = vmatpush2.xpose.msra.mxu0 0.0
    %2717 = vmatprep.subr.mxu0 0.0
    %2718 = vmatpush2.xpose.msra.mxu0 0.0
    %2719 = vmatprep.subr.mxu0 0.0
    %2720 = vmatpush2.xpose.msra.mxu0 0.0
    %2721 = vmatprep.subr.mxu0 0.0
    %2722 = vmatpush2.xpose.msra.mxu0 0.0
    %2723 = vmatprep.subr.mxu0 0.0
    %2724 = vmatpush2.xpose.msra.mxu0 0.0
    %2725 = vmatprep.subr.mxu0 0.0
    %2726 = vmatpush2.xpose.msra.mxu0 0.0
    %2727 = vmatprep.subr.mxu0 0.0
    %2728 = vmatpush2.xpose.msra.mxu0 0.0
    %2729 = vmatprep.subr.mxu0 0.0
    %2730 = vmatpush2.xpose.msra.mxu0 0.0
    %2731 = vmatprep.subr.mxu0 0.0
    %2732 = vmatpush2.xpose.msra.mxu0 0.0
    %2733 = vmatprep.subr.mxu0 0.0
    %2734 = vmatpush2.xpose.msra.mxu0 0.0
    %2735 = vmatprep.subr.mxu0 0.0
    %2736 = vmatpush2.xpose.msra.mxu0 0.0
    %2737 = vmatprep.mubr.f32.mxu0 0.0
    %2738 = vmatmul.mubr.f32.gmra.mxu0 %v2645
    %v2739 = vpop.f32.mrf.mxu0
    %v2740 = vadd.f32 %v376, %v2739
    %v2741 = vpop.f32.mrf.mxu0
    %2742 = vmatprep.mubr.f32.mxu0 0.0
    %2743 = vmatmul.mubr.f32.gmra.mxu0 %v2647
    %v2744 = vpop.f32.mrf.mxu0
    %v2745 = vadd.f32 %v377, %v2744
    %v2746 = vpop.f32.mrf.mxu0
    %2747 = vmatprep.mubr.f32.mxu0 0.0
    %2748 = vmatmul.mubr.f32.gmra.mxu0 %v2649
    %v2749 = vpop.f32.mrf.mxu0
    %v2750 = vadd.f32 %v378, %v2749
    %v2751 = vpop.f32.mrf.mxu0
    %2752 = vmatprep.mubr.f32.mxu0 0.0
    %2753 = vmatmul.mubr.f32.gmra.mxu0 %v2651
    %v2754 = vpop.f32.mrf.mxu0
    %v2755 = vadd.f32 %v379, %v2754
    %v2756 = vpop.f32.mrf.mxu0
    %2757 = vmatprep.mubr.f32.mxu0 0.0
    %2758 = vmatmul.mubr.f32.gmra.mxu0 %v2653
    %v2759 = vpop.f32.mrf.mxu0
    %v2760 = vadd.f32 %v380, %v2759
    %v2761 = vpop.f32.mrf.mxu0
    %2762 = vmatprep.mubr.f32.mxu0 0.0
    %2763 = vmatmul.mubr.f32.gmra.mxu0 %v2655
    %v2764 = vpop.f32.mrf.mxu0
    %v2765 = vadd.f32 %v381, %v2764
    %v2766 = vpop.f32.mrf.mxu0
    %2767 = vmatprep.mubr.f32.mxu0 0.0
    %2768 = vmatmul.mubr.f32.gmra.mxu0 %v2657
    %v2769 = vpop.f32.mrf.mxu0
    %v2770 = vadd.f32 %v382, %v2769
    %v2771 = vpop.f32.mrf.mxu0
    %2772 = vdwg.mxu0
    %v2773 = vsel %vm780, %v2740, -inf
    %2774 = vmax.xlane.f32.xlu0 %v2773
    %v2775 = vpop.xlane.xlu0 %2774
    %v2776 = vsel %vm780, %v2745, -inf
    %2777 = vmax.xlane.f32.xlu0 %v2776
    %v2778 = vpop.xlane.xlu0 %2777
    %v2779 = vsel %vm780, %v2750, -inf
    %2780 = vmax.xlane.f32.xlu0 %v2779
    %v2781 = vpop.xlane.xlu0 %2780
    %v2782 = vsel %vm780, %v2755, -inf
    %2783 = vmax.xlane.f32.xlu0 %v2782
    %v2784 = vpop.xlane.xlu0 %2783
    %v2785 = vsel %vm780, %v2760, -inf
    %2786 = vmax.xlane.f32.xlu0 %v2785
    %v2787 = vpop.xlane.xlu0 %2786
    %v2788 = vsel %vm780, %v2765, -inf
    %2789 = vmax.xlane.f32.xlu0 %v2788
    %v2790 = vpop.xlane.xlu0 %2789
    %v2791 = vsel %vm799, %v2770, -inf
    %2792 = vmax.xlane.f32.xlu0 %v2791
    %v2793 = vpop.xlane.xlu0 %2792
    %v2794 = vsub.f32 %v2740, %v2775
    %v2795 = vsub.f32 %v2745, %v2778
    %v2796 = vsub.f32 %v2750, %v2781
    %v2797 = vsub.f32 %v2755, %v2784
    %v2798 = vsub.f32 %v2760, %v2787
    %v2799 = vsub.f32 %v2765, %v2790
    %v2800 = vsub.f32 %v2770, %v2793
    %v2801 = vmul.f32 %v2794, 1.442695
    %v2802 = vpow.pop %v2801
    %v2803 = vmul.f32 %v2795, 1.442695
    %v2804 = vpow.pop %v2803
    %v2805 = vmul.f32 %v2796, 1.442695
    %v2806 = vpow.pop %v2805
    %v2807 = vmul.f32 %v2797, 1.442695
    %v2808 = vpow.pop %v2807
    %v2809 = vmul.f32 %v2798, 1.442695
    %v2810 = vpow.pop %v2809
    %v2811 = vmul.f32 %v2799, 1.442695
    %v2812 = vpow.pop %v2811
    %v2813 = vmul.f32 %v2800, 1.442695
    %v2814 = vpow.pop %v2813
    %v2815 = vsel %vm780, %v2802, 0.0
    %2816 = vadd.xlane.f32.xlu0 %v2815
    %v2817 = vpop.xlane.xlu0 %2816
    %v2818 = vsel %vm780, %v2804, 0.0
    %2819 = vadd.xlane.f32.xlu0 %v2818
    %v2820 = vpop.xlane.xlu0 %2819
    %v2821 = vsel %vm780, %v2806, 0.0
    %2822 = vadd.xlane.f32.xlu0 %v2821
    %v2823 = vpop.xlane.xlu0 %2822
    %v2824 = vsel %vm780, %v2808, 0.0
    %2825 = vadd.xlane.f32.xlu0 %v2824
    %v2826 = vpop.xlane.xlu0 %2825
    %v2827 = vsel %vm780, %v2810, 0.0
    %2828 = vadd.xlane.f32.xlu0 %v2827
    %v2829 = vpop.xlane.xlu0 %2828
    %v2830 = vsel %vm780, %v2812, 0.0
    %2831 = vadd.xlane.f32.xlu0 %v2830
    %v2832 = vpop.xlane.xlu0 %2831
    %v2833 = vsel %vm799, %v2814, 0.0
    %2834 = vadd.xlane.f32.xlu0 %v2833
    %v2835 = vpop.xlane.xlu0 %2834
    %2836 = vrot.lane.b32.xlu0 %v2215, 48
    %v2837 = vpop.permute.xlu0 %2836
    %2838 = vrot.lane.b32.xlu0 %v2220, 48
    %v2839 = vpop.permute.xlu0 %2838
    %2840 = vrot.lane.b32.xlu0 %v2225, 48
    %v2841 = vpop.permute.xlu0 %2840
    %2842 = vrot.lane.b32.xlu0 %v2230, 48
    %v2843 = vpop.permute.xlu0 %2842
    %2844 = vrot.lane.b32.xlu0 %v2235, 48
    %v2845 = vpop.permute.xlu0 %2844
    %2846 = vrot.lane.b32.xlu0 %v2240, 48
    %v2847 = vpop.permute.xlu0 %2846
    %2848 = vrot.lane.b32.xlu0 %v2245, 48
    %v2849 = vpop.permute.xlu0 %2848
    %v2857 = vsel %vm780, %v2802, 0
    %v2860 = vsel %vm780, %v2804, 0
    %v2863 = vsel %vm780, %v2806, 0
    %v2866 = vsel %vm780, %v2808, 0
    %v2869 = vsel %vm780, %v2810, 0
    %v2872 = vsel %vm780, %v2812, 0
    %v2875 = vsel %vm780, %v2814, 0
    %v2877 = vsel %vm886, %v2849, 0
    %2879 = vmatprep.subr.mxu0 0.0
    %2880 = vmatpush1.msra.mxu0 0.0
    %2881 = vmatprep.subr.mxu0 0.0
    %2882 = vmatpush1.msra.mxu0 0.0
    %2883 = vmatprep.subr.mxu0 0.0
    %2884 = vmatpush1.msra.mxu0 0.0
    %2885 = vmatprep.subr.mxu0 0.0
    %2886 = vmatpush1.msra.mxu0 0.0
    %2887 = vmatprep.subr.mxu0 0.0
    %2888 = vmatpush1.msra.mxu0 0.0
    %2889 = vmatprep.subr.mxu0 0.0
    %2890 = vmatpush1.msra.mxu0 0.0
    %2891 = vmatprep.subr.mxu0 0.0
    %2892 = vmatpush1.msra.mxu0 0.0
    %2893 = vmatprep.subr.mxu0 0.0
    %2894 = vmatpush1.msra.mxu0 0.0
    %2895 = vmatprep.subr.mxu0 0.0
    %2896 = vmatpush1.msra.mxu0 0.0
    %2897 = vmatprep.subr.mxu0 0.0
    %2898 = vmatpush1.msra.mxu0 %v2877
    %2899 = vmatprep.subr.mxu0 0.0
    %2900 = vmatpush1.msra.mxu0 %v2847
    %2901 = vmatprep.subr.mxu0 0.0
    %2902 = vmatpush1.msra.mxu0 %v2845
    %2903 = vmatprep.subr.mxu0 0.0
    %2904 = vmatpush1.msra.mxu0 %v2843
    %2905 = vmatprep.subr.mxu0 0.0
    %2906 = vmatpush1.msra.mxu0 %v2841
    %2907 = vmatprep.subr.mxu0 0.0
    %2908 = vmatpush1.msra.mxu0 %v2839
    %2909 = vmatprep.subr.mxu0 0.0
    %2910 = vmatpush1.msra.mxu0 %v2837
    %2911 = vmatprep.subr.mxu0 0.0
    %2912 = vmatpush2.msra.mxu0 0.0
    %2913 = vmatprep.subr.mxu0 0.0
    %2914 = vmatpush2.msra.mxu0 0.0
    %2915 = vmatprep.subr.mxu0 0.0
    %2916 = vmatpush2.msra.mxu0 0.0
    %2917 = vmatprep.subr.mxu0 0.0
    %2918 = vmatpush2.msra.mxu0 0.0
    %2919 = vmatprep.subr.mxu0 0.0
    %2920 = vmatpush2.msra.mxu0 0.0
    %2921 = vmatprep.subr.mxu0 0.0
    %2922 = vmatpush2.msra.mxu0 0.0
    %2923 = vmatprep.subr.mxu0 0.0
    %2924 = vmatpush2.msra.mxu0 0.0
    %2925 = vmatprep.subr.mxu0 0.0
    %2926 = vmatpush2.msra.mxu0 0.0
    %2927 = vmatprep.subr.mxu0 0.0
    %2928 = vmatpush2.msra.mxu0 0.0
    %2929 = vmatprep.subr.mxu0 0.0
    %2930 = vmatpush2.msra.mxu0 0.0
    %2931 = vmatprep.subr.mxu0 0.0
    %2932 = vmatpush2.msra.mxu0 0.0
    %2933 = vmatprep.subr.mxu0 0.0
    %2934 = vmatpush2.msra.mxu0 0.0
    %2935 = vmatprep.subr.mxu0 0.0
    %2936 = vmatpush2.msra.mxu0 0.0
    %2937 = vmatprep.subr.mxu0 0.0
    %2938 = vmatpush2.msra.mxu0 0.0
    %2939 = vmatprep.subr.mxu0 0.0
    %2940 = vmatpush2.msra.mxu0 0.0
    %2941 = vmatprep.subr.mxu0 0.0
    %2942 = vmatpush2.msra.mxu0 0.0
    %2943 = vmatprep.mubr.f32.mxu0 0.0
    %2944 = vmatmul.mubr.f32.gmra.mxu0 %v2857
    %v2945 = vpop.f32.mrf.mxu0
    %v2946 = vadd.f32 0.0, %v2945
    %v2947 = vpop.f32.mrf.mxu0
    %2948 = vmatprep.mubr.f32.mxu0 0.0
    %2949 = vmatmul.mubr.f32.gmra.mxu0 %v2860
    %v2950 = vpop.f32.mrf.mxu0
    %v2951 = vadd.f32 0.0, %v2950
    %v2952 = vpop.f32.mrf.mxu0
    %2953 = vmatprep.mubr.f32.mxu0 0.0
    %2954 = vmatmul.mubr.f32.gmra.mxu0 %v2863
    %v2955 = vpop.f32.mrf.mxu0
    %v2956 = vadd.f32 0.0, %v2955
    %v2957 = vpop.f32.mrf.mxu0
    %2958 = vmatprep.mubr.f32.mxu0 0.0
    %2959 = vmatmul.mubr.f32.gmra.mxu0 %v2866
    %v2960 = vpop.f32.mrf.mxu0
    %v2961 = vadd.f32 0.0, %v2960
    %v2962 = vpop.f32.mrf.mxu0
    %2963 = vmatprep.mubr.f32.mxu0 0.0
    %2964 = vmatmul.mubr.f32.gmra.mxu0 %v2869
    %v2965 = vpop.f32.mrf.mxu0
    %v2966 = vadd.f32 0.0, %v2965
    %v2967 = vpop.f32.mrf.mxu0
    %2968 = vmatprep.mubr.f32.mxu0 0.0
    %2969 = vmatmul.mubr.f32.gmra.mxu0 %v2872
    %v2970 = vpop.f32.mrf.mxu0
    %v2971 = vadd.f32 0.0, %v2970
    %v2972 = vpop.f32.mrf.mxu0
    %2973 = vmatprep.mubr.f32.mxu0 0.0
    %2974 = vmatmul.mubr.f32.gmra.mxu0 %v2875
    %v2975 = vpop.f32.mrf.mxu0
    %v2976 = vadd.f32 0.0, %v2975
    %v2977 = vpop.f32.mrf.mxu0
    %2978 = vdwg.mxu0
    %v2979 = vrcp.pop %v2817
    %v2980 = vrcp.pop %v2820
    %v2981 = vrcp.pop %v2823
    %v2982 = vrcp.pop %v2826
    %v2983 = vrcp.pop %v2829
    %v2984 = vrcp.pop %v2832
    %v2985 = vrcp.pop %v2835
    %v2986 = vmul.f32 %v2946, %v2979
    %v2987 = vmul.f32 %v2951, %v2980
    %v2988 = vmul.f32 %v2956, %v2981
    %v2989 = vmul.f32 %v2961, %v2982
    %v2990 = vmul.f32 %v2966, %v2983
    %v2991 = vmul.f32 %v2971, %v2984
    %v2992 = vmul.f32 %v2976, %v2985
    %3000 = vrot.lane.b32.xlu0 %v2986, 16
    %v3001 = vpop.permute.xlu0 %3000
    %3002 = vrot.lane.b32.xlu0 %v2987, 16
    %v3003 = vpop.permute.xlu0 %3002
    %3004 = vrot.lane.b32.xlu0 %v2988, 16
    %v3005 = vpop.permute.xlu0 %3004
    %3006 = vrot.lane.b32.xlu0 %v2989, 16
    %v3007 = vpop.permute.xlu0 %3006
    %3008 = vrot.lane.b32.xlu0 %v2990, 16
    %v3009 = vpop.permute.xlu0 %3008
    %3010 = vrot.lane.b32.xlu0 %v2991, 16
    %v3011 = vpop.permute.xlu0 %3010
    %3012 = vrot.lane.b32.xlu0 %v2992, 16
    %v3013 = vpop.permute.xlu0 %3012
    %v3021 = vsel %vm83, %v2610, %v3001
    %v3022 = vsel %vm83, %v2611, %v3003
    %v3023 = vsel %vm83, %v2612, %v3005
    %v3024 = vsel %vm83, %v2613, %v3007
    %v3025 = vsel %vm83, %v2614, %v3009
    %v3026 = vsel %vm83, %v2615, %v3011
    %v3027 = vsel %vm83, %v2616, %v3013
    %v3029 = vsel %vm383, %v3021, 0
    %v3032 = vsel %vm383, %v3022, 0
    %v3035 = vsel %vm383, %v3023, 0
    %v3038 = vsel %vm383, %v3024, 0
    %v3041 = vsel %vm383, %v3025, 0
    %v3044 = vsel %vm383, %v3026, 0
    %v3047 = vsel %vm383, %v3027, 0
    %3049 = vmatprep.subr.mxu0 0.0
    %3050 = vmatpush1.msra.mxu0 0.0
    %3051 = vmatprep.subr.mxu0 0.0
    %3052 = vmatpush1.msra.mxu0 0.0
    %3053 = vmatprep.subr.mxu0 0.0
    %3054 = vmatpush1.msra.mxu0 0.0
    %3055 = vmatprep.subr.mxu0 0.0
    %3056 = vmatpush1.msra.mxu0 0.0
    %3057 = vmatprep.subr.mxu0 0.0
    %3058 = vmatpush1.msra.mxu0 0.0
    %3059 = vmatprep.subr.mxu0 0.0
    %3060 = vmatpush1.msra.mxu0 0.0
    %3061 = vmatprep.subr.mxu0 0.0
    %3062 = vmatpush1.msra.mxu0 0.0
    %3063 = vmatprep.subr.mxu0 0.0
    %3064 = vmatpush1.msra.mxu0 0.0
    %3065 = vmatprep.subr.mxu0 0.0
    %3066 = vmatpush1.msra.mxu0 0.0
    %3067 = vmatprep.subr.mxu0 0.0
    %3068 = vmatpush1.msra.mxu0 0.0
    %3069 = vmatprep.subr.mxu0 0.0
    %3070 = vmatpush1.msra.mxu0 0.0
    %3071 = vmatprep.subr.mxu0 0.0
    %3072 = vmatpush1.msra.mxu0 0.0
    %3073 = vmatprep.subr.mxu0 0.0
    %3074 = vmatpush1.msra.mxu0 %v59
    %3075 = vmatprep.subr.mxu0 0.0
    %3076 = vmatpush1.msra.mxu0 %v58
    %3077 = vmatprep.subr.mxu0 0.0
    %3078 = vmatpush1.msra.mxu0 %v57
    %3079 = vmatprep.subr.mxu0 0.0
    %3080 = vmatpush1.msra.mxu0 %v56
    %3081 = vmatprep.subr.mxu0 0.0
    %3082 = vmatpush2.msra.mxu0 0.0
    %3083 = vmatprep.subr.mxu0 0.0
    %3084 = vmatpush2.msra.mxu0 0.0
    %3085 = vmatprep.subr.mxu0 0.0
    %3086 = vmatpush2.msra.mxu0 0.0
    %3087 = vmatprep.subr.mxu0 0.0
    %3088 = vmatpush2.msra.mxu0 0.0
    %3089 = vmatprep.subr.mxu0 0.0
    %3090 = vmatpush2.msra.mxu0 0.0
    %3091 = vmatprep.subr.mxu0 0.0
    %3092 = vmatpush2.msra.mxu0 0.0
    %3093 = vmatprep.subr.mxu0 0.0
    %3094 = vmatpush2.msra.mxu0 0.0
    %3095 = vmatprep.subr.mxu0 0.0
    %3096 = vmatpush2.msra.mxu0 0.0
    %3097 = vmatprep.subr.mxu0 0.0
    %3098 = vmatpush2.msra.mxu0 0.0
    %3099 = vmatprep.subr.mxu0 0.0
    %3100 = vmatpush2.msra.mxu0 0.0
    %3101 = vmatprep.subr.mxu0 0.0
    %3102 = vmatpush2.msra.mxu0 0.0
    %3103 = vmatprep.subr.mxu0 0.0
    %3104 = vmatpush2.msra.mxu0 0.0
    %3105 = vmatprep.subr.mxu0 0.0
    %3106 = vmatpush2.msra.mxu0 0.0
    %3107 = vmatprep.subr.mxu0 0.0
    %3108 = vmatpush2.msra.mxu0 0.0
    %3109 = vmatprep.subr.mxu0 0.0
    %3110 = vmatpush2.msra.mxu0 0.0
    %3111 = vmatprep.subr.mxu0 0.0
    %3112 = vmatpush2.msra.mxu0 0.0
    %3113 = vmatprep.mubr.f32.mxu0 0.0
    %3114 = vmatmul.mubr.f32.gmra.mxu0 %v3029
    %v3115 = vpop.f32.mrf.mxu0
    %v3116 = vadd.f32 0.0, %v3115
    %v3117 = vpop.f32.mrf.mxu0
    %3118 = vmatprep.mubr.f32.mxu0 0.0
    %3119 = vmatmul.mubr.f32.gmra.mxu0 %v3032
    %v3120 = vpop.f32.mrf.mxu0
    %v3121 = vadd.f32 0.0, %v3120
    %v3122 = vpop.f32.mrf.mxu0
    %3123 = vmatprep.mubr.f32.mxu0 0.0
    %3124 = vmatmul.mubr.f32.gmra.mxu0 %v3035
    %v3125 = vpop.f32.mrf.mxu0
    %v3126 = vadd.f32 0.0, %v3125
    %v3127 = vpop.f32.mrf.mxu0
    %3128 = vmatprep.mubr.f32.mxu0 0.0
    %3129 = vmatmul.mubr.f32.gmra.mxu0 %v3038
    %v3130 = vpop.f32.mrf.mxu0
    %v3131 = vadd.f32 0.0, %v3130
    %v3132 = vpop.f32.mrf.mxu0
    %3133 = vmatprep.mubr.f32.mxu0 0.0
    %3134 = vmatmul.mubr.f32.gmra.mxu0 %v3041
    %v3135 = vpop.f32.mrf.mxu0
    %v3136 = vadd.f32 0.0, %v3135
    %v3137 = vpop.f32.mrf.mxu0
    %3138 = vmatprep.mubr.f32.mxu0 0.0
    %3139 = vmatmul.mubr.f32.gmra.mxu0 %v3044
    %v3140 = vpop.f32.mrf.mxu0
    %v3141 = vadd.f32 0.0, %v3140
    %v3142 = vpop.f32.mrf.mxu0
    %3143 = vmatprep.mubr.f32.mxu0 0.0
    %3144 = vmatmul.mubr.f32.gmra.mxu0 %v3047
    %v3145 = vpop.f32.mrf.mxu0
    %v3146 = vadd.f32 0.0, %v3145
    %v3147 = vpop.f32.mrf.mxu0
    %3148 = vdwg.mxu0
    %v3149 = vadd.f32 %v1994, %v3116
    %v3150 = vadd.f32 %v1995, %v3121
    %v3151 = vadd.f32 %v1996, %v3126
    %v3152 = vadd.f32 %v1997, %v3131
    %v3153 = vadd.f32 %v1998, %v3136
    %v3154 = vadd.f32 %v1999, %v3141
    %v3155 = vadd.f32 %v2000, %v3146
    %v3156 = vlaneseq
    %v3157 = vshrl.u32 %v3156, 7
    %v3158 = vsub.s32 2, %v3157
    %v3159 = vrot.slane %v81, %v3158
    %v3160 = vadd.f32 %v3149, %v3159
    %v3161 = vadd.f32 %v3150, %v3159
    %v3162 = vadd.f32 %v3151, %v3159
    %v3163 = vadd.f32 %v3152, %v3159
    %v3164 = vadd.f32 %v3153, %v3159
    %v3165 = vadd.f32 %v3154, %v3159
    %v3166 = vadd.f32 %v3155, %v3159
    %v3167 = vsel %vm383, %v3160, 0.0
    %3168 = vadd.xlane.f32.xlu0 %v3167
    %v3169 = vpop.xlane.xlu0 %3168
    %v3170 = vsel %vm383, %v3161, 0.0
    %3171 = vadd.xlane.f32.xlu0 %v3170
    %v3172 = vpop.xlane.xlu0 %3171
    %v3173 = vsel %vm383, %v3162, 0.0
    %3174 = vadd.xlane.f32.xlu0 %v3173
    %v3175 = vpop.xlane.xlu0 %3174
    %v3176 = vsel %vm383, %v3163, 0.0
    %3177 = vadd.xlane.f32.xlu0 %v3176
    %v3178 = vpop.xlane.xlu0 %3177
    %v3179 = vsel %vm383, %v3164, 0.0
    %3180 = vadd.xlane.f32.xlu0 %v3179
    %v3181 = vpop.xlane.xlu0 %3180
    %v3182 = vsel %vm383, %v3165, 0.0
    %3183 = vadd.xlane.f32.xlu0 %v3182
    %v3184 = vpop.xlane.xlu0 %3183
    %v3185 = vsel %vm402, %v3166, 0.0
    %3186 = vadd.xlane.f32.xlu0 %v3185
    %v3187 = vpop.xlane.xlu0 %3186
    %v3188 = vmul.f32 %v3169, %v406
    %v3189 = vmul.f32 %v3172, %v406
    %v3190 = vmul.f32 %v3175, %v406
    %v3191 = vmul.f32 %v3178, %v406
    %v3192 = vmul.f32 %v3181, %v406
    %v3193 = vmul.f32 %v3184, %v406
    %v3194 = vmul.f32 %v3187, %v406
    %v3195 = vsub.f32 %v3160, %v3188
    %v3196 = vsub.f32 %v3161, %v3189
    %v3197 = vsub.f32 %v3162, %v3190
    %v3198 = vsub.f32 %v3163, %v3191
    %v3199 = vsub.f32 %v3164, %v3192
    %v3200 = vsub.f32 %v3165, %v3193
    %v3201 = vsub.f32 %v3166, %v3194
    %v3202 = vmul.f32 %v3195, %v3195
    %v3203 = vmul.f32 %v3196, %v3196
    %v3204 = vmul.f32 %v3197, %v3197
    %v3205 = vmul.f32 %v3198, %v3198
    %v3206 = vmul.f32 %v3199, %v3199
    %v3207 = vmul.f32 %v3200, %v3200
    %v3208 = vmul.f32 %v3201, %v3201
    %v3209 = vsel %vm383, %v3202, 0.0
    %3210 = vadd.xlane.f32.xlu0 %v3209
    %v3211 = vpop.xlane.xlu0 %3210
    %v3212 = vsel %vm383, %v3203, 0.0
    %3213 = vadd.xlane.f32.xlu0 %v3212
    %v3214 = vpop.xlane.xlu0 %3213
    %v3215 = vsel %vm383, %v3204, 0.0
    %3216 = vadd.xlane.f32.xlu0 %v3215
    %v3217 = vpop.xlane.xlu0 %3216
    %v3218 = vsel %vm383, %v3205, 0.0
    %3219 = vadd.xlane.f32.xlu0 %v3218
    %v3220 = vpop.xlane.xlu0 %3219
    %v3221 = vsel %vm383, %v3206, 0.0
    %3222 = vadd.xlane.f32.xlu0 %v3221
    %v3223 = vpop.xlane.xlu0 %3222
    %v3224 = vsel %vm383, %v3207, 0.0
    %3225 = vadd.xlane.f32.xlu0 %v3224
    %v3226 = vpop.xlane.xlu0 %3225
    %v3227 = vsel %vm402, %v3208, 0.0
    %3228 = vadd.xlane.f32.xlu0 %v3227
    %v3229 = vpop.xlane.xlu0 %3228
    %v3230 = vmul.f32 %v3211, %v406
    %v3231 = vmul.f32 %v3214, %v406
    %v3232 = vmul.f32 %v3217, %v406
    %v3233 = vmul.f32 %v3220, %v406
    %v3234 = vmul.f32 %v3223, %v406
    %v3235 = vmul.f32 %v3226, %v406
    %v3236 = vmul.f32 %v3229, %v406
    %v3237 = vadd.f32 %v3230, 1e-05
    %v3238 = vadd.f32 %v3231, 1e-05
    %v3239 = vadd.f32 %v3232, 1e-05
    %v3240 = vadd.f32 %v3233, 1e-05
    %v3241 = vadd.f32 %v3234, 1e-05
    %v3242 = vadd.f32 %v3235, 1e-05
    %v3243 = vadd.f32 %v3236, 1e-05
    %v3244 = vrsqrt.pop %v3237
    %v3245 = vrsqrt.pop %v3238
    %v3246 = vrsqrt.pop %v3239
    %v3247 = vrsqrt.pop %v3240
    %v3248 = vrsqrt.pop %v3241
    %v3249 = vrsqrt.pop %v3242
    %v3250 = vrsqrt.pop %v3243
    %v3251 = vmul.f32 %v3195, %v3244
    %v3252 = vmul.f32 %v3196, %v3245
    %v3253 = vmul.f32 %v3197, %v3246
    %v3254 = vmul.f32 %v3198, %v3247
    %v3255 = vmul.f32 %v3199, %v3248
    %v3256 = vmul.f32 %v3200, %v3249
    %v3257 = vmul.f32 %v3201, %v3250
    %v3258 = vlaneseq
    %v3259 = vshrl.u32 %v3258, 7
    %v3260 = vsub.s32 0, %v3259
    %v3261 = vrot.slane %v81, %v3260
    %v3262 = vmul.f32 %v3251, %v3261
    %v3263 = vmul.f32 %v3252, %v3261
    %v3264 = vmul.f32 %v3253, %v3261
    %v3265 = vmul.f32 %v3254, %v3261
    %v3266 = vmul.f32 %v3255, %v3261
    %v3267 = vmul.f32 %v3256, %v3261
    %v3268 = vmul.f32 %v3257, %v3261
    %v3269 = vlaneseq
    %v3270 = vshrl.u32 %v3269, 7
    %v3271 = vsub.s32 1, %v3270
    %v3272 = vrot.slane %v81, %v3271
    %v3273 = vadd.f32 %v3262, %v3272
    %v3274 = vadd.f32 %v3263, %v3272
    %v3275 = vadd.f32 %v3264, %v3272
    %v3276 = vadd.f32 %v3265, %v3272
    %v3277 = vadd.f32 %v3266, %v3272
    %v3278 = vadd.f32 %v3267, %v3272
    %v3279 = vadd.f32 %v3268, %v3272
    %s3280 = scalar_lea.vmem %s9, 32
    %v3281 = vld [vmem:[%s3280] sm:$0xff]
    %v3282 = vld [vmem:[%s3280 + $0x8] sm:$0xff]
    %v3283 = vld [vmem:[%s3280 + $0x10] sm:$0xff]
    %v3284 = vld [vmem:[%s3280 + $0x18] sm:$0xff]
    %s3285 = scalar_lea.vmem %s10, 1
    %v3286 = vld [vmem:[%s3285] sm:$0x1]
    %v3288 = vlaneseq
    %v3289 = vshrl.u32 %v3288, 7
    %v3290 = vsub.s32 0, %v3289
    %v3291 = vrot.slane %v3286, %v3290
    %v3294 = vsel %vm383, %v3273, 0
    %v3297 = vsel %vm383, %v3274, 0
    %v3300 = vsel %vm383, %v3275, 0
    %v3303 = vsel %vm383, %v3276, 0
    %v3306 = vsel %vm383, %v3277, 0
    %v3309 = vsel %vm383, %v3278, 0
    %v3312 = vsel %vm383, %v3279, 0
    %3314 = vmatprep.subr.mxu0 0.0
    %3315 = vmatpush1.msra.mxu0 0.0
    %3316 = vmatprep.subr.mxu0 0.0
    %3317 = vmatpush1.msra.mxu0 0.0
    %3318 = vmatprep.subr.mxu0 0.0
    %3319 = vmatpush1.msra.mxu0 0.0
    %3320 = vmatprep.subr.mxu0 0.0
    %3321 = vmatpush1.msra.mxu0 0.0
    %3322 = vmatprep.subr.mxu0 0.0
    %3323 = vmatpush1.msra.mxu0 0.0
    %3324 = vmatprep.subr.mxu0 0.0
    %3325 = vmatpush1.msra.mxu0 0.0
    %3326 = vmatprep.subr.mxu0 0.0
    %3327 = vmatpush1.msra.mxu0 0.0
    %3328 = vmatprep.subr.mxu0 0.0
    %3329 = vmatpush1.msra.mxu0 0.0
    %3330 = vmatprep.subr.mxu0 0.0
    %3331 = vmatpush1.msra.mxu0 0.0
    %3332 = vmatprep.subr.mxu0 0.0
    %3333 = vmatpush1.msra.mxu0 0.0
    %3334 = vmatprep.subr.mxu0 0.0
    %3335 = vmatpush1.msra.mxu0 0.0
    %3336 = vmatprep.subr.mxu0 0.0
    %3337 = vmatpush1.msra.mxu0 0.0
    %3338 = vmatprep.subr.mxu0 0.0
    %3339 = vmatpush1.msra.mxu0 %v3284
    %3340 = vmatprep.subr.mxu0 0.0
    %3341 = vmatpush1.msra.mxu0 %v3283
    %3342 = vmatprep.subr.mxu0 0.0
    %3343 = vmatpush1.msra.mxu0 %v3282
    %3344 = vmatprep.subr.mxu0 0.0
    %3345 = vmatpush1.msra.mxu0 %v3281
    %3346 = vmatprep.subr.mxu0 0.0
    %3347 = vmatpush2.msra.mxu0 0.0
    %3348 = vmatprep.subr.mxu0 0.0
    %3349 = vmatpush2.msra.mxu0 0.0
    %3350 = vmatprep.subr.mxu0 0.0
    %3351 = vmatpush2.msra.mxu0 0.0
    %3352 = vmatprep.subr.mxu0 0.0
    %3353 = vmatpush2.msra.mxu0 0.0
    %3354 = vmatprep.subr.mxu0 0.0
    %3355 = vmatpush2.msra.mxu0 0.0
    %3356 = vmatprep.subr.mxu0 0.0
    %3357 = vmatpush2.msra.mxu0 0.0
    %3358 = vmatprep.subr.mxu0 0.0
    %3359 = vmatpush2.msra.mxu0 0.0
    %3360 = vmatprep.subr.mxu0 0.0
    %3361 = vmatpush2.msra.mxu0 0.0
    %3362 = vmatprep.subr.mxu0 0.0
    %3363 = vmatpush2.msra.mxu0 0.0
    %3364 = vmatprep.subr.mxu0 0.0
    %3365 = vmatpush2.msra.mxu0 0.0
    %3366 = vmatprep.subr.mxu0 0.0
    %3367 = vmatpush2.msra.mxu0 0.0
    %3368 = vmatprep.subr.mxu0 0.0
    %3369 = vmatpush2.msra.mxu0 0.0
    %3370 = vmatprep.subr.mxu0 0.0
    %3371 = vmatpush2.msra.mxu0 0.0
    %3372 = vmatprep.subr.mxu0 0.0
    %3373 = vmatpush2.msra.mxu0 0.0
    %3374 = vmatprep.subr.mxu0 0.0
    %3375 = vmatpush2.msra.mxu0 0.0
    %3376 = vmatprep.subr.mxu0 0.0
    %3377 = vmatpush2.msra.mxu0 0.0
    %3378 = vmatprep.mubr.f32.mxu0 0.0
    %3379 = vmatmul.mubr.f32.gmra.mxu0 %v3294
    %v3380 = vpop.f32.mrf.mxu0
    %v3381 = vadd.f32 %v3291, %v3380
    %v3382 = vpop.f32.mrf.mxu0
    %3383 = vmatprep.mubr.f32.mxu0 0.0
    %3384 = vmatmul.mubr.f32.gmra.mxu0 %v3297
    %v3385 = vpop.f32.mrf.mxu0
    %v3386 = vadd.f32 %v3291, %v3385
    %v3387 = vpop.f32.mrf.mxu0
    %3388 = vmatprep.mubr.f32.mxu0 0.0
    %3389 = vmatmul.mubr.f32.gmra.mxu0 %v3300
    %v3390 = vpop.f32.mrf.mxu0
    %v3391 = vadd.f32 %v3291, %v3390
    %v3392 = vpop.f32.mrf.mxu0
    %3393 = vmatprep.mubr.f32.mxu0 0.0
    %3394 = vmatmul.mubr.f32.gmra.mxu0 %v3303
    %v3395 = vpop.f32.mrf.mxu0
    %v3396 = vadd.f32 %v3291, %v3395
    %v3397 = vpop.f32.mrf.mxu0
    %3398 = vmatprep.mubr.f32.mxu0 0.0
    %3399 = vmatmul.mubr.f32.gmra.mxu0 %v3306
    %v3400 = vpop.f32.mrf.mxu0
    %v3401 = vadd.f32 %v3291, %v3400
    %v3402 = vpop.f32.mrf.mxu0
    %3403 = vmatprep.mubr.f32.mxu0 0.0
    %3404 = vmatmul.mubr.f32.gmra.mxu0 %v3309
    %v3405 = vpop.f32.mrf.mxu0
    %v3406 = vadd.f32 %v3291, %v3405
    %v3407 = vpop.f32.mrf.mxu0
    %3408 = vmatprep.mubr.f32.mxu0 0.0
    %3409 = vmatmul.mubr.f32.gmra.mxu0 %v3312
    %v3410 = vpop.f32.mrf.mxu0
    %v3411 = vadd.f32 %v3291, %v3410
    %v3412 = vpop.f32.mrf.mxu0
    %3413 = vdwg.mxu0
    %v3414 = vmul.f32 %v3381, %v3381
    %v3415 = vmul.f32 %v3386, %v3386
    %v3416 = vmul.f32 %v3391, %v3391
    %v3417 = vmul.f32 %v3396, %v3396
    %v3418 = vmul.f32 %v3401, %v3401
    %v3419 = vmul.f32 %v3406, %v3406
    %v3420 = vmul.f32 %v3411, %v3411
    %v3421 = vmul.f32 %v3381, %v3414
    %v3422 = vmul.f32 %v3386, %v3415
    %v3423 = vmul.f32 %v3391, %v3416
    %v3424 = vmul.f32 %v3396, %v3417
    %v3425 = vmul.f32 %v3401, %v3418
    %v3426 = vmul.f32 %v3406, %v3419
    %v3427 = vmul.f32 %v3411, %v3420
    %v3428 = vmul.f32 %v3421, 0.044715
    %v3429 = vmul.f32 %v3422, 0.044715
    %v3430 = vmul.f32 %v3423, 0.044715
    %v3431 = vmul.f32 %v3424, 0.044715
    %v3432 = vmul.f32 %v3425, 0.044715
    %v3433 = vmul.f32 %v3426, 0.044715
    %v3434 = vmul.f32 %v3427, 0.044715
    %v3435 = vadd.f32 %v3381, %v3428
    %v3436 = vadd.f32 %v3386, %v3429
    %v3437 = vadd.f32 %v3391, %v3430
    %v3438 = vadd.f32 %v3396, %v3431
    %v3439 = vadd.f32 %v3401, %v3432
    %v3440 = vadd.f32 %v3406, %v3433
    %v3441 = vadd.f32 %v3411, %v3434
    %v3442 = vmul.f32 %v3435, 0.7978846
    %v3443 = vmul.f32 %v3436, 0.7978846
    %v3444 = vmul.f32 %v3437, 0.7978846
    %v3445 = vmul.f32 %v3438, 0.7978846
    %v3446 = vmul.f32 %v3439, 0.7978846
    %v3447 = vmul.f32 %v3440, 0.7978846
    %v3448 = vmul.f32 %v3441, 0.7978846
    %v3449 = vtanh.pop %v3442
    %v3450 = vtanh.pop %v3443
    %v3451 = vtanh.pop %v3444
    %v3452 = vtanh.pop %v3445
    %v3453 = vtanh.pop %v3446
    %v3454 = vtanh.pop %v3447
    %v3455 = vtanh.pop %v3448
    %v3456 = vadd.f32 %v3449, 1.0
    %v3457 = vadd.f32 %v3450, 1.0
    %v3458 = vadd.f32 %v3451, 1.0
    %v3459 = vadd.f32 %v3452, 1.0
    %v3460 = vadd.f32 %v3453, 1.0
    %v3461 = vadd.f32 %v3454, 1.0
    %v3462 = vadd.f32 %v3455, 1.0
    %v3463 = vmul.f32 %v3456, 0.5
    %v3464 = vmul.f32 %v3457, 0.5
    %v3465 = vmul.f32 %v3458, 0.5
    %v3466 = vmul.f32 %v3459, 0.5
    %v3467 = vmul.f32 %v3460, 0.5
    %v3468 = vmul.f32 %v3461, 0.5
    %v3469 = vmul.f32 %v3462, 0.5
    %v3470 = vmul.f32 %v3381, %v3463
    %v3471 = vmul.f32 %v3386, %v3464
    %v3472 = vmul.f32 %v3391, %v3465
    %v3473 = vmul.f32 %v3396, %v3466
    %v3474 = vmul.f32 %v3401, %v3467
    %v3475 = vmul.f32 %v3406, %v3468
    %v3476 = vmul.f32 %v3411, %v3469
    %v3478 = vsel %vm1861, %v3470, 0
    %v3481 = vsel %vm1861, %v3471, 0
    %v3484 = vsel %vm1861, %v3472, 0
    %v3487 = vsel %vm1861, %v3473, 0
    %v3490 = vsel %vm1861, %v3474, 0
    %v3493 = vsel %vm1861, %v3475, 0
    %v3496 = vsel %vm1861, %v3476, 0
    %3498 = vmatprep.subr.mxu0 0.0
    %3499 = vmatpush1.msra.mxu0 0.0
    %3500 = vmatprep.subr.mxu0 0.0
    %3501 = vmatpush1.msra.mxu0 0.0
    %3502 = vmatprep.subr.mxu0 0.0
    %3503 = vmatpush1.msra.mxu0 0.0
    %3504 = vmatprep.subr.mxu0 0.0
    %3505 = vmatpush1.msra.mxu0 0.0
    %3506 = vmatprep.subr.mxu0 0.0
    %3507 = vmatpush1.msra.mxu0 0.0
    %3508 = vmatprep.subr.mxu0 0.0
    %3509 = vmatpush1.msra.mxu0 0.0
    %3510 = vmatprep.subr.mxu0 0.0
    %3511 = vmatpush1.msra.mxu0 0.0
    %3512 = vmatprep.subr.mxu0 0.0
    %3513 = vmatpush1.msra.mxu0 0.0
    %3514 = vmatprep.subr.mxu0 0.0
    %3515 = vmatpush1.msra.mxu0 %v75
    %3516 = vmatprep.subr.mxu0 0.0
    %3517 = vmatpush1.msra.mxu0 %v74
    %3518 = vmatprep.subr.mxu0 0.0
    %3519 = vmatpush1.msra.mxu0 %v73
    %3520 = vmatprep.subr.mxu0 0.0
    %3521 = vmatpush1.msra.mxu0 %v72
    %3522 = vmatprep.subr.mxu0 0.0
    %3523 = vmatpush1.msra.mxu0 %v71
    %3524 = vmatprep.subr.mxu0 0.0
    %3525 = vmatpush1.msra.mxu0 %v70
    %3526 = vmatprep.subr.mxu0 0.0
    %3527 = vmatpush1.msra.mxu0 %v69
    %3528 = vmatprep.subr.mxu0 0.0
    %3529 = vmatpush1.msra.mxu0 %v68
    %3530 = vmatprep.subr.mxu0 0.0
    %3531 = vmatpush2.msra.mxu0 0.0
    %3532 = vmatprep.subr.mxu0 0.0
    %3533 = vmatpush2.msra.mxu0 0.0
    %3534 = vmatprep.subr.mxu0 0.0
    %3535 = vmatpush2.msra.mxu0 0.0
    %3536 = vmatprep.subr.mxu0 0.0
    %3537 = vmatpush2.msra.mxu0 0.0
    %3538 = vmatprep.subr.mxu0 0.0
    %3539 = vmatpush2.msra.mxu0 0.0
    %3540 = vmatprep.subr.mxu0 0.0
    %3541 = vmatpush2.msra.mxu0 0.0
    %3542 = vmatprep.subr.mxu0 0.0
    %3543 = vmatpush2.msra.mxu0 0.0
    %3544 = vmatprep.subr.mxu0 0.0
    %3545 = vmatpush2.msra.mxu0 0.0
    %3546 = vmatprep.subr.mxu0 0.0
    %3547 = vmatpush2.msra.mxu0 0.0
    %3548 = vmatprep.subr.mxu0 0.0
    %3549 = vmatpush2.msra.mxu0 0.0
    %3550 = vmatprep.subr.mxu0 0.0
    %3551 = vmatpush2.msra.mxu0 0.0
    %3552 = vmatprep.subr.mxu0 0.0
    %3553 = vmatpush2.msra.mxu0 0.0
    %3554 = vmatprep.subr.mxu0 0.0
    %3555 = vmatpush2.msra.mxu0 0.0
    %3556 = vmatprep.subr.mxu0 0.0
    %3557 = vmatpush2.msra.mxu0 0.0
    %3558 = vmatprep.subr.mxu0 0.0
    %3559 = vmatpush2.msra.mxu0 0.0
    %3560 = vmatprep.subr.mxu0 0.0
    %3561 = vmatpush2.msra.mxu0 0.0
    %3562 = vmatprep.mubr.f32.mxu0 0.0
    %3563 = vmatmul.mubr.f32.gmra.mxu0 %v3478
    %v3564 = vpop.f32.mrf.mxu0
    %v3565 = vadd.f32 0.0, %v3564
    %v3566 = vpop.f32.mrf.mxu0
    %3567 = vmatprep.mubr.f32.mxu0 0.0
    %3568 = vmatmul.mubr.f32.gmra.mxu0 %v3481
    %v3569 = vpop.f32.mrf.mxu0
    %v3570 = vadd.f32 0.0, %v3569
    %v3571 = vpop.f32.mrf.mxu0
    %3572 = vmatprep.mubr.f32.mxu0 0.0
    %3573 = vmatmul.mubr.f32.gmra.mxu0 %v3484
    %v3574 = vpop.f32.mrf.mxu0
    %v3575 = vadd.f32 0.0, %v3574
    %v3576 = vpop.f32.mrf.mxu0
    %3577 = vmatprep.mubr.f32.mxu0 0.0
    %3578 = vmatmul.mubr.f32.gmra.mxu0 %v3487
    %v3579 = vpop.f32.mrf.mxu0
    %v3580 = vadd.f32 0.0, %v3579
    %v3581 = vpop.f32.mrf.mxu0
    %3582 = vmatprep.mubr.f32.mxu0 0.0
    %3583 = vmatmul.mubr.f32.gmra.mxu0 %v3490
    %v3584 = vpop.f32.mrf.mxu0
    %v3585 = vadd.f32 0.0, %v3584
    %v3586 = vpop.f32.mrf.mxu0
    %3587 = vmatprep.mubr.f32.mxu0 0.0
    %3588 = vmatmul.mubr.f32.gmra.mxu0 %v3493
    %v3589 = vpop.f32.mrf.mxu0
    %v3590 = vadd.f32 0.0, %v3589
    %v3591 = vpop.f32.mrf.mxu0
    %3592 = vmatprep.mubr.f32.mxu0 0.0
    %3593 = vmatmul.mubr.f32.gmra.mxu0 %v3496
    %v3594 = vpop.f32.mrf.mxu0
    %v3595 = vadd.f32 0.0, %v3594
    %v3596 = vpop.f32.mrf.mxu0
    %3597 = vdwg.mxu0
    %v3598 = vadd.f32 %v3160, %v3565
    %v3599 = vadd.f32 %v3161, %v3570
    %v3600 = vadd.f32 %v3162, %v3575
    %v3601 = vadd.f32 %v3163, %v3580
    %v3602 = vadd.f32 %v3164, %v3585
    %v3603 = vadd.f32 %v3165, %v3590
    %v3604 = vadd.f32 %v3166, %v3595
    %v3605 = vlaneseq
    %v3606 = vshrl.u32 %v3605, 7
    %v3607 = vsub.s32 3, %v3606
    %v3608 = vrot.slane %v81, %v3607
    %v3609 = vadd.f32 %v3598, %v3608
    %v3610 = vadd.f32 %v3599, %v3608
    %v3611 = vadd.f32 %v3600, %v3608
    %v3612 = vadd.f32 %v3601, %v3608
    %v3613 = vadd.f32 %v3602, %v3608
    %v3614 = vadd.f32 %v3603, %v3608
    %v3615 = vadd.f32 %v3604, %v3608
    %v3616 = vsel %vm383, %v3609, 0.0
    %3617 = vadd.xlane.f32.xlu0 %v3616
    %v3618 = vpop.xlane.xlu0 %3617
    %v3619 = vsel %vm383, %v3610, 0.0
    %3620 = vadd.xlane.f32.xlu0 %v3619
    %v3621 = vpop.xlane.xlu0 %3620
    %v3622 = vsel %vm383, %v3611, 0.0
    %3623 = vadd.xlane.f32.xlu0 %v3622
    %v3624 = vpop.xlane.xlu0 %3623
    %v3625 = vsel %vm383, %v3612, 0.0
    %3626 = vadd.xlane.f32.xlu0 %v3625
    %v3627 = vpop.xlane.xlu0 %3626
    %v3628 = vsel %vm383, %v3613, 0.0
    %3629 = vadd.xlane.f32.xlu0 %v3628
    %v3630 = vpop.xlane.xlu0 %3629
    %v3631 = vsel %vm383, %v3614, 0.0
    %3632 = vadd.xlane.f32.xlu0 %v3631
    %v3633 = vpop.xlane.xlu0 %3632
    %v3634 = vsel %vm402, %v3615, 0.0
    %3635 = vadd.xlane.f32.xlu0 %v3634
    %v3636 = vpop.xlane.xlu0 %3635
    %v3637 = vmul.f32 %v3618, %v406
    %v3638 = vmul.f32 %v3621, %v406
    %v3639 = vmul.f32 %v3624, %v406
    %v3640 = vmul.f32 %v3627, %v406
    %v3641 = vmul.f32 %v3630, %v406
    %v3642 = vmul.f32 %v3633, %v406
    %v3643 = vmul.f32 %v3636, %v406
    %v3644 = vsub.f32 %v3609, %v3637
    %v3645 = vsub.f32 %v3610, %v3638
    %v3646 = vsub.f32 %v3611, %v3639
    %v3647 = vsub.f32 %v3612, %v3640
    %v3648 = vsub.f32 %v3613, %v3641
    %v3649 = vsub.f32 %v3614, %v3642
    %v3650 = vsub.f32 %v3615, %v3643
    %v3651 = vmul.f32 %v3644, %v3644
    %v3652 = vmul.f32 %v3645, %v3645
    %v3653 = vmul.f32 %v3646, %v3646
    %v3654 = vmul.f32 %v3647, %v3647
    %v3655 = vmul.f32 %v3648, %v3648
    %v3656 = vmul.f32 %v3649, %v3649
    %v3657 = vmul.f32 %v3650, %v3650
    %v3658 = vsel %vm383, %v3651, 0.0
    %3659 = vadd.xlane.f32.xlu0 %v3658
    %v3660 = vpop.xlane.xlu0 %3659
    %v3661 = vsel %vm383, %v3652, 0.0
    %3662 = vadd.xlane.f32.xlu0 %v3661
    %v3663 = vpop.xlane.xlu0 %3662
    %v3664 = vsel %vm383, %v3653, 0.0
    %3665 = vadd.xlane.f32.xlu0 %v3664
    %v3666 = vpop.xlane.xlu0 %3665
    %v3667 = vsel %vm383, %v3654, 0.0
    %3668 = vadd.xlane.f32.xlu0 %v3667
    %v3669 = vpop.xlane.xlu0 %3668
    %v3670 = vsel %vm383, %v3655, 0.0
    %3671 = vadd.xlane.f32.xlu0 %v3670
    %v3672 = vpop.xlane.xlu0 %3671
    %v3673 = vsel %vm383, %v3656, 0.0
    %3674 = vadd.xlane.f32.xlu0 %v3673
    %v3675 = vpop.xlane.xlu0 %3674
    %v3676 = vsel %vm402, %v3657, 0.0
    %3677 = vadd.xlane.f32.xlu0 %v3676
    %v3678 = vpop.xlane.xlu0 %3677
    %v3679 = vmul.f32 %v3660, %v406
    %v3680 = vmul.f32 %v3663, %v406
    %v3681 = vmul.f32 %v3666, %v406
    %v3682 = vmul.f32 %v3669, %v406
    %v3683 = vmul.f32 %v3672, %v406
    %v3684 = vmul.f32 %v3675, %v406
    %v3685 = vmul.f32 %v3678, %v406
    %v3686 = vadd.f32 %v3679, 1e-05
    %v3687 = vadd.f32 %v3680, 1e-05
    %v3688 = vadd.f32 %v3681, 1e-05
    %v3689 = vadd.f32 %v3682, 1e-05
    %v3690 = vadd.f32 %v3683, 1e-05
    %v3691 = vadd.f32 %v3684, 1e-05
    %v3692 = vadd.f32 %v3685, 1e-05
    %v3693 = vrsqrt.pop %v3686
    %v3694 = vrsqrt.pop %v3687
    %v3695 = vrsqrt.pop %v3688
    %v3696 = vrsqrt.pop %v3689
    %v3697 = vrsqrt.pop %v3690
    %v3698 = vrsqrt.pop %v3691
    %v3699 = vrsqrt.pop %v3692
    %v3700 = vmul.f32 %v3644, %v3693
    %v3701 = vmul.f32 %v3645, %v3694
    %v3702 = vmul.f32 %v3646, %v3695
    %v3703 = vmul.f32 %v3647, %v3696
    %v3704 = vmul.f32 %v3648, %v3697
    %v3705 = vmul.f32 %v3649, %v3698
    %v3706 = vmul.f32 %v3650, %v3699
    %v3707 = vlaneseq
    %v3708 = vshrl.u32 %v3707, 7
    %v3709 = vsub.s32 4, %v3708
    %v3710 = vrot.slane %v81, %v3709
    %v3711 = vmul.f32 %v3700, %v3710
    %v3712 = vmul.f32 %v3701, %v3710
    %v3713 = vmul.f32 %v3702, %v3710
    %v3714 = vmul.f32 %v3703, %v3710
    %v3715 = vmul.f32 %v3704, %v3710
    %v3716 = vmul.f32 %v3705, %v3710
    %v3717 = vmul.f32 %v3706, %v3710
    %v3718 = vlaneseq
    %v3719 = vshrl.u32 %v3718, 7
    %v3720 = vsub.s32 5, %v3719
    %v3721 = vrot.slane %v81, %v3720
    %v3722 = vadd.f32 %v3711, %v3721
    %v3723 = vadd.f32 %v3712, %v3721
    %v3724 = vadd.f32 %v3713, %v3721
    %v3725 = vadd.f32 %v3714, %v3721
    %v3726 = vadd.f32 %v3715, %v3721
    %v3727 = vadd.f32 %v3716, %v3721
    %v3728 = vadd.f32 %v3717, %v3721
    %3729 = vst.msk [vmem:[%s12] sm:$0xff] %vm383, %v3722
    %3730 = vst.msk [vmem:[%s12 + $0x8] sm:$0xff] %vm383, %v3723
    %3731 = vst.msk [vmem:[%s12 + $0x10] sm:$0xff] %vm383, %v3724
    %3732 = vst.msk [vmem:[%s12 + $0x18] sm:$0xff] %vm383, %v3725
    %3733 = vst.msk [vmem:[%s12 + $0x20] sm:$0xff] %vm383, %v3726
    %3734 = vst.msk [vmem:[%s12 + $0x28] sm:$0xff] %vm383, %v3727
    %3735 = vst.msk [vmem:[%s12 + $0x30] sm:$0xf] %vm402, %v3728
    %v3736 = vlaneseq
    %v3737 = vshrl.u32 %v3736, 7
    %v3738 = vsub.s32 6, %v3737
    %v3739 = vrot.slane %v81, %v3738
    %v3741 = vsel %vm383, %v3728, 0
    %3743 = vmatprep.subr.mxu0 0.0
    %3744 = vmatpush1.msra.mxu0 0.0
    %3745 = vmatprep.subr.mxu0 0.0
    %3746 = vmatpush1.msra.mxu0 0.0
    %3747 = vmatprep.subr.mxu0 0.0
    %3748 = vmatpush1.msra.mxu0 0.0
    %3749 = vmatprep.subr.mxu0 0.0
    %3750 = vmatpush1.msra.mxu0 0.0
    %3751 = vmatprep.subr.mxu0 0.0
    %3752 = vmatpush1.msra.mxu0 0.0
    %3753 = vmatprep.subr.mxu0 0.0
    %3754 = vmatpush1.msra.mxu0 0.0
    %3755 = vmatprep.subr.mxu0 0.0
    %3756 = vmatpush1.msra.mxu0 0.0
    %3757 = vmatprep.subr.mxu0 0.0
    %3758 = vmatpush1.msra.mxu0 0.0
    %3759 = vmatprep.subr.mxu0 0.0
    %3760 = vmatpush1.msra.mxu0 0.0
    %3761 = vmatprep.subr.mxu0 0.0
    %3762 = vmatpush1.msra.mxu0 0.0
    %3763 = vmatprep.subr.mxu0 0.0
    %3764 = vmatpush1.msra.mxu0 0.0
    %3765 = vmatprep.subr.mxu0 0.0
    %3766 = vmatpush1.msra.mxu0 0.0
    %3767 = vmatprep.subr.mxu0 0.0
    %3768 = vmatpush1.msra.mxu0 %v79
    %3769 = vmatprep.subr.mxu0 0.0
    %3770 = vmatpush1.msra.mxu0 %v78
    %3771 = vmatprep.subr.mxu0 0.0
    %3772 = vmatpush1.msra.mxu0 %v77
    %3773 = vmatprep.subr.mxu0 0.0
    %3774 = vmatpush1.msra.mxu0 %v76
    %3775 = vmatprep.subr.mxu0 0.0
    %3776 = vmatpush2.msra.mxu0 0.0
    %3777 = vmatprep.subr.mxu0 0.0
    %3778 = vmatpush2.msra.mxu0 0.0
    %3779 = vmatprep.subr.mxu0 0.0
    %3780 = vmatpush2.msra.mxu0 0.0
    %3781 = vmatprep.subr.mxu0 0.0
    %3782 = vmatpush2.msra.mxu0 0.0
    %3783 = vmatprep.subr.mxu0 0.0
    %3784 = vmatpush2.msra.mxu0 0.0
    %3785 = vmatprep.subr.mxu0 0.0
    %3786 = vmatpush2.msra.mxu0 0.0
    %3787 = vmatprep.subr.mxu0 0.0
    %3788 = vmatpush2.msra.mxu0 0.0
    %3789 = vmatprep.subr.mxu0 0.0
    %3790 = vmatpush2.msra.mxu0 0.0
    %3791 = vmatprep.subr.mxu0 0.0
    %3792 = vmatpush2.msra.mxu0 0.0
    %3793 = vmatprep.subr.mxu0 0.0
    %3794 = vmatpush2.msra.mxu0 0.0
    %3795 = vmatprep.subr.mxu0 0.0
    %3796 = vmatpush2.msra.mxu0 0.0
    %3797 = vmatprep.subr.mxu0 0.0
    %3798 = vmatpush2.msra.mxu0 0.0
    %3799 = vmatprep.subr.mxu0 0.0
    %3800 = vmatpush2.msra.mxu0 0.0
    %3801 = vmatprep.subr.mxu0 0.0
    %3802 = vmatpush2.msra.mxu0 0.0
    %3803 = vmatprep.subr.mxu0 0.0
    %3804 = vmatpush2.msra.mxu0 0.0
    %3805 = vmatprep.subr.mxu0 0.0
    %3806 = vmatpush2.msra.mxu0 0.0
    %3807 = vmatprep.mubr.f32.mxu0 0.0
    %3808 = vmatmul.mubr.f32.gmra.mxu0 %v3741
    %v3809 = vpop.f32.mrf.mxu0
    %v3810 = vadd.f32 %v3739, %v3809
    %v3811 = vpop.f32.mrf.mxu0
    %3812 = vdwg.mxu0
    %vm3813 = vcmask 52224
    %3814 = vst.msk [vmem:[#allocation2] sm:$0xf] %vm3813, %v3810
    // Predicated region
    $region50: #{_lambda_.1} parent=1 // pred_check
      _
    $region51: #{_lambda_.1} parent=1 // pred_check_branch
      %3816 = sbr.rel (0) target = $region53
    $region52: #{_lambda_.1} parent=1 // pred_region
      _
    $region53: #{_lambda_.1} parent=1 // pred_fallthru
      _
    // Predicated region
    $region54: #{_lambda_.1} parent=1 // pred_check
      _
    $region55: #{_lambda_.1} parent=1 // pred_check_branch
      %3818 = sbr.rel (0) target = $region57
    $region56: #{_lambda_.1} parent=1 // pred_region
      %s3820 = ssub.s32 64, 64
      %3821 = vsyncadd [#allocation3], %s3820
      %s3823 = sshll.u32 [#allocation2], 4
      %s3824 = int_to_ptr.vmem [resolvable:$true] %s3823
      %3826 = dma.vmem_to_hbm [thread:$0]  %s3824, 64, %s13, [#allocation3]
    $region57: #{_lambda_.1} parent=1 // pred_fallthru
      _
    // Predicated region
    $region58: #{_lambda_.1} parent=1 // pred_check
      _
    $region59: #{_lambda_.1} parent=1 // pred_check_branch
      %3828 = sbr.rel (0) target = $region61
    $region60: #{_lambda_.1} parent=1 // pred_region
      _
    $region61: #{_lambda_.1} parent=1 // pred_fallthru
      _
    // Predicated region
    $region62: #{_lambda_.1} parent=1 // pred_check
      _
    $region63: #{_lambda_.1} parent=1 // pred_check_branch
      %3830 = sbr.rel (0) target = $region65
    $region64: #{_lambda_.1} parent=1 // pred_region
      %3831 = dma.done [#allocation3], 64
    $region65: #{_lambda_.1} parent=1 // pred_fallthru
      _
    %3832 = vsyncpa [#allocation3], 1

</llo_original>
